<compile_context>
chip_gen: v5e
topology: v5e:2x2
jax: 0.10.0
libtpu: 0.0.40
codegen_flags: <defaults>
</compile_context>

<pallas_src>
import itertools
import math

import jax
import jax.numpy as jnp
import numpy as np
from jax.experimental import pallas as pl
from jax.experimental.pallas import tpu as pltpu


def _make_list(x, n):
    if isinstance(x, (list, tuple)):
        assert len(x) == n
        return list(x)
    return [x] * n


def _round_up(v, m):
    return (v + m - 1) // m * m


def _x_index_map(j, sx, dx):
    # X block size is 1, so block index == element index.
    def imap(nn, ii, yt):
        return (nn, ii * sx + j * dx, 0, 0, 0)
    return imap


def dwconv4d_forward(x, weight, kernel_size, stride, dilation):
    """x: (N, C, X, Y, Z, T); weight: (Kvol, C) -> (N, C, Xo, Yo, Zo, To)."""
    n, c = x.shape[:2]
    spatial = x.shape[2:]
    ks, st, dl = kernel_size, stride, dilation
    kx_, ky_, kz_, kt_ = ks
    sx, sy, sz, s_t = st
    dx, dy, dz, d_t = dl

    pads = [dl[i] * (ks[i] - 1) // 2 for i in range(4)]
    out_sp = [(spatial[i] - 1) // st[i] + 1 for i in range(4)]
    xo, yo, zo, to = out_sp

    # Channels-last, C padded to a lane-dense multiple of 128, zero "SAME" pad
    # on the 4 spatial dims, fuse (T, Cp) -> lane dim.
    # TODO(synk): small-C specialization (fuse Z*T*C) to avoid zero-lane waste.
    cp = _round_up(c, 128)
    xl = jnp.moveaxis(x, 1, -1)                                   # (N,X,Y,Z,T,C)
    pad_cfg = [(0, 0)] + [
        (pads[i], dl[i] * (ks[i] - 1) - pads[i]) for i in range(4)
    ] + [(0, cp - c)]
    xp = jnp.pad(xl, pad_cfg)                                     # (N,Xp,Yp,Zp,Tp,Cp)
    _, xpd, ypd, zpd, tpd, _ = xp.shape
    xp = xp.reshape(n, xpd, ypd, zpd, tpd * cp)                   # (N,Xp,Yp,Zp,Tp*Cp)

    # Per-offset weight row, padded to Cp and tiled over the fused (T, Cp)
    # output lane dim: w_tiled[k, t*Cp + c] = weight[k, c] (0 on pad lanes).
    w_pad = jnp.pad(weight.astype(jnp.float32), ((0, 0), (0, cp - c)))
    w_tiled = jnp.tile(w_pad, (1, to))                            # (Kvol, To*Cp)

    kvol = kx_ * ky_ * kz_ * kt_
    toc = to * cp
    out_dtype = x.dtype

    # Y-tile size: keep the f32 accumulator within ~24 vregs so it never
    # spills; pick a divisor of Yo so there are no partial output blocks.
    acc_row_elems = zo * toc
    ty_max = max(1, (24 * 1024) // acc_row_elems)
    if yo <= ty_max:
        ty = yo
    else:
        ty = max(d for d in range(1, ty_max + 1) if yo % d == 0)
    num_yt = yo // ty

    def kernel(*refs):
        w_ref = refs[0]
        x_refs = refs[1:1 + kx_]          # each (Yp, Zp, Tp*Cp)
        o_ref = refs[1 + kx_]             # (ty, Zo, To*Cp)

        y0 = pl.program_id(2) * (ty * sy)     # first input Y row of this tile
        acc = jnp.zeros((ty, zo, toc), jnp.float32)

        for kx in range(kx_):
            xr = x_refs[kx]
            for ky in range(ky_):
                ystart = y0 + ky * dy
                ysl = (pl.ds(ystart, ty) if sy == 1
                       else pl.ds(ystart, ty, stride=sy))
                for kz in range(kz_):
                    zsl = (pl.ds(kz * dz, zo) if sz == 1
                           else pl.ds(kz * dz, zo, stride=sz))
                    for kt in range(kt_):
                        k_flat = ((kx * ky_ + ky) * kz_ + kz) * kt_ + kt
                        w_row = w_ref[k_flat]                     # (To*Cp,)
                        if s_t == 1:
                            # one contiguous, 128-aligned lane window covering
                            # all `to` output frames at once
                            xs = xr[ysl, zsl, pl.ds(kt * d_t * cp, toc)]
                        else:
                            # strided T: per-output-frame 128-aligned slices
                            xs = jnp.concatenate(
                                [xr[ysl, zsl,
                                    pl.ds((kt * d_t + jt * s_t) * cp, cp)]
                                 for jt in range(to)], axis=-1)
                        # TODO(synk): for sub-32-bit inputs convert the block
                        # once into an f32 VMEM scratch instead of per-offset.
                        acc = acc + xs.astype(jnp.float32) * w_row
        o_ref[...] = acc.astype(o_ref.dtype)

    # Weight: whole table resident in VMEM (constant block index -> one DMA).
    in_specs = [pl.BlockSpec((kvol, toc), lambda nn, ii, yt: (0, 0))]
    # Padded input, one view per kernel x-offset (X block size 1 -> the halo
    # is expressed with element offsets in the index map).  The block index is
    # constant across the inner Y-tile axis, so it is DMA'd once per (n, x).
    for j in range(kx_):
        in_specs.append(
            pl.BlockSpec((None, None, ypd, zpd, tpd * cp),
                         _x_index_map(j, sx, dx)))
    out_spec = pl.BlockSpec((None, None, ty, zo, toc),
                            lambda nn, ii, yt: (nn, ii, yt, 0, 0))

    # Generation-aware VMEM budget (double-buffered inputs + output + weight).
    in_block_bytes = ypd * zpd * tpd * cp * xp.dtype.itemsize
    out_block_bytes = ty * zo * toc * jnp.dtype(out_dtype).itemsize
    w_bytes = kvol * toc * 4
    vmem_need = 2 * kx_ * in_block_bytes + 2 * out_block_bytes + 2 * w_bytes
    try:
        vmem_cap = int(pltpu.get_tpu_info().vmem_capacity_bytes) * 3 // 4
    except Exception:
        vmem_cap = 48 << 20   # conservative: v7x has only 64 MiB per core
    vmem_limit = None
    if vmem_need > (16 << 20):
        vmem_limit = min(int(vmem_need * 1.25) + (1 << 20), vmem_cap)

    out_fused = pl.pallas_call(
        kernel,
        out_shape=jax.ShapeDtypeStruct((n, xo, yo, zo, toc), out_dtype),
        grid_spec=pltpu.PrefetchScalarGridSpec(
            num_scalar_prefetch=0,
            grid=(n, xo, num_yt),
            in_specs=in_specs,
            out_specs=out_spec,
        ),
        compiler_params=pltpu.CompilerParams(
            dimension_semantics=("parallel", "parallel", "arbitrary"),
            vmem_limit_bytes=vmem_limit),
    )(w_tiled, *([xp] * kx_))

    out = out_fused.reshape(n, xo, yo, zo, to, cp)[..., :c]   # drop lane pad
    out = jnp.moveaxis(out, -1, 1)                            # (N,C,Xo,Yo,Zo,To)
    return out


class DepthwiseConv4d:
    def __init__(self, in_channels, kernel_size=3, stride=1, dilation=1,
                 bias=False, transpose=False, key=None):
        self.in_channels = in_channels
        self.kernel_size = _make_list(kernel_size, 4)
        self.stride = _make_list(stride, 4)
        self.dilation = _make_list(dilation, 4)
        assert int(np.prod(self.kernel_size)) > 1
        kvol = int(np.prod(self.kernel_size))
        std = 1.0 / math.sqrt(in_channels * kvol)
        key = jax.random.PRNGKey(42) if key is None else key
        # deterministic analog of torch.zeros(Kvol, C, 1).uniform_(-std, std)
        self.kernel = jax.random.uniform(
            key, (kvol, in_channels, 1), minval=-std, maxval=std,
            dtype=jnp.float32)
        self.bias = None  # bias=False in the reference module
        self.t = transpose

    def __call__(self, x):
        # TODO(synk): transposed sparse dwconv (inverse kernel map) not implemented.
        assert not self.t, "transpose=True path not implemented"
        assert x.ndim == 6 and x.shape[1] == self.in_channels
        return dwconv4d_forward(x, self.kernel[..., 0], self.kernel_size,
                                self.stride, self.dilation)


# ----------------------------------------------------------------------------
# Test-only reference helper (im2col in plain JAX; NOT used in the forward path).
# ----------------------------------------------------------------------------
def _im2col_4d(x, kernel_size, stride, dilation):
    n, c, *spatial = x.shape
    ks, st, dl = kernel_size, stride, dilation
    pads = [dl[i] * (ks[i] - 1) // 2 for i in range(4)]
    pad_cfg = [(0, 0), (0, 0)] + [
        (pads[i], dl[i] * (ks[i] - 1) - pads[i]) for i in range(4)
    ]
    xp = jnp.pad(x, pad_cfg)
    out_sp = [(spatial[i] - 1) // st[i] + 1 for i in range(4)]

    patches = []
    for off in itertools.product(*[range(k) for k in ks]):
        sl = [slice(None), slice(None)]
        for i in range(4):
            start = off[i] * dl[i]
            sl.append(slice(start, start + spatial[i], st[i]))
        patches.append(xp[tuple(sl)])
    stacked = jnp.stack(patches, axis=0)          # (Kvol, N, C, Xo, Yo, Zo, To)
    stacked = jnp.moveaxis(stacked, 2, -1)        # (Kvol, N, Xo, Yo, Zo, To, C)
    kvol = stacked.shape[0]
    p = int(np.prod(stacked.shape[1:-1]))
    flat = stacked.reshape(kvol, p, c)
    return flat, (n, *out_sp)


if __name__ == "__main__":
    key = jax.random.PRNGKey(0)
    k_x, k_w = jax.random.split(key)

    N, C = 2, 8
    spatial = (5, 5, 5, 3)  # (X, Y, Z, T)
    x = jax.random.normal(k_x, (N, C, *spatial), dtype=jnp.float32)

    mod = DepthwiseConv4d(in_channels=C, kernel_size=3, stride=1, dilation=1,
                          key=k_w)

    out = jax.block_until_ready(mod(x))
    assert out.shape == (N, C, *spatial), out.shape

    # Pure-JAX reference for the same semantics (im2col + weighted reduction).
    flat, dense_shape = _im2col_4d(x, mod.kernel_size, mod.stride, mod.dilation)
    ref_flat = jnp.einsum("kpc,kc->pc", flat, mod.kernel[..., 0])
    ref = jnp.moveaxis(ref_flat.reshape((*dense_shape, C)), -1, 1)

    if not bool(jnp.allclose(out, ref, atol=1e-5, rtol=1e-5)):
        raise AssertionError("Pallas kernel does not match reference")

    print("KERNEL_OK")
</pallas_src>

<mosaic_0001>
module attributes {stable_mosaic.version = 11 : i64} {
  func.func @kernel(%arg0: i32, %arg1: i32, %arg2: i32, %arg3: memref<81x384xf32, #tpu.memory_space<vmem>>, %arg4: memref<1x1x7x7x640xf32, #tpu.memory_space<vmem>>, %arg5: memref<1x1x7x7x640xf32, #tpu.memory_space<vmem>>, %arg6: memref<1x1x7x7x640xf32, #tpu.memory_space<vmem>>, %arg7: memref<1x1x5x5x384xf32, #tpu.memory_space<vmem>>) attributes {dimension_semantics = [#tpu.dimension_semantics<parallel>, #tpu.dimension_semantics<parallel>, #tpu.dimension_semantics<arbitrary>], iteration_bounds = array<i64: 2, 5, 1>, scalar_prefetch = 0 : i64, scratch_operands = 0 : i64, tpu.core_type = #tpu.core_type<tc>, window_params = [{pipeline_mode = #tpu.pipeline_mode<synchronous>, transform_indices = @transform_0, window_bounds = array<i64: 81, 384>}, {transform_indices = @transform_1, window_bounds = array<i64: 1, 1, 7, 7, 640>}, {transform_indices = @transform_2, window_bounds = array<i64: 1, 1, 7, 7, 640>}, {transform_indices = @transform_3, window_bounds = array<i64: 1, 1, 7, 7, 640>}, {transform_indices = @transform_4, window_bounds = array<i64: 1, 1, 5, 5, 384>}]} {
    %c5_i32 = arith.constant 5 : i32
    %0 = arith.muli %arg2, %c5_i32 : i32
    %cst = arith.constant 0.000000e+00 : f32
    %1 = vector.broadcast %cst : f32 to vector<5x5x384xf32>
    %c0_i32 = arith.constant 0 : i32
    %2 = arith.addi %0, %c0_i32 : i32
    %c0 = arith.constant 0 : index
    %c0_0 = arith.constant 0 : index
    %3 = vector.load %arg3[%c0, %c0_0] : memref<81x384xf32, #tpu.memory_space<vmem>>, vector<1x384xf32>
    %4 = vector.shape_cast %3 : vector<1x384xf32> to vector<384xf32>
    %c0_1 = arith.constant 0 : index
    %c0_2 = arith.constant 0 : index
    %5 = arith.index_cast %2 : i32 to index
    %c0_3 = arith.constant 0 : index
    %c0_4 = arith.constant 0 : index
    %6 = vector.load %arg4[%c0_1, %c0_2, %5, %c0_3, %c0_4] : memref<1x1x7x7x640xf32, #tpu.memory_space<vmem>>, vector<1x1x5x5x384xf32>
    %7 = vector.shape_cast %6 : vector<1x1x5x5x384xf32> to vector<5x5x384xf32>
    %8 = vector.shape_cast %4 : vector<384xf32> to vector<1x1x384xf32>
    %9 = vector.broadcast %8 : vector<1x1x384xf32> to vector<5x5x384xf32>
    %10 = arith.mulf %7, %9 : vector<5x5x384xf32>
    %11 = arith.addf %1, %10 : vector<5x5x384xf32>
    %c1 = arith.constant 1 : index
    %c0_5 = arith.constant 0 : index
    %12 = vector.load %arg3[%c1, %c0_5] : memref<81x384xf32, #tpu.memory_space<vmem>>, vector<1x384xf32>
    %13 = vector.shape_cast %12 : vector<1x384xf32> to vector<384xf32>
    %c0_6 = arith.constant 0 : index
    %c0_7 = arith.constant 0 : index
    %14 = arith.index_cast %2 : i32 to index
    %c0_8 = arith.constant 0 : index
    %c128 = arith.constant 128 : index
    %15 = vector.load %arg4[%c0_6, %c0_7, %14, %c0_8, %c128] : memref<1x1x7x7x640xf32, #tpu.memory_space<vmem>>, vector<1x1x5x5x384xf32>
    %16 = vector.shape_cast %15 : vector<1x1x5x5x384xf32> to vector<5x5x384xf32>
    %17 = vector.shape_cast %13 : vector<384xf32> to vector<1x1x384xf32>
    %18 = vector.broadcast %17 : vector<1x1x384xf32> to vector<5x5x384xf32>
    %19 = arith.mulf %16, %18 : vector<5x5x384xf32>
    %20 = arith.addf %11, %19 : vector<5x5x384xf32>
    %c2 = arith.constant 2 : index
    %c0_9 = arith.constant 0 : index
    %21 = vector.load %arg3[%c2, %c0_9] : memref<81x384xf32, #tpu.memory_space<vmem>>, vector<1x384xf32>
    %22 = vector.shape_cast %21 : vector<1x384xf32> to vector<384xf32>
    %c0_10 = arith.constant 0 : index
    %c0_11 = arith.constant 0 : index
    %23 = arith.index_cast %2 : i32 to index
    %c0_12 = arith.constant 0 : index
    %c256 = arith.constant 256 : index
    %24 = vector.load %arg4[%c0_10, %c0_11, %23, %c0_12, %c256] : memref<1x1x7x7x640xf32, #tpu.memory_space<vmem>>, vector<1x1x5x5x384xf32>
    %25 = vector.shape_cast %24 : vector<1x1x5x5x384xf32> to vector<5x5x384xf32>
    %26 = vector.shape_cast %22 : vector<384xf32> to vector<1x1x384xf32>
    %27 = vector.broadcast %26 : vector<1x1x384xf32> to vector<5x5x384xf32>
    %28 = arith.mulf %25, %27 : vector<5x5x384xf32>
    %29 = arith.addf %20, %28 : vector<5x5x384xf32>
    %c3 = arith.constant 3 : index
    %c0_13 = arith.constant 0 : index
    %30 = vector.load %arg3[%c3, %c0_13] : memref<81x384xf32, #tpu.memory_space<vmem>>, vector<1x384xf32>
    %31 = vector.shape_cast %30 : vector<1x384xf32> to vector<384xf32>
    %c0_14 = arith.constant 0 : index
    %c0_15 = arith.constant 0 : index
    %32 = arith.index_cast %2 : i32 to index
    %c1_16 = arith.constant 1 : index
    %c0_17 = arith.constant 0 : index
    %33 = vector.load %arg4[%c0_14, %c0_15, %32, %c1_16, %c0_17] : memref<1x1x7x7x640xf32, #tpu.memory_space<vmem>>, vector<1x1x5x5x384xf32>
    %34 = vector.shape_cast %33 : vector<1x1x5x5x384xf32> to vector<5x5x384xf32>
    %35 = vector.shape_cast %31 : vector<384xf32> to vector<1x1x384xf32>
    %36 = vector.broadcast %35 : vector<1x1x384xf32> to vector<5x5x384xf32>
    %37 = arith.mulf %34, %36 : vector<5x5x384xf32>
    %38 = arith.addf %29, %37 : vector<5x5x384xf32>
    %c4 = arith.constant 4 : index
    %c0_18 = arith.constant 0 : index
    %39 = vector.load %arg3[%c4, %c0_18] : memref<81x384xf32, #tpu.memory_space<vmem>>, vector<1x384xf32>
    %40 = vector.shape_cast %39 : vector<1x384xf32> to vector<384xf32>
    %c0_19 = arith.constant 0 : index
    %c0_20 = arith.constant 0 : index
    %41 = arith.index_cast %2 : i32 to index
    %c1_21 = arith.constant 1 : index
    %c128_22 = arith.constant 128 : index
    %42 = vector.load %arg4[%c0_19, %c0_20, %41, %c1_21, %c128_22] : memref<1x1x7x7x640xf32, #tpu.memory_space<vmem>>, vector<1x1x5x5x384xf32>
    %43 = vector.shape_cast %42 : vector<1x1x5x5x384xf32> to vector<5x5x384xf32>
    %44 = vector.shape_cast %40 : vector<384xf32> to vector<1x1x384xf32>
    %45 = vector.broadcast %44 : vector<1x1x384xf32> to vector<5x5x384xf32>
    %46 = arith.mulf %43, %45 : vector<5x5x384xf32>
    %47 = arith.addf %38, %46 : vector<5x5x384xf32>
    %c5 = arith.constant 5 : index
    %c0_23 = arith.constant 0 : index
    %48 = vector.load %arg3[%c5, %c0_23] : memref<81x384xf32, #tpu.memory_space<vmem>>, vector<1x384xf32>
    %49 = vector.shape_cast %48 : vector<1x384xf32> to vector<384xf32>
    %c0_24 = arith.constant 0 : index
    %c0_25 = arith.constant 0 : index
    %50 = arith.index_cast %2 : i32 to index
    %c1_26 = arith.constant 1 : index
    %c256_27 = arith.constant 256 : index
    %51 = vector.load %arg4[%c0_24, %c0_25, %50, %c1_26, %c256_27] : memref<1x1x7x7x640xf32, #tpu.memory_space<vmem>>, vector<1x1x5x5x384xf32>
    %52 = vector.shape_cast %51 : vector<1x1x5x5x384xf32> to vector<5x5x384xf32>
    %53 = vector.shape_cast %49 : vector<384xf32> to vector<1x1x384xf32>
    %54 = vector.broadcast %53 : vector<1x1x384xf32> to vector<5x5x384xf32>
    %55 = arith.mulf %52, %54 : vector<5x5x384xf32>
    %56 = arith.addf %47, %55 : vector<5x5x384xf32>
    %c6 = arith.constant 6 : index
    %c0_28 = arith.constant 0 : index
    %57 = vector.load %arg3[%c6, %c0_28] : memref<81x384xf32, #tpu.memory_space<vmem>>, vector<1x384xf32>
    %58 = vector.shape_cast %57 : vector<1x384xf32> to vector<384xf32>
    %c0_29 = arith.constant 0 : index
    %c0_30 = arith.constant 0 : index
    %59 = arith.index_cast %2 : i32 to index
    %c2_31 = arith.constant 2 : index
    %c0_32 = arith.constant 0 : index
    %60 = vector.load %arg4[%c0_29, %c0_30, %59, %c2_31, %c0_32] : memref<1x1x7x7x640xf32, #tpu.memory_space<vmem>>, vector<1x1x5x5x384xf32>
    %61 = vector.shape_cast %60 : vector<1x1x5x5x384xf32> to vector<5x5x384xf32>
    %62 = vector.shape_cast %58 : vector<384xf32> to vector<1x1x384xf32>
    %63 = vector.broadcast %62 : vector<1x1x384xf32> to vector<5x5x384xf32>
    %64 = arith.mulf %61, %63 : vector<5x5x384xf32>
    %65 = arith.addf %56, %64 : vector<5x5x384xf32>
    %c7 = arith.constant 7 : index
    %c0_33 = arith.constant 0 : index
    %66 = vector.load %arg3[%c7, %c0_33] : memref<81x384xf32, #tpu.memory_space<vmem>>, vector<1x384xf32>
    %67 = vector.shape_cast %66 : vector<1x384xf32> to vector<384xf32>
    %c0_34 = arith.constant 0 : index
    %c0_35 = arith.constant 0 : index
    %68 = arith.index_cast %2 : i32 to index
    %c2_36 = arith.constant 2 : index
    %c128_37 = arith.constant 128 : index
    %69 = vector.load %arg4[%c0_34, %c0_35, %68, %c2_36, %c128_37] : memref<1x1x7x7x640xf32, #tpu.memory_space<vmem>>, vector<1x1x5x5x384xf32>
    %70 = vector.shape_cast %69 : vector<1x1x5x5x384xf32> to vector<5x5x384xf32>
    %71 = vector.shape_cast %67 : vector<384xf32> to vector<1x1x384xf32>
    %72 = vector.broadcast %71 : vector<1x1x384xf32> to vector<5x5x384xf32>
    %73 = arith.mulf %70, %72 : vector<5x5x384xf32>
    %74 = arith.addf %65, %73 : vector<5x5x384xf32>
    %c8 = arith.constant 8 : index
    %c0_38 = arith.constant 0 : index
    %75 = vector.load %arg3[%c8, %c0_38] : memref<81x384xf32, #tpu.memory_space<vmem>>, vector<1x384xf32>
    %76 = vector.shape_cast %75 : vector<1x384xf32> to vector<384xf32>
    %c0_39 = arith.constant 0 : index
    %c0_40 = arith.constant 0 : index
    %77 = arith.index_cast %2 : i32 to index
    %c2_41 = arith.constant 2 : index
    %c256_42 = arith.constant 256 : index
    %78 = vector.load %arg4[%c0_39, %c0_40, %77, %c2_41, %c256_42] : memref<1x1x7x7x640xf32, #tpu.memory_space<vmem>>, vector<1x1x5x5x384xf32>
    %79 = vector.shape_cast %78 : vector<1x1x5x5x384xf32> to vector<5x5x384xf32>
    %80 = vector.shape_cast %76 : vector<384xf32> to vector<1x1x384xf32>
    %81 = vector.broadcast %80 : vector<1x1x384xf32> to vector<5x5x384xf32>
    %82 = arith.mulf %79, %81 : vector<5x5x384xf32>
    %83 = arith.addf %74, %82 : vector<5x5x384xf32>
    %c1_i32 = arith.constant 1 : i32
    %84 = arith.addi %0, %c1_i32 : i32
    %c9 = arith.constant 9 : index
    %c0_43 = arith.constant 0 : index
    %85 = vector.load %arg3[%c9, %c0_43] : memref<81x384xf32, #tpu.memory_space<vmem>>, vector<1x384xf32>
    %86 = vector.shape_cast %85 : vector<1x384xf32> to vector<384xf32>
    %c0_44 = arith.constant 0 : index
    %c0_45 = arith.constant 0 : index
    %87 = arith.index_cast %84 : i32 to index
    %c0_46 = arith.constant 0 : index
    %c0_47 = arith.constant 0 : index
    %88 = vector.load %arg4[%c0_44, %c0_45, %87, %c0_46, %c0_47] : memref<1x1x7x7x640xf32, #tpu.memory_space<vmem>>, vector<1x1x5x5x384xf32>
    %89 = vector.shape_cast %88 : vector<1x1x5x5x384xf32> to vector<5x5x384xf32>
    %90 = vector.shape_cast %86 : vector<384xf32> to vector<1x1x384xf32>
    %91 = vector.broadcast %90 : vector<1x1x384xf32> to vector<5x5x384xf32>
    %92 = arith.mulf %89, %91 : vector<5x5x384xf32>
    %93 = arith.addf %83, %92 : vector<5x5x384xf32>
    %c10 = arith.constant 10 : index
    %c0_48 = arith.constant 0 : index
    %94 = vector.load %arg3[%c10, %c0_48] : memref<81x384xf32, #tpu.memory_space<vmem>>, vector<1x384xf32>
    %95 = vector.shape_cast %94 : vector<1x384xf32> to vector<384xf32>
    %c0_49 = arith.constant 0 : index
    %c0_50 = arith.constant 0 : index
    %96 = arith.index_cast %84 : i32 to index
    %c0_51 = arith.constant 0 : index
    %c128_52 = arith.constant 128 : index
    %97 = vector.load %arg4[%c0_49, %c0_50, %96, %c0_51, %c128_52] : memref<1x1x7x7x640xf32, #tpu.memory_space<vmem>>, vector<1x1x5x5x384xf32>
    %98 = vector.shape_cast %97 : vector<1x1x5x5x384xf32> to vector<5x5x384xf32>
    %99 = vector.shape_cast %95 : vector<384xf32> to vector<1x1x384xf32>
    %100 = vector.broadcast %99 : vector<1x1x384xf32> to vector<5x5x384xf32>
    %101 = arith.mulf %98, %100 : vector<5x5x384xf32>
    %102 = arith.addf %93, %101 : vector<5x5x384xf32>
    %c11 = arith.constant 11 : index
    %c0_53 = arith.constant 0 : index
    %103 = vector.load %arg3[%c11, %c0_53] : memref<81x384xf32, #tpu.memory_space<vmem>>, vector<1x384xf32>
    %104 = vector.shape_cast %103 : vector<1x384xf32> to vector<384xf32>
    %c0_54 = arith.constant 0 : index
    %c0_55 = arith.constant 0 : index
    %105 = arith.index_cast %84 : i32 to index
    %c0_56 = arith.constant 0 : index
    %c256_57 = arith.constant 256 : index
    %106 = vector.load %arg4[%c0_54, %c0_55, %105, %c0_56, %c256_57] : memref<1x1x7x7x640xf32, #tpu.memory_space<vmem>>, vector<1x1x5x5x384xf32>
    %107 = vector.shape_cast %106 : vector<1x1x5x5x384xf32> to vector<5x5x384xf32>
    %108 = vector.shape_cast %104 : vector<384xf32> to vector<1x1x384xf32>
    %109 = vector.broadcast %108 : vector<1x1x384xf32> to vector<5x5x384xf32>
    %110 = arith.mulf %107, %109 : vector<5x5x384xf32>
    %111 = arith.addf %102, %110 : vector<5x5x384xf32>
    %c12 = arith.constant 12 : index
    %c0_58 = arith.constant 0 : index
    %112 = vector.load %arg3[%c12, %c0_58] : memref<81x384xf32, #tpu.memory_space<vmem>>, vector<1x384xf32>
    %113 = vector.shape_cast %112 : vector<1x384xf32> to vector<384xf32>
    %c0_59 = arith.constant 0 : index
    %c0_60 = arith.constant 0 : index
    %114 = arith.index_cast %84 : i32 to index
    %c1_61 = arith.constant 1 : index
    %c0_62 = arith.constant 0 : index
    %115 = vector.load %arg4[%c0_59, %c0_60, %114, %c1_61, %c0_62] : memref<1x1x7x7x640xf32, #tpu.memory_space<vmem>>, vector<1x1x5x5x384xf32>
    %116 = vector.shape_cast %115 : vector<1x1x5x5x384xf32> to vector<5x5x384xf32>
    %117 = vector.shape_cast %113 : vector<384xf32> to vector<1x1x384xf32>
    %118 = vector.broadcast %117 : vector<1x1x384xf32> to vector<5x5x384xf32>
    %119 = arith.mulf %116, %118 : vector<5x5x384xf32>
    %120 = arith.addf %111, %119 : vector<5x5x384xf32>
    %c13 = arith.constant 13 : index
    %c0_63 = arith.constant 0 : index
    %121 = vector.load %arg3[%c13, %c0_63] : memref<81x384xf32, #tpu.memory_space<vmem>>, vector<1x384xf32>
    %122 = vector.shape_cast %121 : vector<1x384xf32> to vector<384xf32>
    %c0_64 = arith.constant 0 : index
    %c0_65 = arith.constant 0 : index
    %123 = arith.index_cast %84 : i32 to index
    %c1_66 = arith.constant 1 : index
    %c128_67 = arith.constant 128 : index
    %124 = vector.load %arg4[%c0_64, %c0_65, %123, %c1_66, %c128_67] : memref<1x1x7x7x640xf32, #tpu.memory_space<vmem>>, vector<1x1x5x5x384xf32>
    %125 = vector.shape_cast %124 : vector<1x1x5x5x384xf32> to vector<5x5x384xf32>
    %126 = vector.shape_cast %122 : vector<384xf32> to vector<1x1x384xf32>
    %127 = vector.broadcast %126 : vector<1x1x384xf32> to vector<5x5x384xf32>
    %128 = arith.mulf %125, %127 : vector<5x5x384xf32>
    %129 = arith.addf %120, %128 : vector<5x5x384xf32>
    %c14 = arith.constant 14 : index
    %c0_68 = arith.constant 0 : index
    %130 = vector.load %arg3[%c14, %c0_68] : memref<81x384xf32, #tpu.memory_space<vmem>>, vector<1x384xf32>
    %131 = vector.shape_cast %130 : vector<1x384xf32> to vector<384xf32>
    %c0_69 = arith.constant 0 : index
    %c0_70 = arith.constant 0 : index
    %132 = arith.index_cast %84 : i32 to index
    %c1_71 = arith.constant 1 : index
    %c256_72 = arith.constant 256 : index
    %133 = vector.load %arg4[%c0_69, %c0_70, %132, %c1_71, %c256_72] : memref<1x1x7x7x640xf32, #tpu.memory_space<vmem>>, vector<1x1x5x5x384xf32>
    %134 = vector.shape_cast %133 : vector<1x1x5x5x384xf32> to vector<5x5x384xf32>
    %135 = vector.shape_cast %131 : vector<384xf32> to vector<1x1x384xf32>
    %136 = vector.broadcast %135 : vector<1x1x384xf32> to vector<5x5x384xf32>
    %137 = arith.mulf %134, %136 : vector<5x5x384xf32>
    %138 = arith.addf %129, %137 : vector<5x5x384xf32>
    %c15 = arith.constant 15 : index
    %c0_73 = arith.constant 0 : index
    %139 = vector.load %arg3[%c15, %c0_73] : memref<81x384xf32, #tpu.memory_space<vmem>>, vector<1x384xf32>
    %140 = vector.shape_cast %139 : vector<1x384xf32> to vector<384xf32>
    %c0_74 = arith.constant 0 : index
    %c0_75 = arith.constant 0 : index
    %141 = arith.index_cast %84 : i32 to index
    %c2_76 = arith.constant 2 : index
    %c0_77 = arith.constant 0 : index
    %142 = vector.load %arg4[%c0_74, %c0_75, %141, %c2_76, %c0_77] : memref<1x1x7x7x640xf32, #tpu.memory_space<vmem>>, vector<1x1x5x5x384xf32>
    %143 = vector.shape_cast %142 : vector<1x1x5x5x384xf32> to vector<5x5x384xf32>
    %144 = vector.shape_cast %140 : vector<384xf32> to vector<1x1x384xf32>
    %145 = vector.broadcast %144 : vector<1x1x384xf32> to vector<5x5x384xf32>
    %146 = arith.mulf %143, %145 : vector<5x5x384xf32>
    %147 = arith.addf %138, %146 : vector<5x5x384xf32>
    %c16 = arith.constant 16 : index
    %c0_78 = arith.constant 0 : index
    %148 = vector.load %arg3[%c16, %c0_78] : memref<81x384xf32, #tpu.memory_space<vmem>>, vector<1x384xf32>
    %149 = vector.shape_cast %148 : vector<1x384xf32> to vector<384xf32>
    %c0_79 = arith.constant 0 : index
    %c0_80 = arith.constant 0 : index
    %150 = arith.index_cast %84 : i32 to index
    %c2_81 = arith.constant 2 : index
    %c128_82 = arith.constant 128 : index
    %151 = vector.load %arg4[%c0_79, %c0_80, %150, %c2_81, %c128_82] : memref<1x1x7x7x640xf32, #tpu.memory_space<vmem>>, vector<1x1x5x5x384xf32>
    %152 = vector.shape_cast %151 : vector<1x1x5x5x384xf32> to vector<5x5x384xf32>
    %153 = vector.shape_cast %149 : vector<384xf32> to vector<1x1x384xf32>
    %154 = vector.broadcast %153 : vector<1x1x384xf32> to vector<5x5x384xf32>
    %155 = arith.mulf %152, %154 : vector<5x5x384xf32>
    %156 = arith.addf %147, %155 : vector<5x5x384xf32>
    %c17 = arith.constant 17 : index
    %c0_83 = arith.constant 0 : index
    %157 = vector.load %arg3[%c17, %c0_83] : memref<81x384xf32, #tpu.memory_space<vmem>>, vector<1x384xf32>
    %158 = vector.shape_cast %157 : vector<1x384xf32> to vector<384xf32>
    %c0_84 = arith.constant 0 : index
    %c0_85 = arith.constant 0 : index
    %159 = arith.index_cast %84 : i32 to index
    %c2_86 = arith.constant 2 : index
    %c256_87 = arith.constant 256 : index
    %160 = vector.load %arg4[%c0_84, %c0_85, %159, %c2_86, %c256_87] : memref<1x1x7x7x640xf32, #tpu.memory_space<vmem>>, vector<1x1x5x5x384xf32>
    %161 = vector.shape_cast %160 : vector<1x1x5x5x384xf32> to vector<5x5x384xf32>
    %162 = vector.shape_cast %158 : vector<384xf32> to vector<1x1x384xf32>
    %163 = vector.broadcast %162 : vector<1x1x384xf32> to vector<5x5x384xf32>
    %164 = arith.mulf %161, %163 : vector<5x5x384xf32>
    %165 = arith.addf %156, %164 : vector<5x5x384xf32>
    %c2_i32 = arith.constant 2 : i32
    %166 = arith.addi %0, %c2_i32 : i32
    %c18 = arith.constant 18 : index
    %c0_88 = arith.constant 0 : index
    %167 = vector.load %arg3[%c18, %c0_88] : memref<81x384xf32, #tpu.memory_space<vmem>>, vector<1x384xf32>
    %168 = vector.shape_cast %167 : vector<1x384xf32> to vector<384xf32>
    %c0_89 = arith.constant 0 : index
    %c0_90 = arith.constant 0 : index
    %169 = arith.index_cast %166 : i32 to index
    %c0_91 = arith.constant 0 : index
    %c0_92 = arith.constant 0 : index
    %170 = vector.load %arg4[%c0_89, %c0_90, %169, %c0_91, %c0_92] : memref<1x1x7x7x640xf32, #tpu.memory_space<vmem>>, vector<1x1x5x5x384xf32>
    %171 = vector.shape_cast %170 : vector<1x1x5x5x384xf32> to vector<5x5x384xf32>
    %172 = vector.shape_cast %168 : vector<384xf32> to vector<1x1x384xf32>
    %173 = vector.broadcast %172 : vector<1x1x384xf32> to vector<5x5x384xf32>
    %174 = arith.mulf %171, %173 : vector<5x5x384xf32>
    %175 = arith.addf %165, %174 : vector<5x5x384xf32>
    %c19 = arith.constant 19 : index
    %c0_93 = arith.constant 0 : index
    %176 = vector.load %arg3[%c19, %c0_93] : memref<81x384xf32, #tpu.memory_space<vmem>>, vector<1x384xf32>
    %177 = vector.shape_cast %176 : vector<1x384xf32> to vector<384xf32>
    %c0_94 = arith.constant 0 : index
    %c0_95 = arith.constant 0 : index
    %178 = arith.index_cast %166 : i32 to index
    %c0_96 = arith.constant 0 : index
    %c128_97 = arith.constant 128 : index
    %179 = vector.load %arg4[%c0_94, %c0_95, %178, %c0_96, %c128_97] : memref<1x1x7x7x640xf32, #tpu.memory_space<vmem>>, vector<1x1x5x5x384xf32>
    %180 = vector.shape_cast %179 : vector<1x1x5x5x384xf32> to vector<5x5x384xf32>
    %181 = vector.shape_cast %177 : vector<384xf32> to vector<1x1x384xf32>
    %182 = vector.broadcast %181 : vector<1x1x384xf32> to vector<5x5x384xf32>
    %183 = arith.mulf %180, %182 : vector<5x5x384xf32>
    %184 = arith.addf %175, %183 : vector<5x5x384xf32>
    %c20 = arith.constant 20 : index
    %c0_98 = arith.constant 0 : index
    %185 = vector.load %arg3[%c20, %c0_98] : memref<81x384xf32, #tpu.memory_space<vmem>>, vector<1x384xf32>
    %186 = vector.shape_cast %185 : vector<1x384xf32> to vector<384xf32>
    %c0_99 = arith.constant 0 : index
    %c0_100 = arith.constant 0 : index
    %187 = arith.index_cast %166 : i32 to index
    %c0_101 = arith.constant 0 : index
    %c256_102 = arith.constant 256 : index
    %188 = vector.load %arg4[%c0_99, %c0_100, %187, %c0_101, %c256_102] : memref<1x1x7x7x640xf32, #tpu.memory_space<vmem>>, vector<1x1x5x5x384xf32>
    %189 = vector.shape_cast %188 : vector<1x1x5x5x384xf32> to vector<5x5x384xf32>
    %190 = vector.shape_cast %186 : vector<384xf32> to vector<1x1x384xf32>
    %191 = vector.broadcast %190 : vector<1x1x384xf32> to vector<5x5x384xf32>
    %192 = arith.mulf %189, %191 : vector<5x5x384xf32>
    %193 = arith.addf %184, %192 : vector<5x5x384xf32>
    %c21 = arith.constant 21 : index
    %c0_103 = arith.constant 0 : index
    %194 = vector.load %arg3[%c21, %c0_103] : memref<81x384xf32, #tpu.memory_space<vmem>>, vector<1x384xf32>
    %195 = vector.shape_cast %194 : vector<1x384xf32> to vector<384xf32>
    %c0_104 = arith.constant 0 : index
    %c0_105 = arith.constant 0 : index
    %196 = arith.index_cast %166 : i32 to index
    %c1_106 = arith.constant 1 : index
    %c0_107 = arith.constant 0 : index
    %197 = vector.load %arg4[%c0_104, %c0_105, %196, %c1_106, %c0_107] : memref<1x1x7x7x640xf32, #tpu.memory_space<vmem>>, vector<1x1x5x5x384xf32>
    %198 = vector.shape_cast %197 : vector<1x1x5x5x384xf32> to vector<5x5x384xf32>
    %199 = vector.shape_cast %195 : vector<384xf32> to vector<1x1x384xf32>
    %200 = vector.broadcast %199 : vector<1x1x384xf32> to vector<5x5x384xf32>
    %201 = arith.mulf %198, %200 : vector<5x5x384xf32>
    %202 = arith.addf %193, %201 : vector<5x5x384xf32>
    %c22 = arith.constant 22 : index
    %c0_108 = arith.constant 0 : index
    %203 = vector.load %arg3[%c22, %c0_108] : memref<81x384xf32, #tpu.memory_space<vmem>>, vector<1x384xf32>
    %204 = vector.shape_cast %203 : vector<1x384xf32> to vector<384xf32>
    %c0_109 = arith.constant 0 : index
    %c0_110 = arith.constant 0 : index
    %205 = arith.index_cast %166 : i32 to index
    %c1_111 = arith.constant 1 : index
    %c128_112 = arith.constant 128 : index
    %206 = vector.load %arg4[%c0_109, %c0_110, %205, %c1_111, %c128_112] : memref<1x1x7x7x640xf32, #tpu.memory_space<vmem>>, vector<1x1x5x5x384xf32>
    %207 = vector.shape_cast %206 : vector<1x1x5x5x384xf32> to vector<5x5x384xf32>
    %208 = vector.shape_cast %204 : vector<384xf32> to vector<1x1x384xf32>
    %209 = vector.broadcast %208 : vector<1x1x384xf32> to vector<5x5x384xf32>
    %210 = arith.mulf %207, %209 : vector<5x5x384xf32>
    %211 = arith.addf %202, %210 : vector<5x5x384xf32>
    %c23 = arith.constant 23 : index
    %c0_113 = arith.constant 0 : index
    %212 = vector.load %arg3[%c23, %c0_113] : memref<81x384xf32, #tpu.memory_space<vmem>>, vector<1x384xf32>
    %213 = vector.shape_cast %212 : vector<1x384xf32> to vector<384xf32>
    %c0_114 = arith.constant 0 : index
    %c0_115 = arith.constant 0 : index
    %214 = arith.index_cast %166 : i32 to index
    %c1_116 = arith.constant 1 : index
    %c256_117 = arith.constant 256 : index
    %215 = vector.load %arg4[%c0_114, %c0_115, %214, %c1_116, %c256_117] : memref<1x1x7x7x640xf32, #tpu.memory_space<vmem>>, vector<1x1x5x5x384xf32>
    %216 = vector.shape_cast %215 : vector<1x1x5x5x384xf32> to vector<5x5x384xf32>
    %217 = vector.shape_cast %213 : vector<384xf32> to vector<1x1x384xf32>
    %218 = vector.broadcast %217 : vector<1x1x384xf32> to vector<5x5x384xf32>
    %219 = arith.mulf %216, %218 : vector<5x5x384xf32>
    %220 = arith.addf %211, %219 : vector<5x5x384xf32>
    %c24 = arith.constant 24 : index
    %c0_118 = arith.constant 0 : index
    %221 = vector.load %arg3[%c24, %c0_118] : memref<81x384xf32, #tpu.memory_space<vmem>>, vector<1x384xf32>
    %222 = vector.shape_cast %221 : vector<1x384xf32> to vector<384xf32>
    %c0_119 = arith.constant 0 : index
    %c0_120 = arith.constant 0 : index
    %223 = arith.index_cast %166 : i32 to index
    %c2_121 = arith.constant 2 : index
    %c0_122 = arith.constant 0 : index
    %224 = vector.load %arg4[%c0_119, %c0_120, %223, %c2_121, %c0_122] : memref<1x1x7x7x640xf32, #tpu.memory_space<vmem>>, vector<1x1x5x5x384xf32>
    %225 = vector.shape_cast %224 : vector<1x1x5x5x384xf32> to vector<5x5x384xf32>
    %226 = vector.shape_cast %222 : vector<384xf32> to vector<1x1x384xf32>
    %227 = vector.broadcast %226 : vector<1x1x384xf32> to vector<5x5x384xf32>
    %228 = arith.mulf %225, %227 : vector<5x5x384xf32>
    %229 = arith.addf %220, %228 : vector<5x5x384xf32>
    %c25 = arith.constant 25 : index
    %c0_123 = arith.constant 0 : index
    %230 = vector.load %arg3[%c25, %c0_123] : memref<81x384xf32, #tpu.memory_space<vmem>>, vector<1x384xf32>
    %231 = vector.shape_cast %230 : vector<1x384xf32> to vector<384xf32>
    %c0_124 = arith.constant 0 : index
    %c0_125 = arith.constant 0 : index
    %232 = arith.index_cast %166 : i32 to index
    %c2_126 = arith.constant 2 : index
    %c128_127 = arith.constant 128 : index
    %233 = vector.load %arg4[%c0_124, %c0_125, %232, %c2_126, %c128_127] : memref<1x1x7x7x640xf32, #tpu.memory_space<vmem>>, vector<1x1x5x5x384xf32>
    %234 = vector.shape_cast %233 : vector<1x1x5x5x384xf32> to vector<5x5x384xf32>
    %235 = vector.shape_cast %231 : vector<384xf32> to vector<1x1x384xf32>
    %236 = vector.broadcast %235 : vector<1x1x384xf32> to vector<5x5x384xf32>
    %237 = arith.mulf %234, %236 : vector<5x5x384xf32>
    %238 = arith.addf %229, %237 : vector<5x5x384xf32>
    %c26 = arith.constant 26 : index
    %c0_128 = arith.constant 0 : index
    %239 = vector.load %arg3[%c26, %c0_128] : memref<81x384xf32, #tpu.memory_space<vmem>>, vector<1x384xf32>
    %240 = vector.shape_cast %239 : vector<1x384xf32> to vector<384xf32>
    %c0_129 = arith.constant 0 : index
    %c0_130 = arith.constant 0 : index
    %241 = arith.index_cast %166 : i32 to index
    %c2_131 = arith.constant 2 : index
    %c256_132 = arith.constant 256 : index
    %242 = vector.load %arg4[%c0_129, %c0_130, %241, %c2_131, %c256_132] : memref<1x1x7x7x640xf32, #tpu.memory_space<vmem>>, vector<1x1x5x5x384xf32>
    %243 = vector.shape_cast %242 : vector<1x1x5x5x384xf32> to vector<5x5x384xf32>
    %244 = vector.shape_cast %240 : vector<384xf32> to vector<1x1x384xf32>
    %245 = vector.broadcast %244 : vector<1x1x384xf32> to vector<5x5x384xf32>
    %246 = arith.mulf %243, %245 : vector<5x5x384xf32>
    %247 = arith.addf %238, %246 : vector<5x5x384xf32>
    %c0_i32_133 = arith.constant 0 : i32
    %248 = arith.addi %0, %c0_i32_133 : i32
    %c27 = arith.constant 27 : index
    %c0_134 = arith.constant 0 : index
    %249 = vector.load %arg3[%c27, %c0_134] : memref<81x384xf32, #tpu.memory_space<vmem>>, vector<1x384xf32>
    %250 = vector.shape_cast %249 : vector<1x384xf32> to vector<384xf32>
    %c0_135 = arith.constant 0 : index
    %c0_136 = arith.constant 0 : index
    %251 = arith.index_cast %248 : i32 to index
    %c0_137 = arith.constant 0 : index
    %c0_138 = arith.constant 0 : index
    %252 = vector.load %arg5[%c0_135, %c0_136, %251, %c0_137, %c0_138] : memref<1x1x7x7x640xf32, #tpu.memory_space<vmem>>, vector<1x1x5x5x384xf32>
    %253 = vector.shape_cast %252 : vector<1x1x5x5x384xf32> to vector<5x5x384xf32>
    %254 = vector.shape_cast %250 : vector<384xf32> to vector<1x1x384xf32>
    %255 = vector.broadcast %254 : vector<1x1x384xf32> to vector<5x5x384xf32>
    %256 = arith.mulf %253, %255 : vector<5x5x384xf32>
    %257 = arith.addf %247, %256 : vector<5x5x384xf32>
    %c28 = arith.constant 28 : index
    %c0_139 = arith.constant 0 : index
    %258 = vector.load %arg3[%c28, %c0_139] : memref<81x384xf32, #tpu.memory_space<vmem>>, vector<1x384xf32>
    %259 = vector.shape_cast %258 : vector<1x384xf32> to vector<384xf32>
    %c0_140 = arith.constant 0 : index
    %c0_141 = arith.constant 0 : index
    %260 = arith.index_cast %248 : i32 to index
    %c0_142 = arith.constant 0 : index
    %c128_143 = arith.constant 128 : index
    %261 = vector.load %arg5[%c0_140, %c0_141, %260, %c0_142, %c128_143] : memref<1x1x7x7x640xf32, #tpu.memory_space<vmem>>, vector<1x1x5x5x384xf32>
    %262 = vector.shape_cast %261 : vector<1x1x5x5x384xf32> to vector<5x5x384xf32>
    %263 = vector.shape_cast %259 : vector<384xf32> to vector<1x1x384xf32>
    %264 = vector.broadcast %263 : vector<1x1x384xf32> to vector<5x5x384xf32>
    %265 = arith.mulf %262, %264 : vector<5x5x384xf32>
    %266 = arith.addf %257, %265 : vector<5x5x384xf32>
    %c29 = arith.constant 29 : index
    %c0_144 = arith.constant 0 : index
    %267 = vector.load %arg3[%c29, %c0_144] : memref<81x384xf32, #tpu.memory_space<vmem>>, vector<1x384xf32>
    %268 = vector.shape_cast %267 : vector<1x384xf32> to vector<384xf32>
    %c0_145 = arith.constant 0 : index
    %c0_146 = arith.constant 0 : index
    %269 = arith.index_cast %248 : i32 to index
    %c0_147 = arith.constant 0 : index
    %c256_148 = arith.constant 256 : index
    %270 = vector.load %arg5[%c0_145, %c0_146, %269, %c0_147, %c256_148] : memref<1x1x7x7x640xf32, #tpu.memory_space<vmem>>, vector<1x1x5x5x384xf32>
    %271 = vector.shape_cast %270 : vector<1x1x5x5x384xf32> to vector<5x5x384xf32>
    %272 = vector.shape_cast %268 : vector<384xf32> to vector<1x1x384xf32>
    %273 = vector.broadcast %272 : vector<1x1x384xf32> to vector<5x5x384xf32>
    %274 = arith.mulf %271, %273 : vector<5x5x384xf32>
    %275 = arith.addf %266, %274 : vector<5x5x384xf32>
    %c30 = arith.constant 30 : index
    %c0_149 = arith.constant 0 : index
    %276 = vector.load %arg3[%c30, %c0_149] : memref<81x384xf32, #tpu.memory_space<vmem>>, vector<1x384xf32>
    %277 = vector.shape_cast %276 : vector<1x384xf32> to vector<384xf32>
    %c0_150 = arith.constant 0 : index
    %c0_151 = arith.constant 0 : index
    %278 = arith.index_cast %248 : i32 to index
    %c1_152 = arith.constant 1 : index
    %c0_153 = arith.constant 0 : index
    %279 = vector.load %arg5[%c0_150, %c0_151, %278, %c1_152, %c0_153] : memref<1x1x7x7x640xf32, #tpu.memory_space<vmem>>, vector<1x1x5x5x384xf32>
    %280 = vector.shape_cast %279 : vector<1x1x5x5x384xf32> to vector<5x5x384xf32>
    %281 = vector.shape_cast %277 : vector<384xf32> to vector<1x1x384xf32>
    %282 = vector.broadcast %281 : vector<1x1x384xf32> to vector<5x5x384xf32>
    %283 = arith.mulf %280, %282 : vector<5x5x384xf32>
    %284 = arith.addf %275, %283 : vector<5x5x384xf32>
    %c31 = arith.constant 31 : index
    %c0_154 = arith.constant 0 : index
    %285 = vector.load %arg3[%c31, %c0_154] : memref<81x384xf32, #tpu.memory_space<vmem>>, vector<1x384xf32>
    %286 = vector.shape_cast %285 : vector<1x384xf32> to vector<384xf32>
    %c0_155 = arith.constant 0 : index
    %c0_156 = arith.constant 0 : index
    %287 = arith.index_cast %248 : i32 to index
    %c1_157 = arith.constant 1 : index
    %c128_158 = arith.constant 128 : index
    %288 = vector.load %arg5[%c0_155, %c0_156, %287, %c1_157, %c128_158] : memref<1x1x7x7x640xf32, #tpu.memory_space<vmem>>, vector<1x1x5x5x384xf32>
    %289 = vector.shape_cast %288 : vector<1x1x5x5x384xf32> to vector<5x5x384xf32>
    %290 = vector.shape_cast %286 : vector<384xf32> to vector<1x1x384xf32>
    %291 = vector.broadcast %290 : vector<1x1x384xf32> to vector<5x5x384xf32>
    %292 = arith.mulf %289, %291 : vector<5x5x384xf32>
    %293 = arith.addf %284, %292 : vector<5x5x384xf32>
    %c32 = arith.constant 32 : index
    %c0_159 = arith.constant 0 : index
    %294 = vector.load %arg3[%c32, %c0_159] : memref<81x384xf32, #tpu.memory_space<vmem>>, vector<1x384xf32>
    %295 = vector.shape_cast %294 : vector<1x384xf32> to vector<384xf32>
    %c0_160 = arith.constant 0 : index
    %c0_161 = arith.constant 0 : index
    %296 = arith.index_cast %248 : i32 to index
    %c1_162 = arith.constant 1 : index
    %c256_163 = arith.constant 256 : index
    %297 = vector.load %arg5[%c0_160, %c0_161, %296, %c1_162, %c256_163] : memref<1x1x7x7x640xf32, #tpu.memory_space<vmem>>, vector<1x1x5x5x384xf32>
    %298 = vector.shape_cast %297 : vector<1x1x5x5x384xf32> to vector<5x5x384xf32>
    %299 = vector.shape_cast %295 : vector<384xf32> to vector<1x1x384xf32>
    %300 = vector.broadcast %299 : vector<1x1x384xf32> to vector<5x5x384xf32>
    %301 = arith.mulf %298, %300 : vector<5x5x384xf32>
    %302 = arith.addf %293, %301 : vector<5x5x384xf32>
    %c33 = arith.constant 33 : index
    %c0_164 = arith.constant 0 : index
    %303 = vector.load %arg3[%c33, %c0_164] : memref<81x384xf32, #tpu.memory_space<vmem>>, vector<1x384xf32>
    %304 = vector.shape_cast %303 : vector<1x384xf32> to vector<384xf32>
    %c0_165 = arith.constant 0 : index
    %c0_166 = arith.constant 0 : index
    %305 = arith.index_cast %248 : i32 to index
    %c2_167 = arith.constant 2 : index
    %c0_168 = arith.constant 0 : index
    %306 = vector.load %arg5[%c0_165, %c0_166, %305, %c2_167, %c0_168] : memref<1x1x7x7x640xf32, #tpu.memory_space<vmem>>, vector<1x1x5x5x384xf32>
    %307 = vector.shape_cast %306 : vector<1x1x5x5x384xf32> to vector<5x5x384xf32>
    %308 = vector.shape_cast %304 : vector<384xf32> to vector<1x1x384xf32>
    %309 = vector.broadcast %308 : vector<1x1x384xf32> to vector<5x5x384xf32>
    %310 = arith.mulf %307, %309 : vector<5x5x384xf32>
    %311 = arith.addf %302, %310 : vector<5x5x384xf32>
    %c34 = arith.constant 34 : index
    %c0_169 = arith.constant 0 : index
    %312 = vector.load %arg3[%c34, %c0_169] : memref<81x384xf32, #tpu.memory_space<vmem>>, vector<1x384xf32>
    %313 = vector.shape_cast %312 : vector<1x384xf32> to vector<384xf32>
    %c0_170 = arith.constant 0 : index
    %c0_171 = arith.constant 0 : index
    %314 = arith.index_cast %248 : i32 to index
    %c2_172 = arith.constant 2 : index
    %c128_173 = arith.constant 128 : index
    %315 = vector.load %arg5[%c0_170, %c0_171, %314, %c2_172, %c128_173] : memref<1x1x7x7x640xf32, #tpu.memory_space<vmem>>, vector<1x1x5x5x384xf32>
    %316 = vector.shape_cast %315 : vector<1x1x5x5x384xf32> to vector<5x5x384xf32>
    %317 = vector.shape_cast %313 : vector<384xf32> to vector<1x1x384xf32>
    %318 = vector.broadcast %317 : vector<1x1x384xf32> to vector<5x5x384xf32>
    %319 = arith.mulf %316, %318 : vector<5x5x384xf32>
    %320 = arith.addf %311, %319 : vector<5x5x384xf32>
    %c35 = arith.constant 35 : index
    %c0_174 = arith.constant 0 : index
    %321 = vector.load %arg3[%c35, %c0_174] : memref<81x384xf32, #tpu.memory_space<vmem>>, vector<1x384xf32>
    %322 = vector.shape_cast %321 : vector<1x384xf32> to vector<384xf32>
    %c0_175 = arith.constant 0 : index
    %c0_176 = arith.constant 0 : index
    %323 = arith.index_cast %248 : i32 to index
    %c2_177 = arith.constant 2 : index
    %c256_178 = arith.constant 256 : index
    %324 = vector.load %arg5[%c0_175, %c0_176, %323, %c2_177, %c256_178] : memref<1x1x7x7x640xf32, #tpu.memory_space<vmem>>, vector<1x1x5x5x384xf32>
    %325 = vector.shape_cast %324 : vector<1x1x5x5x384xf32> to vector<5x5x384xf32>
    %326 = vector.shape_cast %322 : vector<384xf32> to vector<1x1x384xf32>
    %327 = vector.broadcast %326 : vector<1x1x384xf32> to vector<5x5x384xf32>
    %328 = arith.mulf %325, %327 : vector<5x5x384xf32>
    %329 = arith.addf %320, %328 : vector<5x5x384xf32>
    %c1_i32_179 = arith.constant 1 : i32
    %330 = arith.addi %0, %c1_i32_179 : i32
    %c36 = arith.constant 36 : index
    %c0_180 = arith.constant 0 : index
    %331 = vector.load %arg3[%c36, %c0_180] : memref<81x384xf32, #tpu.memory_space<vmem>>, vector<1x384xf32>
    %332 = vector.shape_cast %331 : vector<1x384xf32> to vector<384xf32>
    %c0_181 = arith.constant 0 : index
    %c0_182 = arith.constant 0 : index
    %333 = arith.index_cast %330 : i32 to index
    %c0_183 = arith.constant 0 : index
    %c0_184 = arith.constant 0 : index
    %334 = vector.load %arg5[%c0_181, %c0_182, %333, %c0_183, %c0_184] : memref<1x1x7x7x640xf32, #tpu.memory_space<vmem>>, vector<1x1x5x5x384xf32>
    %335 = vector.shape_cast %334 : vector<1x1x5x5x384xf32> to vector<5x5x384xf32>
    %336 = vector.shape_cast %332 : vector<384xf32> to vector<1x1x384xf32>
    %337 = vector.broadcast %336 : vector<1x1x384xf32> to vector<5x5x384xf32>
    %338 = arith.mulf %335, %337 : vector<5x5x384xf32>
    %339 = arith.addf %329, %338 : vector<5x5x384xf32>
    %c37 = arith.constant 37 : index
    %c0_185 = arith.constant 0 : index
    %340 = vector.load %arg3[%c37, %c0_185] : memref<81x384xf32, #tpu.memory_space<vmem>>, vector<1x384xf32>
    %341 = vector.shape_cast %340 : vector<1x384xf32> to vector<384xf32>
    %c0_186 = arith.constant 0 : index
    %c0_187 = arith.constant 0 : index
    %342 = arith.index_cast %330 : i32 to index
    %c0_188 = arith.constant 0 : index
    %c128_189 = arith.constant 128 : index
    %343 = vector.load %arg5[%c0_186, %c0_187, %342, %c0_188, %c128_189] : memref<1x1x7x7x640xf32, #tpu.memory_space<vmem>>, vector<1x1x5x5x384xf32>
    %344 = vector.shape_cast %343 : vector<1x1x5x5x384xf32> to vector<5x5x384xf32>
    %345 = vector.shape_cast %341 : vector<384xf32> to vector<1x1x384xf32>
    %346 = vector.broadcast %345 : vector<1x1x384xf32> to vector<5x5x384xf32>
    %347 = arith.mulf %344, %346 : vector<5x5x384xf32>
    %348 = arith.addf %339, %347 : vector<5x5x384xf32>
    %c38 = arith.constant 38 : index
    %c0_190 = arith.constant 0 : index
    %349 = vector.load %arg3[%c38, %c0_190] : memref<81x384xf32, #tpu.memory_space<vmem>>, vector<1x384xf32>
    %350 = vector.shape_cast %349 : vector<1x384xf32> to vector<384xf32>
    %c0_191 = arith.constant 0 : index
    %c0_192 = arith.constant 0 : index
    %351 = arith.index_cast %330 : i32 to index
    %c0_193 = arith.constant 0 : index
    %c256_194 = arith.constant 256 : index
    %352 = vector.load %arg5[%c0_191, %c0_192, %351, %c0_193, %c256_194] : memref<1x1x7x7x640xf32, #tpu.memory_space<vmem>>, vector<1x1x5x5x384xf32>
    %353 = vector.shape_cast %352 : vector<1x1x5x5x384xf32> to vector<5x5x384xf32>
    %354 = vector.shape_cast %350 : vector<384xf32> to vector<1x1x384xf32>
    %355 = vector.broadcast %354 : vector<1x1x384xf32> to vector<5x5x384xf32>
    %356 = arith.mulf %353, %355 : vector<5x5x384xf32>
    %357 = arith.addf %348, %356 : vector<5x5x384xf32>
    %c39 = arith.constant 39 : index
    %c0_195 = arith.constant 0 : index
    %358 = vector.load %arg3[%c39, %c0_195] : memref<81x384xf32, #tpu.memory_space<vmem>>, vector<1x384xf32>
    %359 = vector.shape_cast %358 : vector<1x384xf32> to vector<384xf32>
    %c0_196 = arith.constant 0 : index
    %c0_197 = arith.constant 0 : index
    %360 = arith.index_cast %330 : i32 to index
    %c1_198 = arith.constant 1 : index
    %c0_199 = arith.constant 0 : index
    %361 = vector.load %arg5[%c0_196, %c0_197, %360, %c1_198, %c0_199] : memref<1x1x7x7x640xf32, #tpu.memory_space<vmem>>, vector<1x1x5x5x384xf32>
    %362 = vector.shape_cast %361 : vector<1x1x5x5x384xf32> to vector<5x5x384xf32>
    %363 = vector.shape_cast %359 : vector<384xf32> to vector<1x1x384xf32>
    %364 = vector.broadcast %363 : vector<1x1x384xf32> to vector<5x5x384xf32>
    %365 = arith.mulf %362, %364 : vector<5x5x384xf32>
    %366 = arith.addf %357, %365 : vector<5x5x384xf32>
    %c40 = arith.constant 40 : index
    %c0_200 = arith.constant 0 : index
    %367 = vector.load %arg3[%c40, %c0_200] : memref<81x384xf32, #tpu.memory_space<vmem>>, vector<1x384xf32>
    %368 = vector.shape_cast %367 : vector<1x384xf32> to vector<384xf32>
    %c0_201 = arith.constant 0 : index
    %c0_202 = arith.constant 0 : index
    %369 = arith.index_cast %330 : i32 to index
    %c1_203 = arith.constant 1 : index
    %c128_204 = arith.constant 128 : index
    %370 = vector.load %arg5[%c0_201, %c0_202, %369, %c1_203, %c128_204] : memref<1x1x7x7x640xf32, #tpu.memory_space<vmem>>, vector<1x1x5x5x384xf32>
    %371 = vector.shape_cast %370 : vector<1x1x5x5x384xf32> to vector<5x5x384xf32>
    %372 = vector.shape_cast %368 : vector<384xf32> to vector<1x1x384xf32>
    %373 = vector.broadcast %372 : vector<1x1x384xf32> to vector<5x5x384xf32>
    %374 = arith.mulf %371, %373 : vector<5x5x384xf32>
    %375 = arith.addf %366, %374 : vector<5x5x384xf32>
    %c41 = arith.constant 41 : index
    %c0_205 = arith.constant 0 : index
    %376 = vector.load %arg3[%c41, %c0_205] : memref<81x384xf32, #tpu.memory_space<vmem>>, vector<1x384xf32>
    %377 = vector.shape_cast %376 : vector<1x384xf32> to vector<384xf32>
    %c0_206 = arith.constant 0 : index
    %c0_207 = arith.constant 0 : index
    %378 = arith.index_cast %330 : i32 to index
    %c1_208 = arith.constant 1 : index
    %c256_209 = arith.constant 256 : index
    %379 = vector.load %arg5[%c0_206, %c0_207, %378, %c1_208, %c256_209] : memref<1x1x7x7x640xf32, #tpu.memory_space<vmem>>, vector<1x1x5x5x384xf32>
    %380 = vector.shape_cast %379 : vector<1x1x5x5x384xf32> to vector<5x5x384xf32>
    %381 = vector.shape_cast %377 : vector<384xf32> to vector<1x1x384xf32>
    %382 = vector.broadcast %381 : vector<1x1x384xf32> to vector<5x5x384xf32>
    %383 = arith.mulf %380, %382 : vector<5x5x384xf32>
    %384 = arith.addf %375, %383 : vector<5x5x384xf32>
    %c42 = arith.constant 42 : index
    %c0_210 = arith.constant 0 : index
    %385 = vector.load %arg3[%c42, %c0_210] : memref<81x384xf32, #tpu.memory_space<vmem>>, vector<1x384xf32>
    %386 = vector.shape_cast %385 : vector<1x384xf32> to vector<384xf32>
    %c0_211 = arith.constant 0 : index
    %c0_212 = arith.constant 0 : index
    %387 = arith.index_cast %330 : i32 to index
    %c2_213 = arith.constant 2 : index
    %c0_214 = arith.constant 0 : index
    %388 = vector.load %arg5[%c0_211, %c0_212, %387, %c2_213, %c0_214] : memref<1x1x7x7x640xf32, #tpu.memory_space<vmem>>, vector<1x1x5x5x384xf32>
    %389 = vector.shape_cast %388 : vector<1x1x5x5x384xf32> to vector<5x5x384xf32>
    %390 = vector.shape_cast %386 : vector<384xf32> to vector<1x1x384xf32>
    %391 = vector.broadcast %390 : vector<1x1x384xf32> to vector<5x5x384xf32>
    %392 = arith.mulf %389, %391 : vector<5x5x384xf32>
    %393 = arith.addf %384, %392 : vector<5x5x384xf32>
    %c43 = arith.constant 43 : index
    %c0_215 = arith.constant 0 : index
    %394 = vector.load %arg3[%c43, %c0_215] : memref<81x384xf32, #tpu.memory_space<vmem>>, vector<1x384xf32>
    %395 = vector.shape_cast %394 : vector<1x384xf32> to vector<384xf32>
    %c0_216 = arith.constant 0 : index
    %c0_217 = arith.constant 0 : index
    %396 = arith.index_cast %330 : i32 to index
    %c2_218 = arith.constant 2 : index
    %c128_219 = arith.constant 128 : index
    %397 = vector.load %arg5[%c0_216, %c0_217, %396, %c2_218, %c128_219] : memref<1x1x7x7x640xf32, #tpu.memory_space<vmem>>, vector<1x1x5x5x384xf32>
    %398 = vector.shape_cast %397 : vector<1x1x5x5x384xf32> to vector<5x5x384xf32>
    %399 = vector.shape_cast %395 : vector<384xf32> to vector<1x1x384xf32>
    %400 = vector.broadcast %399 : vector<1x1x384xf32> to vector<5x5x384xf32>
    %401 = arith.mulf %398, %400 : vector<5x5x384xf32>
    %402 = arith.addf %393, %401 : vector<5x5x384xf32>
    %c44 = arith.constant 44 : index
    %c0_220 = arith.constant 0 : index
    %403 = vector.load %arg3[%c44, %c0_220] : memref<81x384xf32, #tpu.memory_space<vmem>>, vector<1x384xf32>
    %404 = vector.shape_cast %403 : vector<1x384xf32> to vector<384xf32>
    %c0_221 = arith.constant 0 : index
    %c0_222 = arith.constant 0 : index
    %405 = arith.index_cast %330 : i32 to index
    %c2_223 = arith.constant 2 : index
    %c256_224 = arith.constant 256 : index
    %406 = vector.load %arg5[%c0_221, %c0_222, %405, %c2_223, %c256_224] : memref<1x1x7x7x640xf32, #tpu.memory_space<vmem>>, vector<1x1x5x5x384xf32>
    %407 = vector.shape_cast %406 : vector<1x1x5x5x384xf32> to vector<5x5x384xf32>
    %408 = vector.shape_cast %404 : vector<384xf32> to vector<1x1x384xf32>
    %409 = vector.broadcast %408 : vector<1x1x384xf32> to vector<5x5x384xf32>
    %410 = arith.mulf %407, %409 : vector<5x5x384xf32>
    %411 = arith.addf %402, %410 : vector<5x5x384xf32>
    %c2_i32_225 = arith.constant 2 : i32
    %412 = arith.addi %0, %c2_i32_225 : i32
    %c45 = arith.constant 45 : index
    %c0_226 = arith.constant 0 : index
    %413 = vector.load %arg3[%c45, %c0_226] : memref<81x384xf32, #tpu.memory_space<vmem>>, vector<1x384xf32>
    %414 = vector.shape_cast %413 : vector<1x384xf32> to vector<384xf32>
    %c0_227 = arith.constant 0 : index
    %c0_228 = arith.constant 0 : index
    %415 = arith.index_cast %412 : i32 to index
    %c0_229 = arith.constant 0 : index
    %c0_230 = arith.constant 0 : index
    %416 = vector.load %arg5[%c0_227, %c0_228, %415, %c0_229, %c0_230] : memref<1x1x7x7x640xf32, #tpu.memory_space<vmem>>, vector<1x1x5x5x384xf32>
    %417 = vector.shape_cast %416 : vector<1x1x5x5x384xf32> to vector<5x5x384xf32>
    %418 = vector.shape_cast %414 : vector<384xf32> to vector<1x1x384xf32>
    %419 = vector.broadcast %418 : vector<1x1x384xf32> to vector<5x5x384xf32>
    %420 = arith.mulf %417, %419 : vector<5x5x384xf32>
    %421 = arith.addf %411, %420 : vector<5x5x384xf32>
    %c46 = arith.constant 46 : index
    %c0_231 = arith.constant 0 : index
    %422 = vector.load %arg3[%c46, %c0_231] : memref<81x384xf32, #tpu.memory_space<vmem>>, vector<1x384xf32>
    %423 = vector.shape_cast %422 : vector<1x384xf32> to vector<384xf32>
    %c0_232 = arith.constant 0 : index
    %c0_233 = arith.constant 0 : index
    %424 = arith.index_cast %412 : i32 to index
    %c0_234 = arith.constant 0 : index
    %c128_235 = arith.constant 128 : index
    %425 = vector.load %arg5[%c0_232, %c0_233, %424, %c0_234, %c128_235] : memref<1x1x7x7x640xf32, #tpu.memory_space<vmem>>, vector<1x1x5x5x384xf32>
    %426 = vector.shape_cast %425 : vector<1x1x5x5x384xf32> to vector<5x5x384xf32>
    %427 = vector.shape_cast %423 : vector<384xf32> to vector<1x1x384xf32>
    %428 = vector.broadcast %427 : vector<1x1x384xf32> to vector<5x5x384xf32>
    %429 = arith.mulf %426, %428 : vector<5x5x384xf32>
    %430 = arith.addf %421, %429 : vector<5x5x384xf32>
    %c47 = arith.constant 47 : index
    %c0_236 = arith.constant 0 : index
    %431 = vector.load %arg3[%c47, %c0_236] : memref<81x384xf32, #tpu.memory_space<vmem>>, vector<1x384xf32>
    %432 = vector.shape_cast %431 : vector<1x384xf32> to vector<384xf32>
    %c0_237 = arith.constant 0 : index
    %c0_238 = arith.constant 0 : index
    %433 = arith.index_cast %412 : i32 to index
    %c0_239 = arith.constant 0 : index
    %c256_240 = arith.constant 256 : index
    %434 = vector.load %arg5[%c0_237, %c0_238, %433, %c0_239, %c256_240] : memref<1x1x7x7x640xf32, #tpu.memory_space<vmem>>, vector<1x1x5x5x384xf32>
    %435 = vector.shape_cast %434 : vector<1x1x5x5x384xf32> to vector<5x5x384xf32>
    %436 = vector.shape_cast %432 : vector<384xf32> to vector<1x1x384xf32>
    %437 = vector.broadcast %436 : vector<1x1x384xf32> to vector<5x5x384xf32>
    %438 = arith.mulf %435, %437 : vector<5x5x384xf32>
    %439 = arith.addf %430, %438 : vector<5x5x384xf32>
    %c48 = arith.constant 48 : index
    %c0_241 = arith.constant 0 : index
    %440 = vector.load %arg3[%c48, %c0_241] : memref<81x384xf32, #tpu.memory_space<vmem>>, vector<1x384xf32>
    %441 = vector.shape_cast %440 : vector<1x384xf32> to vector<384xf32>
    %c0_242 = arith.constant 0 : index
    %c0_243 = arith.constant 0 : index
    %442 = arith.index_cast %412 : i32 to index
    %c1_244 = arith.constant 1 : index
    %c0_245 = arith.constant 0 : index
    %443 = vector.load %arg5[%c0_242, %c0_243, %442, %c1_244, %c0_245] : memref<1x1x7x7x640xf32, #tpu.memory_space<vmem>>, vector<1x1x5x5x384xf32>
    %444 = vector.shape_cast %443 : vector<1x1x5x5x384xf32> to vector<5x5x384xf32>
    %445 = vector.shape_cast %441 : vector<384xf32> to vector<1x1x384xf32>
    %446 = vector.broadcast %445 : vector<1x1x384xf32> to vector<5x5x384xf32>
    %447 = arith.mulf %444, %446 : vector<5x5x384xf32>
    %448 = arith.addf %439, %447 : vector<5x5x384xf32>
    %c49 = arith.constant 49 : index
    %c0_246 = arith.constant 0 : index
    %449 = vector.load %arg3[%c49, %c0_246] : memref<81x384xf32, #tpu.memory_space<vmem>>, vector<1x384xf32>
    %450 = vector.shape_cast %449 : vector<1x384xf32> to vector<384xf32>
    %c0_247 = arith.constant 0 : index
    %c0_248 = arith.constant 0 : index
    %451 = arith.index_cast %412 : i32 to index
    %c1_249 = arith.constant 1 : index
    %c128_250 = arith.constant 128 : index
    %452 = vector.load %arg5[%c0_247, %c0_248, %451, %c1_249, %c128_250] : memref<1x1x7x7x640xf32, #tpu.memory_space<vmem>>, vector<1x1x5x5x384xf32>
    %453 = vector.shape_cast %452 : vector<1x1x5x5x384xf32> to vector<5x5x384xf32>
    %454 = vector.shape_cast %450 : vector<384xf32> to vector<1x1x384xf32>
    %455 = vector.broadcast %454 : vector<1x1x384xf32> to vector<5x5x384xf32>
    %456 = arith.mulf %453, %455 : vector<5x5x384xf32>
    %457 = arith.addf %448, %456 : vector<5x5x384xf32>
    %c50 = arith.constant 50 : index
    %c0_251 = arith.constant 0 : index
    %458 = vector.load %arg3[%c50, %c0_251] : memref<81x384xf32, #tpu.memory_space<vmem>>, vector<1x384xf32>
    %459 = vector.shape_cast %458 : vector<1x384xf32> to vector<384xf32>
    %c0_252 = arith.constant 0 : index
    %c0_253 = arith.constant 0 : index
    %460 = arith.index_cast %412 : i32 to index
    %c1_254 = arith.constant 1 : index
    %c256_255 = arith.constant 256 : index
    %461 = vector.load %arg5[%c0_252, %c0_253, %460, %c1_254, %c256_255] : memref<1x1x7x7x640xf32, #tpu.memory_space<vmem>>, vector<1x1x5x5x384xf32>
    %462 = vector.shape_cast %461 : vector<1x1x5x5x384xf32> to vector<5x5x384xf32>
    %463 = vector.shape_cast %459 : vector<384xf32> to vector<1x1x384xf32>
    %464 = vector.broadcast %463 : vector<1x1x384xf32> to vector<5x5x384xf32>
    %465 = arith.mulf %462, %464 : vector<5x5x384xf32>
    %466 = arith.addf %457, %465 : vector<5x5x384xf32>
    %c51 = arith.constant 51 : index
    %c0_256 = arith.constant 0 : index
    %467 = vector.load %arg3[%c51, %c0_256] : memref<81x384xf32, #tpu.memory_space<vmem>>, vector<1x384xf32>
    %468 = vector.shape_cast %467 : vector<1x384xf32> to vector<384xf32>
    %c0_257 = arith.constant 0 : index
    %c0_258 = arith.constant 0 : index
    %469 = arith.index_cast %412 : i32 to index
    %c2_259 = arith.constant 2 : index
    %c0_260 = arith.constant 0 : index
    %470 = vector.load %arg5[%c0_257, %c0_258, %469, %c2_259, %c0_260] : memref<1x1x7x7x640xf32, #tpu.memory_space<vmem>>, vector<1x1x5x5x384xf32>
    %471 = vector.shape_cast %470 : vector<1x1x5x5x384xf32> to vector<5x5x384xf32>
    %472 = vector.shape_cast %468 : vector<384xf32> to vector<1x1x384xf32>
    %473 = vector.broadcast %472 : vector<1x1x384xf32> to vector<5x5x384xf32>
    %474 = arith.mulf %471, %473 : vector<5x5x384xf32>
    %475 = arith.addf %466, %474 : vector<5x5x384xf32>
    %c52 = arith.constant 52 : index
    %c0_261 = arith.constant 0 : index
    %476 = vector.load %arg3[%c52, %c0_261] : memref<81x384xf32, #tpu.memory_space<vmem>>, vector<1x384xf32>
    %477 = vector.shape_cast %476 : vector<1x384xf32> to vector<384xf32>
    %c0_262 = arith.constant 0 : index
    %c0_263 = arith.constant 0 : index
    %478 = arith.index_cast %412 : i32 to index
    %c2_264 = arith.constant 2 : index
    %c128_265 = arith.constant 128 : index
    %479 = vector.load %arg5[%c0_262, %c0_263, %478, %c2_264, %c128_265] : memref<1x1x7x7x640xf32, #tpu.memory_space<vmem>>, vector<1x1x5x5x384xf32>
    %480 = vector.shape_cast %479 : vector<1x1x5x5x384xf32> to vector<5x5x384xf32>
    %481 = vector.shape_cast %477 : vector<384xf32> to vector<1x1x384xf32>
    %482 = vector.broadcast %481 : vector<1x1x384xf32> to vector<5x5x384xf32>
    %483 = arith.mulf %480, %482 : vector<5x5x384xf32>
    %484 = arith.addf %475, %483 : vector<5x5x384xf32>
    %c53 = arith.constant 53 : index
    %c0_266 = arith.constant 0 : index
    %485 = vector.load %arg3[%c53, %c0_266] : memref<81x384xf32, #tpu.memory_space<vmem>>, vector<1x384xf32>
    %486 = vector.shape_cast %485 : vector<1x384xf32> to vector<384xf32>
    %c0_267 = arith.constant 0 : index
    %c0_268 = arith.constant 0 : index
    %487 = arith.index_cast %412 : i32 to index
    %c2_269 = arith.constant 2 : index
    %c256_270 = arith.constant 256 : index
    %488 = vector.load %arg5[%c0_267, %c0_268, %487, %c2_269, %c256_270] : memref<1x1x7x7x640xf32, #tpu.memory_space<vmem>>, vector<1x1x5x5x384xf32>
    %489 = vector.shape_cast %488 : vector<1x1x5x5x384xf32> to vector<5x5x384xf32>
    %490 = vector.shape_cast %486 : vector<384xf32> to vector<1x1x384xf32>
    %491 = vector.broadcast %490 : vector<1x1x384xf32> to vector<5x5x384xf32>
    %492 = arith.mulf %489, %491 : vector<5x5x384xf32>
    %493 = arith.addf %484, %492 : vector<5x5x384xf32>
    %c0_i32_271 = arith.constant 0 : i32
    %494 = arith.addi %0, %c0_i32_271 : i32
    %c54 = arith.constant 54 : index
    %c0_272 = arith.constant 0 : index
    %495 = vector.load %arg3[%c54, %c0_272] : memref<81x384xf32, #tpu.memory_space<vmem>>, vector<1x384xf32>
    %496 = vector.shape_cast %495 : vector<1x384xf32> to vector<384xf32>
    %c0_273 = arith.constant 0 : index
    %c0_274 = arith.constant 0 : index
    %497 = arith.index_cast %494 : i32 to index
    %c0_275 = arith.constant 0 : index
    %c0_276 = arith.constant 0 : index
    %498 = vector.load %arg6[%c0_273, %c0_274, %497, %c0_275, %c0_276] : memref<1x1x7x7x640xf32, #tpu.memory_space<vmem>>, vector<1x1x5x5x384xf32>
    %499 = vector.shape_cast %498 : vector<1x1x5x5x384xf32> to vector<5x5x384xf32>
    %500 = vector.shape_cast %496 : vector<384xf32> to vector<1x1x384xf32>
    %501 = vector.broadcast %500 : vector<1x1x384xf32> to vector<5x5x384xf32>
    %502 = arith.mulf %499, %501 : vector<5x5x384xf32>
    %503 = arith.addf %493, %502 : vector<5x5x384xf32>
    %c55 = arith.constant 55 : index
    %c0_277 = arith.constant 0 : index
    %504 = vector.load %arg3[%c55, %c0_277] : memref<81x384xf32, #tpu.memory_space<vmem>>, vector<1x384xf32>
    %505 = vector.shape_cast %504 : vector<1x384xf32> to vector<384xf32>
    %c0_278 = arith.constant 0 : index
    %c0_279 = arith.constant 0 : index
    %506 = arith.index_cast %494 : i32 to index
    %c0_280 = arith.constant 0 : index
    %c128_281 = arith.constant 128 : index
    %507 = vector.load %arg6[%c0_278, %c0_279, %506, %c0_280, %c128_281] : memref<1x1x7x7x640xf32, #tpu.memory_space<vmem>>, vector<1x1x5x5x384xf32>
    %508 = vector.shape_cast %507 : vector<1x1x5x5x384xf32> to vector<5x5x384xf32>
    %509 = vector.shape_cast %505 : vector<384xf32> to vector<1x1x384xf32>
    %510 = vector.broadcast %509 : vector<1x1x384xf32> to vector<5x5x384xf32>
    %511 = arith.mulf %508, %510 : vector<5x5x384xf32>
    %512 = arith.addf %503, %511 : vector<5x5x384xf32>
    %c56 = arith.constant 56 : index
    %c0_282 = arith.constant 0 : index
    %513 = vector.load %arg3[%c56, %c0_282] : memref<81x384xf32, #tpu.memory_space<vmem>>, vector<1x384xf32>
    %514 = vector.shape_cast %513 : vector<1x384xf32> to vector<384xf32>
    %c0_283 = arith.constant 0 : index
    %c0_284 = arith.constant 0 : index
    %515 = arith.index_cast %494 : i32 to index
    %c0_285 = arith.constant 0 : index
    %c256_286 = arith.constant 256 : index
    %516 = vector.load %arg6[%c0_283, %c0_284, %515, %c0_285, %c256_286] : memref<1x1x7x7x640xf32, #tpu.memory_space<vmem>>, vector<1x1x5x5x384xf32>
    %517 = vector.shape_cast %516 : vector<1x1x5x5x384xf32> to vector<5x5x384xf32>
    %518 = vector.shape_cast %514 : vector<384xf32> to vector<1x1x384xf32>
    %519 = vector.broadcast %518 : vector<1x1x384xf32> to vector<5x5x384xf32>
    %520 = arith.mulf %517, %519 : vector<5x5x384xf32>
    %521 = arith.addf %512, %520 : vector<5x5x384xf32>
    %c57 = arith.constant 57 : index
    %c0_287 = arith.constant 0 : index
    %522 = vector.load %arg3[%c57, %c0_287] : memref<81x384xf32, #tpu.memory_space<vmem>>, vector<1x384xf32>
    %523 = vector.shape_cast %522 : vector<1x384xf32> to vector<384xf32>
    %c0_288 = arith.constant 0 : index
    %c0_289 = arith.constant 0 : index
    %524 = arith.index_cast %494 : i32 to index
    %c1_290 = arith.constant 1 : index
    %c0_291 = arith.constant 0 : index
    %525 = vector.load %arg6[%c0_288, %c0_289, %524, %c1_290, %c0_291] : memref<1x1x7x7x640xf32, #tpu.memory_space<vmem>>, vector<1x1x5x5x384xf32>
    %526 = vector.shape_cast %525 : vector<1x1x5x5x384xf32> to vector<5x5x384xf32>
    %527 = vector.shape_cast %523 : vector<384xf32> to vector<1x1x384xf32>
    %528 = vector.broadcast %527 : vector<1x1x384xf32> to vector<5x5x384xf32>
    %529 = arith.mulf %526, %528 : vector<5x5x384xf32>
    %530 = arith.addf %521, %529 : vector<5x5x384xf32>
    %c58 = arith.constant 58 : index
    %c0_292 = arith.constant 0 : index
    %531 = vector.load %arg3[%c58, %c0_292] : memref<81x384xf32, #tpu.memory_space<vmem>>, vector<1x384xf32>
    %532 = vector.shape_cast %531 : vector<1x384xf32> to vector<384xf32>
    %c0_293 = arith.constant 0 : index
    %c0_294 = arith.constant 0 : index
    %533 = arith.index_cast %494 : i32 to index
    %c1_295 = arith.constant 1 : index
    %c128_296 = arith.constant 128 : index
    %534 = vector.load %arg6[%c0_293, %c0_294, %533, %c1_295, %c128_296] : memref<1x1x7x7x640xf32, #tpu.memory_space<vmem>>, vector<1x1x5x5x384xf32>
    %535 = vector.shape_cast %534 : vector<1x1x5x5x384xf32> to vector<5x5x384xf32>
    %536 = vector.shape_cast %532 : vector<384xf32> to vector<1x1x384xf32>
    %537 = vector.broadcast %536 : vector<1x1x384xf32> to vector<5x5x384xf32>
    %538 = arith.mulf %535, %537 : vector<5x5x384xf32>
    %539 = arith.addf %530, %538 : vector<5x5x384xf32>
    %c59 = arith.constant 59 : index
    %c0_297 = arith.constant 0 : index
    %540 = vector.load %arg3[%c59, %c0_297] : memref<81x384xf32, #tpu.memory_space<vmem>>, vector<1x384xf32>
    %541 = vector.shape_cast %540 : vector<1x384xf32> to vector<384xf32>
    %c0_298 = arith.constant 0 : index
    %c0_299 = arith.constant 0 : index
    %542 = arith.index_cast %494 : i32 to index
    %c1_300 = arith.constant 1 : index
    %c256_301 = arith.constant 256 : index
    %543 = vector.load %arg6[%c0_298, %c0_299, %542, %c1_300, %c256_301] : memref<1x1x7x7x640xf32, #tpu.memory_space<vmem>>, vector<1x1x5x5x384xf32>
    %544 = vector.shape_cast %543 : vector<1x1x5x5x384xf32> to vector<5x5x384xf32>
    %545 = vector.shape_cast %541 : vector<384xf32> to vector<1x1x384xf32>
    %546 = vector.broadcast %545 : vector<1x1x384xf32> to vector<5x5x384xf32>
    %547 = arith.mulf %544, %546 : vector<5x5x384xf32>
    %548 = arith.addf %539, %547 : vector<5x5x384xf32>
    %c60 = arith.constant 60 : index
    %c0_302 = arith.constant 0 : index
    %549 = vector.load %arg3[%c60, %c0_302] : memref<81x384xf32, #tpu.memory_space<vmem>>, vector<1x384xf32>
    %550 = vector.shape_cast %549 : vector<1x384xf32> to vector<384xf32>
    %c0_303 = arith.constant 0 : index
    %c0_304 = arith.constant 0 : index
    %551 = arith.index_cast %494 : i32 to index
    %c2_305 = arith.constant 2 : index
    %c0_306 = arith.constant 0 : index
    %552 = vector.load %arg6[%c0_303, %c0_304, %551, %c2_305, %c0_306] : memref<1x1x7x7x640xf32, #tpu.memory_space<vmem>>, vector<1x1x5x5x384xf32>
    %553 = vector.shape_cast %552 : vector<1x1x5x5x384xf32> to vector<5x5x384xf32>
    %554 = vector.shape_cast %550 : vector<384xf32> to vector<1x1x384xf32>
    %555 = vector.broadcast %554 : vector<1x1x384xf32> to vector<5x5x384xf32>
    %556 = arith.mulf %553, %555 : vector<5x5x384xf32>
    %557 = arith.addf %548, %556 : vector<5x5x384xf32>
    %c61 = arith.constant 61 : index
    %c0_307 = arith.constant 0 : index
    %558 = vector.load %arg3[%c61, %c0_307] : memref<81x384xf32, #tpu.memory_space<vmem>>, vector<1x384xf32>
    %559 = vector.shape_cast %558 : vector<1x384xf32> to vector<384xf32>
    %c0_308 = arith.constant 0 : index
    %c0_309 = arith.constant 0 : index
    %560 = arith.index_cast %494 : i32 to index
    %c2_310 = arith.constant 2 : index
    %c128_311 = arith.constant 128 : index
    %561 = vector.load %arg6[%c0_308, %c0_309, %560, %c2_310, %c128_311] : memref<1x1x7x7x640xf32, #tpu.memory_space<vmem>>, vector<1x1x5x5x384xf32>
    %562 = vector.shape_cast %561 : vector<1x1x5x5x384xf32> to vector<5x5x384xf32>
    %563 = vector.shape_cast %559 : vector<384xf32> to vector<1x1x384xf32>
    %564 = vector.broadcast %563 : vector<1x1x384xf32> to vector<5x5x384xf32>
    %565 = arith.mulf %562, %564 : vector<5x5x384xf32>
    %566 = arith.addf %557, %565 : vector<5x5x384xf32>
    %c62 = arith.constant 62 : index
    %c0_312 = arith.constant 0 : index
    %567 = vector.load %arg3[%c62, %c0_312] : memref<81x384xf32, #tpu.memory_space<vmem>>, vector<1x384xf32>
    %568 = vector.shape_cast %567 : vector<1x384xf32> to vector<384xf32>
    %c0_313 = arith.constant 0 : index
    %c0_314 = arith.constant 0 : index
    %569 = arith.index_cast %494 : i32 to index
    %c2_315 = arith.constant 2 : index
    %c256_316 = arith.constant 256 : index
    %570 = vector.load %arg6[%c0_313, %c0_314, %569, %c2_315, %c256_316] : memref<1x1x7x7x640xf32, #tpu.memory_space<vmem>>, vector<1x1x5x5x384xf32>
    %571 = vector.shape_cast %570 : vector<1x1x5x5x384xf32> to vector<5x5x384xf32>
    %572 = vector.shape_cast %568 : vector<384xf32> to vector<1x1x384xf32>
    %573 = vector.broadcast %572 : vector<1x1x384xf32> to vector<5x5x384xf32>
    %574 = arith.mulf %571, %573 : vector<5x5x384xf32>
    %575 = arith.addf %566, %574 : vector<5x5x384xf32>
    %c1_i32_317 = arith.constant 1 : i32
    %576 = arith.addi %0, %c1_i32_317 : i32
    %c63 = arith.constant 63 : index
    %c0_318 = arith.constant 0 : index
    %577 = vector.load %arg3[%c63, %c0_318] : memref<81x384xf32, #tpu.memory_space<vmem>>, vector<1x384xf32>
    %578 = vector.shape_cast %577 : vector<1x384xf32> to vector<384xf32>
    %c0_319 = arith.constant 0 : index
    %c0_320 = arith.constant 0 : index
    %579 = arith.index_cast %576 : i32 to index
    %c0_321 = arith.constant 0 : index
    %c0_322 = arith.constant 0 : index
    %580 = vector.load %arg6[%c0_319, %c0_320, %579, %c0_321, %c0_322] : memref<1x1x7x7x640xf32, #tpu.memory_space<vmem>>, vector<1x1x5x5x384xf32>
    %581 = vector.shape_cast %580 : vector<1x1x5x5x384xf32> to vector<5x5x384xf32>
    %582 = vector.shape_cast %578 : vector<384xf32> to vector<1x1x384xf32>
    %583 = vector.broadcast %582 : vector<1x1x384xf32> to vector<5x5x384xf32>
    %584 = arith.mulf %581, %583 : vector<5x5x384xf32>
    %585 = arith.addf %575, %584 : vector<5x5x384xf32>
    %c64 = arith.constant 64 : index
    %c0_323 = arith.constant 0 : index
    %586 = vector.load %arg3[%c64, %c0_323] : memref<81x384xf32, #tpu.memory_space<vmem>>, vector<1x384xf32>
    %587 = vector.shape_cast %586 : vector<1x384xf32> to vector<384xf32>
    %c0_324 = arith.constant 0 : index
    %c0_325 = arith.constant 0 : index
    %588 = arith.index_cast %576 : i32 to index
    %c0_326 = arith.constant 0 : index
    %c128_327 = arith.constant 128 : index
    %589 = vector.load %arg6[%c0_324, %c0_325, %588, %c0_326, %c128_327] : memref<1x1x7x7x640xf32, #tpu.memory_space<vmem>>, vector<1x1x5x5x384xf32>
    %590 = vector.shape_cast %589 : vector<1x1x5x5x384xf32> to vector<5x5x384xf32>
    %591 = vector.shape_cast %587 : vector<384xf32> to vector<1x1x384xf32>
    %592 = vector.broadcast %591 : vector<1x1x384xf32> to vector<5x5x384xf32>
    %593 = arith.mulf %590, %592 : vector<5x5x384xf32>
    %594 = arith.addf %585, %593 : vector<5x5x384xf32>
    %c65 = arith.constant 65 : index
    %c0_328 = arith.constant 0 : index
    %595 = vector.load %arg3[%c65, %c0_328] : memref<81x384xf32, #tpu.memory_space<vmem>>, vector<1x384xf32>
    %596 = vector.shape_cast %595 : vector<1x384xf32> to vector<384xf32>
    %c0_329 = arith.constant 0 : index
    %c0_330 = arith.constant 0 : index
    %597 = arith.index_cast %576 : i32 to index
    %c0_331 = arith.constant 0 : index
    %c256_332 = arith.constant 256 : index
    %598 = vector.load %arg6[%c0_329, %c0_330, %597, %c0_331, %c256_332] : memref<1x1x7x7x640xf32, #tpu.memory_space<vmem>>, vector<1x1x5x5x384xf32>
    %599 = vector.shape_cast %598 : vector<1x1x5x5x384xf32> to vector<5x5x384xf32>
    %600 = vector.shape_cast %596 : vector<384xf32> to vector<1x1x384xf32>
    %601 = vector.broadcast %600 : vector<1x1x384xf32> to vector<5x5x384xf32>
    %602 = arith.mulf %599, %601 : vector<5x5x384xf32>
    %603 = arith.addf %594, %602 : vector<5x5x384xf32>
    %c66 = arith.constant 66 : index
    %c0_333 = arith.constant 0 : index
    %604 = vector.load %arg3[%c66, %c0_333] : memref<81x384xf32, #tpu.memory_space<vmem>>, vector<1x384xf32>
    %605 = vector.shape_cast %604 : vector<1x384xf32> to vector<384xf32>
    %c0_334 = arith.constant 0 : index
    %c0_335 = arith.constant 0 : index
    %606 = arith.index_cast %576 : i32 to index
    %c1_336 = arith.constant 1 : index
    %c0_337 = arith.constant 0 : index
    %607 = vector.load %arg6[%c0_334, %c0_335, %606, %c1_336, %c0_337] : memref<1x1x7x7x640xf32, #tpu.memory_space<vmem>>, vector<1x1x5x5x384xf32>
    %608 = vector.shape_cast %607 : vector<1x1x5x5x384xf32> to vector<5x5x384xf32>
    %609 = vector.shape_cast %605 : vector<384xf32> to vector<1x1x384xf32>
    %610 = vector.broadcast %609 : vector<1x1x384xf32> to vector<5x5x384xf32>
    %611 = arith.mulf %608, %610 : vector<5x5x384xf32>
    %612 = arith.addf %603, %611 : vector<5x5x384xf32>
    %c67 = arith.constant 67 : index
    %c0_338 = arith.constant 0 : index
    %613 = vector.load %arg3[%c67, %c0_338] : memref<81x384xf32, #tpu.memory_space<vmem>>, vector<1x384xf32>
    %614 = vector.shape_cast %613 : vector<1x384xf32> to vector<384xf32>
    %c0_339 = arith.constant 0 : index
    %c0_340 = arith.constant 0 : index
    %615 = arith.index_cast %576 : i32 to index
    %c1_341 = arith.constant 1 : index
    %c128_342 = arith.constant 128 : index
    %616 = vector.load %arg6[%c0_339, %c0_340, %615, %c1_341, %c128_342] : memref<1x1x7x7x640xf32, #tpu.memory_space<vmem>>, vector<1x1x5x5x384xf32>
    %617 = vector.shape_cast %616 : vector<1x1x5x5x384xf32> to vector<5x5x384xf32>
    %618 = vector.shape_cast %614 : vector<384xf32> to vector<1x1x384xf32>
    %619 = vector.broadcast %618 : vector<1x1x384xf32> to vector<5x5x384xf32>
    %620 = arith.mulf %617, %619 : vector<5x5x384xf32>
    %621 = arith.addf %612, %620 : vector<5x5x384xf32>
    %c68 = arith.constant 68 : index
    %c0_343 = arith.constant 0 : index
    %622 = vector.load %arg3[%c68, %c0_343] : memref<81x384xf32, #tpu.memory_space<vmem>>, vector<1x384xf32>
    %623 = vector.shape_cast %622 : vector<1x384xf32> to vector<384xf32>
    %c0_344 = arith.constant 0 : index
    %c0_345 = arith.constant 0 : index
    %624 = arith.index_cast %576 : i32 to index
    %c1_346 = arith.constant 1 : index
    %c256_347 = arith.constant 256 : index
    %625 = vector.load %arg6[%c0_344, %c0_345, %624, %c1_346, %c256_347] : memref<1x1x7x7x640xf32, #tpu.memory_space<vmem>>, vector<1x1x5x5x384xf32>
    %626 = vector.shape_cast %625 : vector<1x1x5x5x384xf32> to vector<5x5x384xf32>
    %627 = vector.shape_cast %623 : vector<384xf32> to vector<1x1x384xf32>
    %628 = vector.broadcast %627 : vector<1x1x384xf32> to vector<5x5x384xf32>
    %629 = arith.mulf %626, %628 : vector<5x5x384xf32>
    %630 = arith.addf %621, %629 : vector<5x5x384xf32>
    %c69 = arith.constant 69 : index
    %c0_348 = arith.constant 0 : index
    %631 = vector.load %arg3[%c69, %c0_348] : memref<81x384xf32, #tpu.memory_space<vmem>>, vector<1x384xf32>
    %632 = vector.shape_cast %631 : vector<1x384xf32> to vector<384xf32>
    %c0_349 = arith.constant 0 : index
    %c0_350 = arith.constant 0 : index
    %633 = arith.index_cast %576 : i32 to index
    %c2_351 = arith.constant 2 : index
    %c0_352 = arith.constant 0 : index
    %634 = vector.load %arg6[%c0_349, %c0_350, %633, %c2_351, %c0_352] : memref<1x1x7x7x640xf32, #tpu.memory_space<vmem>>, vector<1x1x5x5x384xf32>
    %635 = vector.shape_cast %634 : vector<1x1x5x5x384xf32> to vector<5x5x384xf32>
    %636 = vector.shape_cast %632 : vector<384xf32> to vector<1x1x384xf32>
    %637 = vector.broadcast %636 : vector<1x1x384xf32> to vector<5x5x384xf32>
    %638 = arith.mulf %635, %637 : vector<5x5x384xf32>
    %639 = arith.addf %630, %638 : vector<5x5x384xf32>
    %c70 = arith.constant 70 : index
    %c0_353 = arith.constant 0 : index
    %640 = vector.load %arg3[%c70, %c0_353] : memref<81x384xf32, #tpu.memory_space<vmem>>, vector<1x384xf32>
    %641 = vector.shape_cast %640 : vector<1x384xf32> to vector<384xf32>
    %c0_354 = arith.constant 0 : index
    %c0_355 = arith.constant 0 : index
    %642 = arith.index_cast %576 : i32 to index
    %c2_356 = arith.constant 2 : index
    %c128_357 = arith.constant 128 : index
    %643 = vector.load %arg6[%c0_354, %c0_355, %642, %c2_356, %c128_357] : memref<1x1x7x7x640xf32, #tpu.memory_space<vmem>>, vector<1x1x5x5x384xf32>
    %644 = vector.shape_cast %643 : vector<1x1x5x5x384xf32> to vector<5x5x384xf32>
    %645 = vector.shape_cast %641 : vector<384xf32> to vector<1x1x384xf32>
    %646 = vector.broadcast %645 : vector<1x1x384xf32> to vector<5x5x384xf32>
    %647 = arith.mulf %644, %646 : vector<5x5x384xf32>
    %648 = arith.addf %639, %647 : vector<5x5x384xf32>
    %c71 = arith.constant 71 : index
    %c0_358 = arith.constant 0 : index
    %649 = vector.load %arg3[%c71, %c0_358] : memref<81x384xf32, #tpu.memory_space<vmem>>, vector<1x384xf32>
    %650 = vector.shape_cast %649 : vector<1x384xf32> to vector<384xf32>
    %c0_359 = arith.constant 0 : index
    %c0_360 = arith.constant 0 : index
    %651 = arith.index_cast %576 : i32 to index
    %c2_361 = arith.constant 2 : index
    %c256_362 = arith.constant 256 : index
    %652 = vector.load %arg6[%c0_359, %c0_360, %651, %c2_361, %c256_362] : memref<1x1x7x7x640xf32, #tpu.memory_space<vmem>>, vector<1x1x5x5x384xf32>
    %653 = vector.shape_cast %652 : vector<1x1x5x5x384xf32> to vector<5x5x384xf32>
    %654 = vector.shape_cast %650 : vector<384xf32> to vector<1x1x384xf32>
    %655 = vector.broadcast %654 : vector<1x1x384xf32> to vector<5x5x384xf32>
    %656 = arith.mulf %653, %655 : vector<5x5x384xf32>
    %657 = arith.addf %648, %656 : vector<5x5x384xf32>
    %c2_i32_363 = arith.constant 2 : i32
    %658 = arith.addi %0, %c2_i32_363 : i32
    %c72 = arith.constant 72 : index
    %c0_364 = arith.constant 0 : index
    %659 = vector.load %arg3[%c72, %c0_364] : memref<81x384xf32, #tpu.memory_space<vmem>>, vector<1x384xf32>
    %660 = vector.shape_cast %659 : vector<1x384xf32> to vector<384xf32>
    %c0_365 = arith.constant 0 : index
    %c0_366 = arith.constant 0 : index
    %661 = arith.index_cast %658 : i32 to index
    %c0_367 = arith.constant 0 : index
    %c0_368 = arith.constant 0 : index
    %662 = vector.load %arg6[%c0_365, %c0_366, %661, %c0_367, %c0_368] : memref<1x1x7x7x640xf32, #tpu.memory_space<vmem>>, vector<1x1x5x5x384xf32>
    %663 = vector.shape_cast %662 : vector<1x1x5x5x384xf32> to vector<5x5x384xf32>
    %664 = vector.shape_cast %660 : vector<384xf32> to vector<1x1x384xf32>
    %665 = vector.broadcast %664 : vector<1x1x384xf32> to vector<5x5x384xf32>
    %666 = arith.mulf %663, %665 : vector<5x5x384xf32>
    %667 = arith.addf %657, %666 : vector<5x5x384xf32>
    %c73 = arith.constant 73 : index
    %c0_369 = arith.constant 0 : index
    %668 = vector.load %arg3[%c73, %c0_369] : memref<81x384xf32, #tpu.memory_space<vmem>>, vector<1x384xf32>
    %669 = vector.shape_cast %668 : vector<1x384xf32> to vector<384xf32>
    %c0_370 = arith.constant 0 : index
    %c0_371 = arith.constant 0 : index
    %670 = arith.index_cast %658 : i32 to index
    %c0_372 = arith.constant 0 : index
    %c128_373 = arith.constant 128 : index
    %671 = vector.load %arg6[%c0_370, %c0_371, %670, %c0_372, %c128_373] : memref<1x1x7x7x640xf32, #tpu.memory_space<vmem>>, vector<1x1x5x5x384xf32>
    %672 = vector.shape_cast %671 : vector<1x1x5x5x384xf32> to vector<5x5x384xf32>
    %673 = vector.shape_cast %669 : vector<384xf32> to vector<1x1x384xf32>
    %674 = vector.broadcast %673 : vector<1x1x384xf32> to vector<5x5x384xf32>
    %675 = arith.mulf %672, %674 : vector<5x5x384xf32>
    %676 = arith.addf %667, %675 : vector<5x5x384xf32>
    %c74 = arith.constant 74 : index
    %c0_374 = arith.constant 0 : index
    %677 = vector.load %arg3[%c74, %c0_374] : memref<81x384xf32, #tpu.memory_space<vmem>>, vector<1x384xf32>
    %678 = vector.shape_cast %677 : vector<1x384xf32> to vector<384xf32>
    %c0_375 = arith.constant 0 : index
    %c0_376 = arith.constant 0 : index
    %679 = arith.index_cast %658 : i32 to index
    %c0_377 = arith.constant 0 : index
    %c256_378 = arith.constant 256 : index
    %680 = vector.load %arg6[%c0_375, %c0_376, %679, %c0_377, %c256_378] : memref<1x1x7x7x640xf32, #tpu.memory_space<vmem>>, vector<1x1x5x5x384xf32>
    %681 = vector.shape_cast %680 : vector<1x1x5x5x384xf32> to vector<5x5x384xf32>
    %682 = vector.shape_cast %678 : vector<384xf32> to vector<1x1x384xf32>
    %683 = vector.broadcast %682 : vector<1x1x384xf32> to vector<5x5x384xf32>
    %684 = arith.mulf %681, %683 : vector<5x5x384xf32>
    %685 = arith.addf %676, %684 : vector<5x5x384xf32>
    %c75 = arith.constant 75 : index
    %c0_379 = arith.constant 0 : index
    %686 = vector.load %arg3[%c75, %c0_379] : memref<81x384xf32, #tpu.memory_space<vmem>>, vector<1x384xf32>
    %687 = vector.shape_cast %686 : vector<1x384xf32> to vector<384xf32>
    %c0_380 = arith.constant 0 : index
    %c0_381 = arith.constant 0 : index
    %688 = arith.index_cast %658 : i32 to index
    %c1_382 = arith.constant 1 : index
    %c0_383 = arith.constant 0 : index
    %689 = vector.load %arg6[%c0_380, %c0_381, %688, %c1_382, %c0_383] : memref<1x1x7x7x640xf32, #tpu.memory_space<vmem>>, vector<1x1x5x5x384xf32>
    %690 = vector.shape_cast %689 : vector<1x1x5x5x384xf32> to vector<5x5x384xf32>
    %691 = vector.shape_cast %687 : vector<384xf32> to vector<1x1x384xf32>
    %692 = vector.broadcast %691 : vector<1x1x384xf32> to vector<5x5x384xf32>
    %693 = arith.mulf %690, %692 : vector<5x5x384xf32>
    %694 = arith.addf %685, %693 : vector<5x5x384xf32>
    %c76 = arith.constant 76 : index
    %c0_384 = arith.constant 0 : index
    %695 = vector.load %arg3[%c76, %c0_384] : memref<81x384xf32, #tpu.memory_space<vmem>>, vector<1x384xf32>
    %696 = vector.shape_cast %695 : vector<1x384xf32> to vector<384xf32>
    %c0_385 = arith.constant 0 : index
    %c0_386 = arith.constant 0 : index
    %697 = arith.index_cast %658 : i32 to index
    %c1_387 = arith.constant 1 : index
    %c128_388 = arith.constant 128 : index
    %698 = vector.load %arg6[%c0_385, %c0_386, %697, %c1_387, %c128_388] : memref<1x1x7x7x640xf32, #tpu.memory_space<vmem>>, vector<1x1x5x5x384xf32>
    %699 = vector.shape_cast %698 : vector<1x1x5x5x384xf32> to vector<5x5x384xf32>
    %700 = vector.shape_cast %696 : vector<384xf32> to vector<1x1x384xf32>
    %701 = vector.broadcast %700 : vector<1x1x384xf32> to vector<5x5x384xf32>
    %702 = arith.mulf %699, %701 : vector<5x5x384xf32>
    %703 = arith.addf %694, %702 : vector<5x5x384xf32>
    %c77 = arith.constant 77 : index
    %c0_389 = arith.constant 0 : index
    %704 = vector.load %arg3[%c77, %c0_389] : memref<81x384xf32, #tpu.memory_space<vmem>>, vector<1x384xf32>
    %705 = vector.shape_cast %704 : vector<1x384xf32> to vector<384xf32>
    %c0_390 = arith.constant 0 : index
    %c0_391 = arith.constant 0 : index
    %706 = arith.index_cast %658 : i32 to index
    %c1_392 = arith.constant 1 : index
    %c256_393 = arith.constant 256 : index
    %707 = vector.load %arg6[%c0_390, %c0_391, %706, %c1_392, %c256_393] : memref<1x1x7x7x640xf32, #tpu.memory_space<vmem>>, vector<1x1x5x5x384xf32>
    %708 = vector.shape_cast %707 : vector<1x1x5x5x384xf32> to vector<5x5x384xf32>
    %709 = vector.shape_cast %705 : vector<384xf32> to vector<1x1x384xf32>
    %710 = vector.broadcast %709 : vector<1x1x384xf32> to vector<5x5x384xf32>
    %711 = arith.mulf %708, %710 : vector<5x5x384xf32>
    %712 = arith.addf %703, %711 : vector<5x5x384xf32>
    %c78 = arith.constant 78 : index
    %c0_394 = arith.constant 0 : index
    %713 = vector.load %arg3[%c78, %c0_394] : memref<81x384xf32, #tpu.memory_space<vmem>>, vector<1x384xf32>
    %714 = vector.shape_cast %713 : vector<1x384xf32> to vector<384xf32>
    %c0_395 = arith.constant 0 : index
    %c0_396 = arith.constant 0 : index
    %715 = arith.index_cast %658 : i32 to index
    %c2_397 = arith.constant 2 : index
    %c0_398 = arith.constant 0 : index
    %716 = vector.load %arg6[%c0_395, %c0_396, %715, %c2_397, %c0_398] : memref<1x1x7x7x640xf32, #tpu.memory_space<vmem>>, vector<1x1x5x5x384xf32>
    %717 = vector.shape_cast %716 : vector<1x1x5x5x384xf32> to vector<5x5x384xf32>
    %718 = vector.shape_cast %714 : vector<384xf32> to vector<1x1x384xf32>
    %719 = vector.broadcast %718 : vector<1x1x384xf32> to vector<5x5x384xf32>
    %720 = arith.mulf %717, %719 : vector<5x5x384xf32>
    %721 = arith.addf %712, %720 : vector<5x5x384xf32>
    %c79 = arith.constant 79 : index
    %c0_399 = arith.constant 0 : index
    %722 = vector.load %arg3[%c79, %c0_399] : memref<81x384xf32, #tpu.memory_space<vmem>>, vector<1x384xf32>
    %723 = vector.shape_cast %722 : vector<1x384xf32> to vector<384xf32>
    %c0_400 = arith.constant 0 : index
    %c0_401 = arith.constant 0 : index
    %724 = arith.index_cast %658 : i32 to index
    %c2_402 = arith.constant 2 : index
    %c128_403 = arith.constant 128 : index
    %725 = vector.load %arg6[%c0_400, %c0_401, %724, %c2_402, %c128_403] : memref<1x1x7x7x640xf32, #tpu.memory_space<vmem>>, vector<1x1x5x5x384xf32>
    %726 = vector.shape_cast %725 : vector<1x1x5x5x384xf32> to vector<5x5x384xf32>
    %727 = vector.shape_cast %723 : vector<384xf32> to vector<1x1x384xf32>
    %728 = vector.broadcast %727 : vector<1x1x384xf32> to vector<5x5x384xf32>
    %729 = arith.mulf %726, %728 : vector<5x5x384xf32>
    %730 = arith.addf %721, %729 : vector<5x5x384xf32>
    %c80 = arith.constant 80 : index
    %c0_404 = arith.constant 0 : index
    %731 = vector.load %arg3[%c80, %c0_404] : memref<81x384xf32, #tpu.memory_space<vmem>>, vector<1x384xf32>
    %732 = vector.shape_cast %731 : vector<1x384xf32> to vector<384xf32>
    %c0_405 = arith.constant 0 : index
    %c0_406 = arith.constant 0 : index
    %733 = arith.index_cast %658 : i32 to index
    %c2_407 = arith.constant 2 : index
    %c256_408 = arith.constant 256 : index
    %734 = vector.load %arg6[%c0_405, %c0_406, %733, %c2_407, %c256_408] : memref<1x1x7x7x640xf32, #tpu.memory_space<vmem>>, vector<1x1x5x5x384xf32>
    %735 = vector.shape_cast %734 : vector<1x1x5x5x384xf32> to vector<5x5x384xf32>
    %736 = vector.shape_cast %732 : vector<384xf32> to vector<1x1x384xf32>
    %737 = vector.broadcast %736 : vector<1x1x384xf32> to vector<5x5x384xf32>
    %738 = arith.mulf %735, %737 : vector<5x5x384xf32>
    %739 = arith.addf %730, %738 : vector<5x5x384xf32>
    %c0_409 = arith.constant 0 : index
    %c0_410 = arith.constant 0 : index
    %c0_411 = arith.constant 0 : index
    %c0_412 = arith.constant 0 : index
    %c0_413 = arith.constant 0 : index
    %740 = vector.load %arg7[%c0_409, %c0_410, %c0_411, %c0_412, %c0_413] : memref<1x1x5x5x384xf32, #tpu.memory_space<vmem>>, vector<1x1x5x5x384xf32>
    %741 = vector.shape_cast %740 : vector<1x1x5x5x384xf32> to vector<5x5x384xf32>
    %742 = vector.shape_cast %739 : vector<5x5x384xf32> to vector<1x1x5x5x384xf32>
    tpu.vector_store %arg7[%c0_409, %c0_410, %c0_411, %c0_412, %c0_413], %742 {strides = array<i32>} : memref<1x1x5x5x384xf32, #tpu.memory_space<vmem>>, vector<1x1x5x5x384xf32>,
    return
  }
  func.func @transform_0(%arg0: i32, %arg1: i32, %arg2: i32) -> (i32, i32) {
    %c0_i32 = arith.constant 0 : i32
    %c0_i32_0 = arith.constant 0 : i32
    %c0_i32_1 = arith.constant 0 : i32
    return %c0_i32, %c0_i32_0 : i32, i32
  }
  func.func @transform_1(%arg0: i32, %arg1: i32, %arg2: i32) -> (i32, i32, i32, i32, i32) {
    %c1_i32 = arith.constant 1 : i32
    %0 = arith.muli %arg1, %c1_i32 : i32
    %c0_i32 = arith.constant 0 : i32
    %1 = arith.addi %0, %c0_i32 : i32
    %c0_i32_0 = arith.constant 0 : i32
    %c0_i32_1 = arith.constant 0 : i32
    %c0_i32_2 = arith.constant 0 : i32
    %c0_i32_3 = arith.constant 0 : i32
    return %arg0, %1, %c0_i32_0, %c0_i32_1, %c0_i32_2 : i32, i32, i32, i32, i32
  }
  func.func @transform_2(%arg0: i32, %arg1: i32, %arg2: i32) -> (i32, i32, i32, i32, i32) {
    %c1_i32 = arith.constant 1 : i32
    %0 = arith.muli %arg1, %c1_i32 : i32
    %c1_i32_0 = arith.constant 1 : i32
    %1 = arith.addi %0, %c1_i32_0 : i32
    %c0_i32 = arith.constant 0 : i32
    %c0_i32_1 = arith.constant 0 : i32
    %c0_i32_2 = arith.constant 0 : i32
    %c0_i32_3 = arith.constant 0 : i32
    return %arg0, %1, %c0_i32, %c0_i32_1, %c0_i32_2 : i32, i32, i32, i32, i32
  }
  func.func @transform_3(%arg0: i32, %arg1: i32, %arg2: i32) -> (i32, i32, i32, i32, i32) {
    %c1_i32 = arith.constant 1 : i32
    %0 = arith.muli %arg1, %c1_i32 : i32
    %c2_i32 = arith.constant 2 : i32
    %1 = arith.addi %0, %c2_i32 : i32
    %c0_i32 = arith.constant 0 : i32
    %c0_i32_0 = arith.constant 0 : i32
    %c0_i32_1 = arith.constant 0 : i32
    %c0_i32_2 = arith.constant 0 : i32
    return %arg0, %1, %c0_i32, %c0_i32_0, %c0_i32_1 : i32, i32, i32, i32, i32
  }
  func.func @transform_4(%arg0: i32, %arg1: i32, %arg2: i32) -> (i32, i32, i32, i32, i32) {
    %c0_i32 = arith.constant 0 : i32
    %c0_i32_0 = arith.constant 0 : i32
    %c0_i32_1 = arith.constant 0 : i32
    return %arg0, %arg1, %arg2, %c0_i32, %c0_i32_0 : i32, i32, i32, i32, i32
  }
}

</mosaic_0001>

<llo_original>
// kernel: tpu_custom_call.1
$region0: #{tpu_custom_call.1}
  #allocation0 [shape = 'u32[]', space=smem, size = 0x4, offset = 0x4, fixed_abs, tag = 'smem constant byte address 0x4 - core index']
  #allocation1 [shape = 'u32[72,128]{1,0:T(1,128)}', space=vmem, size = 0x9000, scoped, tag = 'internal scratch']
  %s0 = inlined_call_operand.vmem [shape: f32[81,384], index: 0, kind: input, shape index: {}]
  %s1 = inlined_call_operand.vmem [shape: f32[2,7,7,7,640], index: 1, kind: input, shape index: {}]
  %s2 = inlined_call_operand.vmem [shape: f32[2,7,7,7,640], index: 2, kind: input, shape index: {}]
  %s3 = inlined_call_operand.vmem [shape: f32[2,7,7,7,640], index: 3, kind: input, shape index: {}]
  %s4 = inlined_call_operand.vmem [shape: f32[2,5,5,5,384], index: 4, kind: output, shape index: {}]
  %s5 = sld [smem:[#allocation0]]
  $region49: #{tpu_custom_call.1} parent=0
    _
  %s7 = ssub.s32 1, %s5
  %s8 = scalar_select 0, %s7, %s5
  loop: start=0, step=1, limit=12
  $region2: #{tpu_custom_call.1} parent=0 // loop_pre_header
    _
  $region3: #{tpu_custom_call.1} parent=0 // loop_header
    %s10 = sphi 0, %s14
    %p11 = scmp.ge.s32.totalorder %s10, 12
    %s17 = sphi 0, %s36
    %s18 = sphi 0, %s32
    %s19 = sphi 0, %s28
    %s20 = sphi 0, %s17
    %s21 = sphi 0, %s18
    %s22 = sphi 0, %s19
    %s23 = sphi 0, %s20
    %s24 = sphi 0, %s21
    %s25 = sphi 0, %s22
    %s37 = sphi 0, %s37
    %s39 = sphi 0, %s37
    %s40 = sphi 0, %s39
    %s54 = sphi 0, %s40
    %s62 = sphi 0, %s64
    %s65 = sphi 0, %s62
    %s66 = sphi 0, %s65
    %s82 = sphi 0, %s66
    %s92 = sphi 0, %s94
    %s95 = sphi 0, %s92
    %s96 = sphi 0, %s95
    %s112 = sphi 0, %s96
    %s122 = sphi 0, %s124
    %s125 = sphi 0, %s122
    %s126 = sphi 0, %s125
    %s142 = sphi 0, %s126
    %s152 = sphi 0, %s154
    %s155 = sphi 0, %s152
    %s156 = sphi 0, %s155
    %s172 = sphi 0, %s156
  $region4: #{tpu_custom_call.1} parent=0 // loop_header_branch
    %13 = sbr.rel (%p11) target = $region8
  $region5: #{tpu_custom_call.1} parent=0 // loop_body
    %s15 = ssub.s32 %s10, 1
    %s16 = ssub.s32 %s10, 2
    %s26 = sadd.s32 1, %s19
    %p27 = scmp.ge.s32.totalorder %s26, 1
    %s28 = scalar_select %p27, 0, %s26
    %s29 = sadd.s32 1, %s18
    %s30 = scalar_select %p27, %s29, %s18
    %p31 = scmp.ge.s32.totalorder %s30, 5
    %s32 = scalar_select %p31, 0, %s30
    %s33 = sadd.s32 1, %s17
    %s34 = scalar_select %p31, %s33, %s17
    %p35 = scmp.ge.s32.totalorder %s34, 2
    %s36 = scalar_select %p35, 0, %s34
    %s38 = sadd.s32 %s37, 1
    %p41 = scmp.eq.s32.totalorder %s10, 9
    %p42 = scmp.ne.s32.totalorder %s37, %s39
    %p43 = scmp.eq.s32.totalorder %s10, 0
    %p44 = por %p42, %p43
    %p45 = scmp.ne.s32.totalorder %s37, %s39
    %p46 = scmp.eq.s32.totalorder %s15, 9
    %p47 = por %p45, %p46
    %p48 = scmp.ne.s32.totalorder %s39, %s40
    %p49 = scmp.eq.s32.totalorder %s15, 0
    %p50 = por %p48, %p49
    %p51 = scmp.ne.s32.totalorder %s39, %s40
    %p52 = scmp.eq.s32.totalorder %s16, 9
    %p53 = por %p51, %p52
    %p55 = scmp.ne.s32.totalorder %s40, %s54
    %p56 = scmp.eq.s32.totalorder %s16, 0
    %p57 = por %p55, %p56
    %s58 = ssub.s32 %s17, %s36
    %s59 = ssub.s32 %s18, %s32
    %s60 = sor.u32 %s58, %s59
    %p61 = scmp.eq.s32.totalorder %s60, 0
    %s63 = sadd.s32 %s62, 1
    %s64 = scalar_select %p61, %s62, %s63
    %p67 = pneg %p61
    %p68 = scmp.eq.s32.totalorder %s10, 9
    %p69 = por %p67, %p68
    %p70 = scmp.ne.s32.totalorder %s62, %s65
    %p71 = scmp.eq.s32.totalorder %s10, 0
    %p72 = por %p70, %p71
    %p73 = scmp.ne.s32.totalorder %s62, %s65
    %p74 = scmp.eq.s32.totalorder %s15, 9
    %p75 = por %p73, %p74
    %p76 = scmp.ne.s32.totalorder %s65, %s66
    %p77 = scmp.eq.s32.totalorder %s15, 0
    %p78 = por %p76, %p77
    %p79 = scmp.ne.s32.totalorder %s65, %s66
    %p80 = scmp.eq.s32.totalorder %s16, 9
    %p81 = por %p79, %p80
    %p83 = scmp.ne.s32.totalorder %s66, %s82
    %p84 = scmp.eq.s32.totalorder %s16, 0
    %p85 = por %p83, %p84
    %s86 = sadd.s32 %s18, 1
    %s87 = sadd.s32 %s32, 1
    %s88 = ssub.s32 %s17, %s36
    %s89 = ssub.s32 %s86, %s87
    %s90 = sor.u32 %s88, %s89
    %p91 = scmp.eq.s32.totalorder %s90, 0
    %s93 = sadd.s32 %s92, 1
    %s94 = scalar_select %p91, %s92, %s93
    %p97 = pneg %p91
    %p98 = scmp.eq.s32.totalorder %s10, 9
    %p99 = por %p97, %p98
    %p100 = scmp.ne.s32.totalorder %s92, %s95
    %p101 = scmp.eq.s32.totalorder %s10, 0
    %p102 = por %p100, %p101
    %p103 = scmp.ne.s32.totalorder %s92, %s95
    %p104 = scmp.eq.s32.totalorder %s15, 9
    %p105 = por %p103, %p104
    %p106 = scmp.ne.s32.totalorder %s95, %s96
    %p107 = scmp.eq.s32.totalorder %s15, 0
    %p108 = por %p106, %p107
    %p109 = scmp.ne.s32.totalorder %s95, %s96
    %p110 = scmp.eq.s32.totalorder %s16, 9
    %p111 = por %p109, %p110
    %p113 = scmp.ne.s32.totalorder %s96, %s112
    %p114 = scmp.eq.s32.totalorder %s16, 0
    %p115 = por %p113, %p114
    %s116 = sadd.s32 %s18, 2
    %s117 = sadd.s32 %s32, 2
    %s118 = ssub.s32 %s17, %s36
    %s119 = ssub.s32 %s116, %s117
    %s120 = sor.u32 %s118, %s119
    %p121 = scmp.eq.s32.totalorder %s120, 0
    %s123 = sadd.s32 %s122, 1
    %s124 = scalar_select %p121, %s122, %s123
    %p127 = pneg %p121
    %p128 = scmp.eq.s32.totalorder %s10, 9
    %p129 = por %p127, %p128
    %p130 = scmp.ne.s32.totalorder %s122, %s125
    %p131 = scmp.eq.s32.totalorder %s10, 0
    %p132 = por %p130, %p131
    %p133 = scmp.ne.s32.totalorder %s122, %s125
    %p134 = scmp.eq.s32.totalorder %s15, 9
    %p135 = por %p133, %p134
    %p136 = scmp.ne.s32.totalorder %s125, %s126
    %p137 = scmp.eq.s32.totalorder %s15, 0
    %p138 = por %p136, %p137
    %p139 = scmp.ne.s32.totalorder %s125, %s126
    %p140 = scmp.eq.s32.totalorder %s16, 9
    %p141 = por %p139, %p140
    %p143 = scmp.ne.s32.totalorder %s126, %s142
    %p144 = scmp.eq.s32.totalorder %s16, 0
    %p145 = por %p143, %p144
    %s146 = ssub.s32 %s17, %s36
    %s147 = ssub.s32 %s18, %s32
    %s148 = sor.u32 %s146, %s147
    %s149 = ssub.s32 %s19, %s28
    %s150 = sor.u32 %s148, %s149
    %p151 = scmp.eq.s32.totalorder %s150, 0
    %s153 = sadd.s32 %s152, 1
    %s154 = scalar_select %p151, %s152, %s153
    %p157 = pneg %p151
    %p158 = scmp.eq.s32.totalorder %s10, 9
    %p159 = por %p157, %p158
    %p160 = scmp.ne.s32.totalorder %s152, %s155
    %p161 = scmp.eq.s32.totalorder %s10, 0
    %p162 = por %p160, %p161
    %p163 = scmp.ne.s32.totalorder %s152, %s155
    %p164 = scmp.eq.s32.totalorder %s15, 9
    %p165 = por %p163, %p164
    %p166 = scmp.ne.s32.totalorder %s155, %s156
    %p167 = scmp.eq.s32.totalorder %s15, 0
    %p168 = por %p166, %p167
    %p169 = scmp.ne.s32.totalorder %s155, %s156
    %p170 = scmp.eq.s32.totalorder %s16, 9
    %p171 = por %p169, %p170
    %p173 = scmp.ne.s32.totalorder %s156, %s172
    %p174 = scmp.eq.s32.totalorder %s16, 0
    %p175 = por %p173, %p174
    %p176 = scmp.le.s32.totalorder 1, %s10
    %p177 = scmp.lt.s32.totalorder %s10, 11
    %p178 = pnand %p176, %p177
    %p179 = pneg %p178
    // Predicated region
    $region9: #{tpu_custom_call.1} parent=5 // pred_check
      _
    $region10: #{tpu_custom_call.1} parent=5 // pred_check_branch
      %181 = sbr.rel (%p178) target = $region12
    $region11: #{tpu_custom_call.1} parent=5 // pred_region
      %s182 = ssub.s32 %s10, 1
      // Predicated region
      $region13: #{tpu_custom_call.1} parent=11 // pred_check
        %p183 = pneg %p50
      $region14: #{tpu_custom_call.1} parent=11 // pred_check_branch
        %185 = sbr.rel (%p183) target = $region16
      $region15: #{tpu_custom_call.1} parent=11 // pred_region
        _
      $region16: #{tpu_custom_call.1} parent=11 // pred_fallthru
        _
    $region12: #{tpu_custom_call.1} parent=5 // pred_fallthru
      _
    %p186 = scmp.lt.s32.totalorder %s10, 10
    // Predicated region
    $region17: #{tpu_custom_call.1} parent=5 // pred_check
      %p187 = pneg %p186
    $region18: #{tpu_custom_call.1} parent=5 // pred_check_branch
      %189 = sbr.rel (%p187) target = $region20
    $region19: #{tpu_custom_call.1} parent=5 // pred_region
      // Predicated region
      $region21: #{tpu_custom_call.1} parent=19 // pred_check
        %p190 = pneg %p72
      $region22: #{tpu_custom_call.1} parent=19 // pred_check_branch
        %192 = sbr.rel (%p190) target = $region24
      $region23: #{tpu_custom_call.1} parent=19 // pred_region
        %p193 = scmp.lt.s32.totalorder %s17, 1
        %s194 = scalar_select %p193, %s17, 1
        %p195 = scmp.lt.s32.totalorder %s18, 6
        %s196 = scalar_select %p195, %s18, 6
        %s197 = smul.addr %s196, 35
        %s198 = smul.addr %s194, 245
        %s199 = sadd.s32 %s197, %s198
        %s200 = smul.addr %s199, 8
        %s201 = scalar_lea.vmem %s1, %s200
      $region24: #{tpu_custom_call.1} parent=19 // pred_fallthru
        _
      // Predicated region
      $region25: #{tpu_custom_call.1} parent=19 // pred_check
        %p202 = pneg %p102
      $region26: #{tpu_custom_call.1} parent=19 // pred_check_branch
        %204 = sbr.rel (%p202) target = $region28
      $region27: #{tpu_custom_call.1} parent=19 // pred_region
        %s205 = sadd.s32 %s18, 1
        %p206 = scmp.lt.s32.totalorder %s17, 1
        %s207 = scalar_select %p206, %s17, 1
        %p208 = scmp.lt.s32.totalorder %s205, 6
        %s209 = scalar_select %p208, %s205, 6
        %s210 = smul.addr %s209, 35
        %s211 = smul.addr %s207, 245
        %s212 = sadd.s32 %s210, %s211
        %s213 = smul.addr %s212, 8
        %s214 = scalar_lea.vmem %s2, %s213
        %s215 = sadd.s32 %s18, 1
      $region28: #{tpu_custom_call.1} parent=19 // pred_fallthru
        _
      // Predicated region
      $region29: #{tpu_custom_call.1} parent=19 // pred_check
        %p216 = pneg %p132
      $region30: #{tpu_custom_call.1} parent=19 // pred_check_branch
        %218 = sbr.rel (%p216) target = $region32
      $region31: #{tpu_custom_call.1} parent=19 // pred_region
        %s219 = sadd.s32 %s18, 2
        %p220 = scmp.lt.s32.totalorder %s17, 1
        %s221 = scalar_select %p220, %s17, 1
        %p222 = scmp.lt.s32.totalorder %s219, 6
        %s223 = scalar_select %p222, %s219, 6
        %s224 = smul.addr %s223, 35
        %s225 = smul.addr %s221, 245
        %s226 = sadd.s32 %s224, %s225
        %s227 = smul.addr %s226, 8
        %s228 = scalar_lea.vmem %s3, %s227
        %s229 = sadd.s32 %s18, 2
      $region32: #{tpu_custom_call.1} parent=19 // pred_fallthru
        _
    $region20: #{tpu_custom_call.1} parent=5 // pred_fallthru
      _
    %p230 = scmp.le.s32.totalorder 1, %s10
    %p231 = scmp.lt.s32.totalorder %s10, 11
    %p232 = pnand %p230, %p231
    %p233 = pneg %p232
    // Predicated region
    $region33: #{tpu_custom_call.1} parent=5 // pred_check
      _
    $region34: #{tpu_custom_call.1} parent=5 // pred_check_branch
      %235 = sbr.rel (%p232) target = $region36
    $region35: #{tpu_custom_call.1} parent=5 // pred_region
      %s236 = ssub.s32 %s10, 1
      %p237 = pneg %p50
      %p238 = pneg %p47
      %p239 = scmp.lt.s32.totalorder %s20, 1
      %s240 = scalar_select %p239, %s20, 1
      %p241 = scmp.lt.s32.totalorder %s21, 6
      %s242 = scalar_select %p241, %s21, 6
      %s243 = smul.addr %s242, 35
      %s244 = smul.addr %s240, 245
      %s245 = sadd.s32 %s243, %s244
      %s246 = smul.addr %s245, 8
      %s247 = scalar_lea.vmem %s1, %s246
      %p248 = pneg %p78
      %p249 = pneg %p75
      %s250 = sadd.s32 %s21, 1
      %p251 = scmp.lt.s32.totalorder %s20, 1
      %s252 = scalar_select %p251, %s20, 1
      %p253 = scmp.lt.s32.totalorder %s250, 6
      %s254 = scalar_select %p253, %s250, 6
      %s255 = smul.addr %s254, 35
      %s256 = smul.addr %s252, 245
      %s257 = sadd.s32 %s255, %s256
      %s258 = smul.addr %s257, 8
      %s259 = scalar_lea.vmem %s2, %s258
      %p260 = pneg %p108
      %p261 = pneg %p105
      %s262 = sadd.s32 %s21, 2
      %p263 = scmp.lt.s32.totalorder %s20, 1
      %s264 = scalar_select %p263, %s20, 1
      %p265 = scmp.lt.s32.totalorder %s262, 6
      %s266 = scalar_select %p265, %s262, 6
      %s267 = smul.addr %s266, 35
      %s268 = smul.addr %s264, 245
      %s269 = sadd.s32 %s267, %s268
      %s270 = smul.addr %s269, 8
      %s271 = scalar_lea.vmem %s3, %s270
      %p272 = pneg %p138
      %p273 = pneg %p135
      %p274 = pneg %p168
      %p275 = pneg %p165
      %s276 = smul.u32 5, %s22
      %p277 = scmp.lt.s32.totalorder %s20, 1
      %s278 = scalar_select %p277, %s20, 1
      %p279 = scmp.lt.s32.totalorder %s21, 4
      %s280 = scalar_select %p279, %s21, 4
      %p281 = scmp.lt.s32.totalorder %s276, 4
      %s282 = scalar_select %p281, %s276, 4
      %s283 = smul.addr %s282, 3
      %s284 = smul.addr %s280, 15
      %s285 = sadd.s32 %s283, %s284
      %s286 = smul.addr %s278, 75
      %s287 = sadd.s32 %s285, %s286
      %s288 = smul.addr %s287, 8
      %s289 = scalar_lea.vmem %s4, %s288
      %p290 = scmp.lt.s32.totalorder %s20, 1
      %s291 = scalar_select %p290, %s20, 1
      %p292 = scmp.lt.s32.totalorder %s21, 6
      %s293 = scalar_select %p292, %s21, 6
      %s294 = smul.addr %s293, 35
      %s295 = smul.addr %s291, 245
      %s296 = sadd.s32 %s294, %s295
      %s297 = smul.addr %s296, 8
      %s298 = scalar_lea.vmem %s1, %s297
      %s299 = sadd.s32 %s21, 1
      %p300 = scmp.lt.s32.totalorder %s20, 1
      %s301 = scalar_select %p300, %s20, 1
      %p302 = scmp.lt.s32.totalorder %s299, 6
      %s303 = scalar_select %p302, %s299, 6
      %s304 = smul.addr %s303, 35
      %s305 = smul.addr %s301, 245
      %s306 = sadd.s32 %s304, %s305
      %s307 = smul.addr %s306, 8
      %s308 = scalar_lea.vmem %s2, %s307
      %s309 = sadd.s32 %s21, 1
      %s310 = sadd.s32 %s21, 2
      %p311 = scmp.lt.s32.totalorder %s20, 1
      %s312 = scalar_select %p311, %s20, 1
      %p313 = scmp.lt.s32.totalorder %s310, 6
      %s314 = scalar_select %p313, %s310, 6
      %s315 = smul.addr %s314, 35
      %s316 = smul.addr %s312, 245
      %s317 = sadd.s32 %s315, %s316
      %s318 = smul.addr %s317, 8
      %s319 = scalar_lea.vmem %s3, %s318
      %s320 = sadd.s32 %s21, 2
      %s321 = smul.u32 5, %s22
      %p322 = scmp.lt.s32.totalorder %s20, 1
      %s323 = scalar_select %p322, %s20, 1
      %p324 = scmp.lt.s32.totalorder %s21, 4
      %s325 = scalar_select %p324, %s21, 4
      %p326 = scmp.lt.s32.totalorder %s321, 4
      %s327 = scalar_select %p326, %s321, 4
      %s328 = smul.addr %s327, 3
      %s329 = smul.addr %s325, 15
      %s330 = sadd.s32 %s328, %s329
      %s331 = smul.addr %s323, 75
      %s332 = sadd.s32 %s330, %s331
      %s333 = smul.addr %s332, 8
      %s334 = scalar_lea.vmem %s4, %s333
      %s335 = smul.u32 5, %s22
      %s336 = smul.u32 %s22, 5
      %v337 = vld [vmem:[%s0] ss:$8 sm:$0x7]
      %s338 = smul.u32 %s336, 5
      %s339 = smul.addr %s338, 8
      %s340 = scalar_lea.vmem %s298, %s339
      %v341 = vld [vmem:[%s340] sm:$0x1f]
      %v342 = vld [vmem:[%s340 + $0x8] sm:$0x1f]
      %v343 = vld [vmem:[%s340 + $0x10] sm:$0x1f]
      %v344 = vld [vmem:[%s340 + $0x28] sm:$0x1f]
      %v345 = vld [vmem:[%s340 + $0x30] sm:$0x1f]
      %v346 = vld [vmem:[%s340 + $0x38] sm:$0x1f]
      %v347 = vld [vmem:[%s340 + $0x50] sm:$0x1f]
      %v348 = vld [vmem:[%s340 + $0x58] sm:$0x1f]
      %v349 = vld [vmem:[%s340 + $0x60] sm:$0x1f]
      %v350 = vld [vmem:[%s340 + $0x78] sm:$0x1f]
      %v351 = vld [vmem:[%s340 + $0x80] sm:$0x1f]
      %v352 = vld [vmem:[%s340 + $0x88] sm:$0x1f]
      %v353 = vld [vmem:[%s340 + $0xa0] sm:$0x1f]
      %v354 = vld [vmem:[%s340 + $0xa8] sm:$0x1f]
      %v355 = vld [vmem:[%s340 + $0xb0] sm:$0x1f]
      %v357 = vperm.slane %v337, 0
      %v358 = vperm.slane %v337, 1
      %v359 = vperm.slane %v337, 2
      %v363 = vmul.f32 %v341, %v357
      %v364 = vmul.f32 %v342, %v358
      %v365 = vmul.f32 %v343, %v359
      %v366 = vmul.f32 %v344, %v357
      %v367 = vmul.f32 %v345, %v358
      %v368 = vmul.f32 %v346, %v359
      %v369 = vmul.f32 %v347, %v357
      %v370 = vmul.f32 %v348, %v358
      %v371 = vmul.f32 %v349, %v359
      %v372 = vmul.f32 %v350, %v357
      %v373 = vmul.f32 %v351, %v358
      %v374 = vmul.f32 %v352, %v359
      %v375 = vmul.f32 %v353, %v357
      %v376 = vmul.f32 %v354, %v358
      %v377 = vmul.f32 %v355, %v359
      %v378 = vadd.f32 %v363, 0.0
      %v379 = vadd.f32 %v364, 0.0
      %v380 = vadd.f32 %v365, 0.0
      %v381 = vadd.f32 %v366, 0.0
      %v382 = vadd.f32 %v367, 0.0
      %v383 = vadd.f32 %v368, 0.0
      %v384 = vadd.f32 %v369, 0.0
      %v385 = vadd.f32 %v370, 0.0
      %v386 = vadd.f32 %v371, 0.0
      %v387 = vadd.f32 %v372, 0.0
      %v388 = vadd.f32 %v373, 0.0
      %v389 = vadd.f32 %v374, 0.0
      %v390 = vadd.f32 %v375, 0.0
      %v391 = vadd.f32 %v376, 0.0
      %v392 = vadd.f32 %v377, 0.0
      %s393 = scalar_lea.vmem %s0, 1
      %v394 = vld [vmem:[%s393] ss:$8 sm:$0x7]
      %v395 = vld [vmem:[%s340 + $0x18] sm:$0x1f]
      %v396 = vld [vmem:[%s340 + $0x40] sm:$0x1f]
      %v397 = vld [vmem:[%s340 + $0x68] sm:$0x1f]
      %v398 = vld [vmem:[%s340 + $0x90] sm:$0x1f]
      %v399 = vld [vmem:[%s340 + $0xb8] sm:$0x1f]
      %v401 = vperm.slane %v394, 0
      %v402 = vperm.slane %v394, 1
      %v403 = vperm.slane %v394, 2
      %v407 = vmul.f32 %v342, %v401
      %v408 = vmul.f32 %v343, %v402
      %v409 = vmul.f32 %v395, %v403
      %v410 = vmul.f32 %v345, %v401
      %v411 = vmul.f32 %v346, %v402
      %v412 = vmul.f32 %v396, %v403
      %v413 = vmul.f32 %v348, %v401
      %v414 = vmul.f32 %v349, %v402
      %v415 = vmul.f32 %v397, %v403
      %v416 = vmul.f32 %v351, %v401
      %v417 = vmul.f32 %v352, %v402
      %v418 = vmul.f32 %v398, %v403
      %v419 = vmul.f32 %v354, %v401
      %v420 = vmul.f32 %v355, %v402
      %v421 = vmul.f32 %v399, %v403
      %v422 = vadd.f32 %v378, %v407
      %v423 = vadd.f32 %v379, %v408
      %v424 = vadd.f32 %v380, %v409
      %v425 = vadd.f32 %v381, %v410
      %v426 = vadd.f32 %v382, %v411
      %v427 = vadd.f32 %v383, %v412
      %v428 = vadd.f32 %v384, %v413
      %v429 = vadd.f32 %v385, %v414
      %v430 = vadd.f32 %v386, %v415
      %v431 = vadd.f32 %v387, %v416
      %v432 = vadd.f32 %v388, %v417
      %v433 = vadd.f32 %v389, %v418
      %v434 = vadd.f32 %v390, %v419
      %v435 = vadd.f32 %v391, %v420
      %v436 = vadd.f32 %v392, %v421
      %s437 = scalar_lea.vmem %s0, 2
      %v438 = vld [vmem:[%s437] ss:$8 sm:$0x7]
      %v439 = vld [vmem:[%s340 + $0x20] sm:$0x1f]
      %v440 = vld [vmem:[%s340 + $0x48] sm:$0x1f]
      %v441 = vld [vmem:[%s340 + $0x70] sm:$0x1f]
      %v442 = vld [vmem:[%s340 + $0x98] sm:$0x1f]
      %v443 = vld [vmem:[%s340 + $0xc0] sm:$0x1f]
      %v445 = vperm.slane %v438, 0
      %v446 = vperm.slane %v438, 1
      %v447 = vperm.slane %v438, 2
      %v451 = vmul.f32 %v343, %v445
      %v452 = vmul.f32 %v395, %v446
      %v453 = vmul.f32 %v439, %v447
      %v454 = vmul.f32 %v346, %v445
      %v455 = vmul.f32 %v396, %v446
      %v456 = vmul.f32 %v440, %v447
      %v457 = vmul.f32 %v349, %v445
      %v458 = vmul.f32 %v397, %v446
      %v459 = vmul.f32 %v441, %v447
      %v460 = vmul.f32 %v352, %v445
      %v461 = vmul.f32 %v398, %v446
      %v462 = vmul.f32 %v442, %v447
      %v463 = vmul.f32 %v355, %v445
      %v464 = vmul.f32 %v399, %v446
      %v465 = vmul.f32 %v443, %v447
      %v466 = vadd.f32 %v422, %v451
      %v467 = vadd.f32 %v423, %v452
      %v468 = vadd.f32 %v424, %v453
      %v469 = vadd.f32 %v425, %v454
      %v470 = vadd.f32 %v426, %v455
      %v471 = vadd.f32 %v427, %v456
      %v472 = vadd.f32 %v428, %v457
      %v473 = vadd.f32 %v429, %v458
      %v474 = vadd.f32 %v430, %v459
      %v475 = vadd.f32 %v431, %v460
      %v476 = vadd.f32 %v432, %v461
      %v477 = vadd.f32 %v433, %v462
      %v478 = vadd.f32 %v434, %v463
      %v479 = vadd.f32 %v435, %v464
      %v480 = vadd.f32 %v436, %v465
      %s481 = scalar_lea.vmem %s0, 3
      %v482 = vld [vmem:[%s481] ss:$8 sm:$0x7]
      %v483 = vld [vmem:[%s340] sm:$0x3e]
      %v484 = vld [vmem:[%s340 + $0x8] sm:$0x3e]
      %v485 = vld [vmem:[%s340 + $0x10] sm:$0x3e]
      %v486 = vld [vmem:[%s340 + $0x28] sm:$0x3e]
      %v487 = vld [vmem:[%s340 + $0x30] sm:$0x3e]
      %v488 = vld [vmem:[%s340 + $0x38] sm:$0x3e]
      %v489 = vld [vmem:[%s340 + $0x50] sm:$0x3e]
      %v490 = vld [vmem:[%s340 + $0x58] sm:$0x3e]
      %v491 = vld [vmem:[%s340 + $0x60] sm:$0x3e]
      %v492 = vld [vmem:[%s340 + $0x78] sm:$0x3e]
      %v493 = vld [vmem:[%s340 + $0x80] sm:$0x3e]
      %v494 = vld [vmem:[%s340 + $0x88] sm:$0x3e]
      %v495 = vld [vmem:[%s340 + $0xa0] sm:$0x3e]
      %v496 = vld [vmem:[%s340 + $0xa8] sm:$0x3e]
      %v497 = vld [vmem:[%s340 + $0xb0] sm:$0x3e]
      %v499 = vperm.slane %v482, 0
      %v500 = vperm.slane %v482, 1
      %v501 = vperm.slane %v482, 2
      %v505 = vmul.f32 %v483, %v499
      %v506 = vmul.f32 %v484, %v500
      %v507 = vmul.f32 %v485, %v501
      %v508 = vmul.f32 %v486, %v499
      %v509 = vmul.f32 %v487, %v500
      %v510 = vmul.f32 %v488, %v501
      %v511 = vmul.f32 %v489, %v499
      %v512 = vmul.f32 %v490, %v500
      %v513 = vmul.f32 %v491, %v501
      %v514 = vmul.f32 %v492, %v499
      %v515 = vmul.f32 %v493, %v500
      %v516 = vmul.f32 %v494, %v501
      %v517 = vmul.f32 %v495, %v499
      %v518 = vmul.f32 %v496, %v500
      %v519 = vmul.f32 %v497, %v501
      %v535 = vrot.slane %v505, 1
      %v536 = vrot.slane %v506, 1
      %v537 = vrot.slane %v507, 1
      %v538 = vrot.slane %v508, 1
      %v539 = vrot.slane %v509, 1
      %v540 = vrot.slane %v510, 1
      %v541 = vrot.slane %v511, 1
      %v542 = vrot.slane %v512, 1
      %v543 = vrot.slane %v513, 1
      %v544 = vrot.slane %v514, 1
      %v545 = vrot.slane %v515, 1
      %v546 = vrot.slane %v516, 1
      %v547 = vrot.slane %v517, 1
      %v548 = vrot.slane %v518, 1
      %v549 = vrot.slane %v519, 1
      %v565 = vadd.f32 %v466, %v535
      %v566 = vadd.f32 %v467, %v536
      %v567 = vadd.f32 %v468, %v537
      %v568 = vadd.f32 %v469, %v538
      %v569 = vadd.f32 %v470, %v539
      %v570 = vadd.f32 %v471, %v540
      %v571 = vadd.f32 %v472, %v541
      %v572 = vadd.f32 %v473, %v542
      %v573 = vadd.f32 %v474, %v543
      %v574 = vadd.f32 %v475, %v544
      %v575 = vadd.f32 %v476, %v545
      %v576 = vadd.f32 %v477, %v546
      %v577 = vadd.f32 %v478, %v547
      %v578 = vadd.f32 %v479, %v548
      %v579 = vadd.f32 %v480, %v549
      %s580 = scalar_lea.vmem %s0, 4
      %v581 = vld [vmem:[%s580] ss:$8 sm:$0x7]
      %v582 = vld [vmem:[%s340 + $0x18] sm:$0x3e]
      %v583 = vld [vmem:[%s340 + $0x40] sm:$0x3e]
      %v584 = vld [vmem:[%s340 + $0x68] sm:$0x3e]
      %v585 = vld [vmem:[%s340 + $0x90] sm:$0x3e]
      %v586 = vld [vmem:[%s340 + $0xb8] sm:$0x3e]
      %v588 = vperm.slane %v581, 0
      %v589 = vperm.slane %v581, 1
      %v590 = vperm.slane %v581, 2
      %v594 = vmul.f32 %v484, %v588
      %v595 = vmul.f32 %v485, %v589
      %v596 = vmul.f32 %v582, %v590
      %v597 = vmul.f32 %v487, %v588
      %v598 = vmul.f32 %v488, %v589
      %v599 = vmul.f32 %v583, %v590
      %v600 = vmul.f32 %v490, %v588
      %v601 = vmul.f32 %v491, %v589
      %v602 = vmul.f32 %v584, %v590
      %v603 = vmul.f32 %v493, %v588
      %v604 = vmul.f32 %v494, %v589
      %v605 = vmul.f32 %v585, %v590
      %v606 = vmul.f32 %v496, %v588
      %v607 = vmul.f32 %v497, %v589
      %v608 = vmul.f32 %v586, %v590
      %v624 = vrot.slane %v594, 1
      %v625 = vrot.slane %v595, 1
      %v626 = vrot.slane %v596, 1
      %v627 = vrot.slane %v597, 1
      %v628 = vrot.slane %v598, 1
      %v629 = vrot.slane %v599, 1
      %v630 = vrot.slane %v600, 1
      %v631 = vrot.slane %v601, 1
      %v632 = vrot.slane %v602, 1
      %v633 = vrot.slane %v603, 1
      %v634 = vrot.slane %v604, 1
      %v635 = vrot.slane %v605, 1
      %v636 = vrot.slane %v606, 1
      %v637 = vrot.slane %v607, 1
      %v638 = vrot.slane %v608, 1
      %v654 = vadd.f32 %v565, %v624
      %v655 = vadd.f32 %v566, %v625
      %v656 = vadd.f32 %v567, %v626
      %v657 = vadd.f32 %v568, %v627
      %v658 = vadd.f32 %v569, %v628
      %v659 = vadd.f32 %v570, %v629
      %v660 = vadd.f32 %v571, %v630
      %v661 = vadd.f32 %v572, %v631
      %v662 = vadd.f32 %v573, %v632
      %v663 = vadd.f32 %v574, %v633
      %v664 = vadd.f32 %v575, %v634
      %v665 = vadd.f32 %v576, %v635
      %v666 = vadd.f32 %v577, %v636
      %v667 = vadd.f32 %v578, %v637
      %v668 = vadd.f32 %v579, %v638
      %s669 = scalar_lea.vmem %s0, 5
      %v670 = vld [vmem:[%s669] ss:$8 sm:$0x7]
      %v671 = vld [vmem:[%s340 + $0x20] sm:$0x3e]
      %v672 = vld [vmem:[%s340 + $0x48] sm:$0x3e]
      %v673 = vld [vmem:[%s340 + $0x70] sm:$0x3e]
      %v674 = vld [vmem:[%s340 + $0x98] sm:$0x3e]
      %v675 = vld [vmem:[%s340 + $0xc0] sm:$0x3e]
      %v677 = vperm.slane %v670, 0
      %v678 = vperm.slane %v670, 1
      %v679 = vperm.slane %v670, 2
      %v683 = vmul.f32 %v485, %v677
      %v684 = vmul.f32 %v582, %v678
      %v685 = vmul.f32 %v671, %v679
      %v686 = vmul.f32 %v488, %v677
      %v687 = vmul.f32 %v583, %v678
      %v688 = vmul.f32 %v672, %v679
      %v689 = vmul.f32 %v491, %v677
      %v690 = vmul.f32 %v584, %v678
      %v691 = vmul.f32 %v673, %v679
      %v692 = vmul.f32 %v494, %v677
      %v693 = vmul.f32 %v585, %v678
      %v694 = vmul.f32 %v674, %v679
      %v695 = vmul.f32 %v497, %v677
      %v696 = vmul.f32 %v586, %v678
      %v697 = vmul.f32 %v675, %v679
      %v713 = vrot.slane %v683, 1
      %v714 = vrot.slane %v684, 1
      %v715 = vrot.slane %v685, 1
      %v716 = vrot.slane %v686, 1
      %v717 = vrot.slane %v687, 1
      %v718 = vrot.slane %v688, 1
      %v719 = vrot.slane %v689, 1
      %v720 = vrot.slane %v690, 1
      %v721 = vrot.slane %v691, 1
      %v722 = vrot.slane %v692, 1
      %v723 = vrot.slane %v693, 1
      %v724 = vrot.slane %v694, 1
      %v725 = vrot.slane %v695, 1
      %v726 = vrot.slane %v696, 1
      %v727 = vrot.slane %v697, 1
      %v743 = vadd.f32 %v654, %v713
      %v744 = vadd.f32 %v655, %v714
      %v745 = vadd.f32 %v656, %v715
      %v746 = vadd.f32 %v657, %v716
      %v747 = vadd.f32 %v658, %v717
      %v748 = vadd.f32 %v659, %v718
      %v749 = vadd.f32 %v660, %v719
      %v750 = vadd.f32 %v661, %v720
      %v751 = vadd.f32 %v662, %v721
      %v752 = vadd.f32 %v663, %v722
      %v753 = vadd.f32 %v664, %v723
      %v754 = vadd.f32 %v665, %v724
      %v755 = vadd.f32 %v666, %v725
      %v756 = vadd.f32 %v667, %v726
      %v757 = vadd.f32 %v668, %v727
      %s758 = scalar_lea.vmem %s0, 6
      %v759 = vld [vmem:[%s758] ss:$8 sm:$0x7]
      %v760 = vld [vmem:[%s340] sm:$0x7c]
      %v761 = vld [vmem:[%s340 + $0x8] sm:$0x7c]
      %v762 = vld [vmem:[%s340 + $0x10] sm:$0x7c]
      %v763 = vld [vmem:[%s340 + $0x28] sm:$0x7c]
      %v764 = vld [vmem:[%s340 + $0x30] sm:$0x7c]
      %v765 = vld [vmem:[%s340 + $0x38] sm:$0x7c]
      %v766 = vld [vmem:[%s340 + $0x50] sm:$0x7c]
      %v767 = vld [vmem:[%s340 + $0x58] sm:$0x7c]
      %v768 = vld [vmem:[%s340 + $0x60] sm:$0x7c]
      %v769 = vld [vmem:[%s340 + $0x78] sm:$0x7c]
      %v770 = vld [vmem:[%s340 + $0x80] sm:$0x7c]
      %v771 = vld [vmem:[%s340 + $0x88] sm:$0x7c]
      %v772 = vld [vmem:[%s340 + $0xa0] sm:$0x7c]
      %v773 = vld [vmem:[%s340 + $0xa8] sm:$0x7c]
      %v774 = vld [vmem:[%s340 + $0xb0] sm:$0x7c]
      %v776 = vperm.slane %v759, 0
      %v777 = vperm.slane %v759, 1
      %v778 = vperm.slane %v759, 2
      %v782 = vmul.f32 %v760, %v776
      %v783 = vmul.f32 %v761, %v777
      %v784 = vmul.f32 %v762, %v778
      %v785 = vmul.f32 %v763, %v776
      %v786 = vmul.f32 %v764, %v777
      %v787 = vmul.f32 %v765, %v778
      %v788 = vmul.f32 %v766, %v776
      %v789 = vmul.f32 %v767, %v777
      %v790 = vmul.f32 %v768, %v778
      %v791 = vmul.f32 %v769, %v776
      %v792 = vmul.f32 %v770, %v777
      %v793 = vmul.f32 %v771, %v778
      %v794 = vmul.f32 %v772, %v776
      %v795 = vmul.f32 %v773, %v777
      %v796 = vmul.f32 %v774, %v778
      %v812 = vrot.slane %v782, 2
      %v813 = vrot.slane %v783, 2
      %v814 = vrot.slane %v784, 2
      %v815 = vrot.slane %v785, 2
      %v816 = vrot.slane %v786, 2
      %v817 = vrot.slane %v787, 2
      %v818 = vrot.slane %v788, 2
      %v819 = vrot.slane %v789, 2
      %v820 = vrot.slane %v790, 2
      %v821 = vrot.slane %v791, 2
      %v822 = vrot.slane %v792, 2
      %v823 = vrot.slane %v793, 2
      %v824 = vrot.slane %v794, 2
      %v825 = vrot.slane %v795, 2
      %v826 = vrot.slane %v796, 2
      %v842 = vadd.f32 %v743, %v812
      %v843 = vadd.f32 %v744, %v813
      %v844 = vadd.f32 %v745, %v814
      %v845 = vadd.f32 %v746, %v815
      %v846 = vadd.f32 %v747, %v816
      %v847 = vadd.f32 %v748, %v817
      %v848 = vadd.f32 %v749, %v818
      %v849 = vadd.f32 %v750, %v819
      %v850 = vadd.f32 %v751, %v820
      %v851 = vadd.f32 %v752, %v821
      %v852 = vadd.f32 %v753, %v822
      %v853 = vadd.f32 %v754, %v823
      %v854 = vadd.f32 %v755, %v824
      %v855 = vadd.f32 %v756, %v825
      %v856 = vadd.f32 %v757, %v826
      %s857 = scalar_lea.vmem %s0, 7
      %v858 = vld [vmem:[%s857] ss:$8 sm:$0x7]
      %v859 = vld [vmem:[%s340 + $0x18] sm:$0x7c]
      %v860 = vld [vmem:[%s340 + $0x40] sm:$0x7c]
      %v861 = vld [vmem:[%s340 + $0x68] sm:$0x7c]
      %v862 = vld [vmem:[%s340 + $0x90] sm:$0x7c]
      %v863 = vld [vmem:[%s340 + $0xb8] sm:$0x7c]
      %v865 = vperm.slane %v858, 0
      %v866 = vperm.slane %v858, 1
      %v867 = vperm.slane %v858, 2
      %v871 = vmul.f32 %v761, %v865
      %v872 = vmul.f32 %v762, %v866
      %v873 = vmul.f32 %v859, %v867
      %v874 = vmul.f32 %v764, %v865
      %v875 = vmul.f32 %v765, %v866
      %v876 = vmul.f32 %v860, %v867
      %v877 = vmul.f32 %v767, %v865
      %v878 = vmul.f32 %v768, %v866
      %v879 = vmul.f32 %v861, %v867
      %v880 = vmul.f32 %v770, %v865
      %v881 = vmul.f32 %v771, %v866
      %v882 = vmul.f32 %v862, %v867
      %v883 = vmul.f32 %v773, %v865
      %v884 = vmul.f32 %v774, %v866
      %v885 = vmul.f32 %v863, %v867
      %v901 = vrot.slane %v871, 2
      %v902 = vrot.slane %v872, 2
      %v903 = vrot.slane %v873, 2
      %v904 = vrot.slane %v874, 2
      %v905 = vrot.slane %v875, 2
      %v906 = vrot.slane %v876, 2
      %v907 = vrot.slane %v877, 2
      %v908 = vrot.slane %v878, 2
      %v909 = vrot.slane %v879, 2
      %v910 = vrot.slane %v880, 2
      %v911 = vrot.slane %v881, 2
      %v912 = vrot.slane %v882, 2
      %v913 = vrot.slane %v883, 2
      %v914 = vrot.slane %v884, 2
      %v915 = vrot.slane %v885, 2
      %v931 = vadd.f32 %v842, %v901
      %v932 = vadd.f32 %v843, %v902
      %v933 = vadd.f32 %v844, %v903
      %v934 = vadd.f32 %v845, %v904
      %v935 = vadd.f32 %v846, %v905
      %v936 = vadd.f32 %v847, %v906
      %v937 = vadd.f32 %v848, %v907
      %v938 = vadd.f32 %v849, %v908
      %v939 = vadd.f32 %v850, %v909
      %v940 = vadd.f32 %v851, %v910
      %v941 = vadd.f32 %v852, %v911
      %v942 = vadd.f32 %v853, %v912
      %v943 = vadd.f32 %v854, %v913
      %v944 = vadd.f32 %v855, %v914
      %v945 = vadd.f32 %v856, %v915
      %s946 = scalar_lea.vmem %s0, 24
      %v947 = vld [vmem:[%s946] ss:$8 sm:$0x7]
      %v948 = vld [vmem:[%s340 + $0x20] sm:$0x7c]
      %v949 = vld [vmem:[%s340 + $0x48] sm:$0x7c]
      %v950 = vld [vmem:[%s340 + $0x70] sm:$0x7c]
      %v951 = vld [vmem:[%s340 + $0x98] sm:$0x7c]
      %v952 = vld [vmem:[%s340 + $0xc0] sm:$0x7c]
      %v954 = vperm.slane %v947, 0
      %v955 = vperm.slane %v947, 1
      %v956 = vperm.slane %v947, 2
      %v960 = vmul.f32 %v762, %v954
      %v961 = vmul.f32 %v859, %v955
      %v962 = vmul.f32 %v948, %v956
      %v963 = vmul.f32 %v765, %v954
      %v964 = vmul.f32 %v860, %v955
      %v965 = vmul.f32 %v949, %v956
      %v966 = vmul.f32 %v768, %v954
      %v967 = vmul.f32 %v861, %v955
      %v968 = vmul.f32 %v950, %v956
      %v969 = vmul.f32 %v771, %v954
      %v970 = vmul.f32 %v862, %v955
      %v971 = vmul.f32 %v951, %v956
      %v972 = vmul.f32 %v774, %v954
      %v973 = vmul.f32 %v863, %v955
      %v974 = vmul.f32 %v952, %v956
      %v990 = vrot.slane %v960, 2
      %v991 = vrot.slane %v961, 2
      %v992 = vrot.slane %v962, 2
      %v993 = vrot.slane %v963, 2
      %v994 = vrot.slane %v964, 2
      %v995 = vrot.slane %v965, 2
      %v996 = vrot.slane %v966, 2
      %v997 = vrot.slane %v967, 2
      %v998 = vrot.slane %v968, 2
      %v999 = vrot.slane %v969, 2
      %v1000 = vrot.slane %v970, 2
      %v1001 = vrot.slane %v971, 2
      %v1002 = vrot.slane %v972, 2
      %v1003 = vrot.slane %v973, 2
      %v1004 = vrot.slane %v974, 2
      %v1020 = vadd.f32 %v931, %v990
      %v1021 = vadd.f32 %v932, %v991
      %v1022 = vadd.f32 %v933, %v992
      %v1023 = vadd.f32 %v934, %v993
      %v1024 = vadd.f32 %v935, %v994
      %v1025 = vadd.f32 %v936, %v995
      %v1026 = vadd.f32 %v937, %v996
      %v1027 = vadd.f32 %v938, %v997
      %v1028 = vadd.f32 %v939, %v998
      %v1029 = vadd.f32 %v940, %v999
      %v1030 = vadd.f32 %v941, %v1000
      %v1031 = vadd.f32 %v942, %v1001
      %v1032 = vadd.f32 %v943, %v1002
      %v1033 = vadd.f32 %v944, %v1003
      %v1034 = vadd.f32 %v945, %v1004
      %s1035 = sadd.s32 %s336, 1
      %s1036 = scalar_lea.vmem %s0, 25
      %v1037 = vld [vmem:[%s1036] ss:$8 sm:$0x7]
      %s1038 = smul.u32 %s1035, 5
      %s1039 = smul.addr %s1038, 8
      %s1040 = scalar_lea.vmem %s298, %s1039
      %v1041 = vld [vmem:[%s1040] sm:$0x1f]
      %v1042 = vld [vmem:[%s1040 + $0x8] sm:$0x1f]
      %v1043 = vld [vmem:[%s1040 + $0x10] sm:$0x1f]
      %v1044 = vld [vmem:[%s1040 + $0x28] sm:$0x1f]
      %v1045 = vld [vmem:[%s1040 + $0x30] sm:$0x1f]
      %v1046 = vld [vmem:[%s1040 + $0x38] sm:$0x1f]
      %v1047 = vld [vmem:[%s1040 + $0x50] sm:$0x1f]
      %v1048 = vld [vmem:[%s1040 + $0x58] sm:$0x1f]
      %v1049 = vld [vmem:[%s1040 + $0x60] sm:$0x1f]
      %v1050 = vld [vmem:[%s1040 + $0x78] sm:$0x1f]
      %v1051 = vld [vmem:[%s1040 + $0x80] sm:$0x1f]
      %v1052 = vld [vmem:[%s1040 + $0x88] sm:$0x1f]
      %v1053 = vld [vmem:[%s1040 + $0xa0] sm:$0x1f]
      %v1054 = vld [vmem:[%s1040 + $0xa8] sm:$0x1f]
      %v1055 = vld [vmem:[%s1040 + $0xb0] sm:$0x1f]
      %v1057 = vperm.slane %v1037, 0
      %v1058 = vperm.slane %v1037, 1
      %v1059 = vperm.slane %v1037, 2
      %v1063 = vmul.f32 %v1041, %v1057
      %v1064 = vmul.f32 %v1042, %v1058
      %v1065 = vmul.f32 %v1043, %v1059
      %v1066 = vmul.f32 %v1044, %v1057
      %v1067 = vmul.f32 %v1045, %v1058
      %v1068 = vmul.f32 %v1046, %v1059
      %v1069 = vmul.f32 %v1047, %v1057
      %v1070 = vmul.f32 %v1048, %v1058
      %v1071 = vmul.f32 %v1049, %v1059
      %v1072 = vmul.f32 %v1050, %v1057
      %v1073 = vmul.f32 %v1051, %v1058
      %v1074 = vmul.f32 %v1052, %v1059
      %v1075 = vmul.f32 %v1053, %v1057
      %v1076 = vmul.f32 %v1054, %v1058
      %v1077 = vmul.f32 %v1055, %v1059
      %v1078 = vadd.f32 %v1020, %v1063
      %v1079 = vadd.f32 %v1021, %v1064
      %v1080 = vadd.f32 %v1022, %v1065
      %v1081 = vadd.f32 %v1023, %v1066
      %v1082 = vadd.f32 %v1024, %v1067
      %v1083 = vadd.f32 %v1025, %v1068
      %v1084 = vadd.f32 %v1026, %v1069
      %v1085 = vadd.f32 %v1027, %v1070
      %v1086 = vadd.f32 %v1028, %v1071
      %v1087 = vadd.f32 %v1029, %v1072
      %v1088 = vadd.f32 %v1030, %v1073
      %v1089 = vadd.f32 %v1031, %v1074
      %v1090 = vadd.f32 %v1032, %v1075
      %v1091 = vadd.f32 %v1033, %v1076
      %v1092 = vadd.f32 %v1034, %v1077
      %s1093 = scalar_lea.vmem %s0, 26
      %v1094 = vld [vmem:[%s1093] ss:$8 sm:$0x7]
      %v1095 = vld [vmem:[%s1040 + $0x18] sm:$0x1f]
      %v1096 = vld [vmem:[%s1040 + $0x40] sm:$0x1f]
      %v1097 = vld [vmem:[%s1040 + $0x68] sm:$0x1f]
      %v1098 = vld [vmem:[%s1040 + $0x90] sm:$0x1f]
      %v1099 = vld [vmem:[%s1040 + $0xb8] sm:$0x1f]
      %v1101 = vperm.slane %v1094, 0
      %v1102 = vperm.slane %v1094, 1
      %v1103 = vperm.slane %v1094, 2
      %v1107 = vmul.f32 %v1042, %v1101
      %v1108 = vmul.f32 %v1043, %v1102
      %v1109 = vmul.f32 %v1095, %v1103
      %v1110 = vmul.f32 %v1045, %v1101
      %v1111 = vmul.f32 %v1046, %v1102
      %v1112 = vmul.f32 %v1096, %v1103
      %v1113 = vmul.f32 %v1048, %v1101
      %v1114 = vmul.f32 %v1049, %v1102
      %v1115 = vmul.f32 %v1097, %v1103
      %v1116 = vmul.f32 %v1051, %v1101
      %v1117 = vmul.f32 %v1052, %v1102
      %v1118 = vmul.f32 %v1098, %v1103
      %v1119 = vmul.f32 %v1054, %v1101
      %v1120 = vmul.f32 %v1055, %v1102
      %v1121 = vmul.f32 %v1099, %v1103
      %v1122 = vadd.f32 %v1078, %v1107
      %v1123 = vadd.f32 %v1079, %v1108
      %v1124 = vadd.f32 %v1080, %v1109
      %v1125 = vadd.f32 %v1081, %v1110
      %v1126 = vadd.f32 %v1082, %v1111
      %v1127 = vadd.f32 %v1083, %v1112
      %v1128 = vadd.f32 %v1084, %v1113
      %v1129 = vadd.f32 %v1085, %v1114
      %v1130 = vadd.f32 %v1086, %v1115
      %v1131 = vadd.f32 %v1087, %v1116
      %v1132 = vadd.f32 %v1088, %v1117
      %v1133 = vadd.f32 %v1089, %v1118
      %v1134 = vadd.f32 %v1090, %v1119
      %v1135 = vadd.f32 %v1091, %v1120
      %v1136 = vadd.f32 %v1092, %v1121
      %s1137 = scalar_lea.vmem %s0, 27
      %v1138 = vld [vmem:[%s1137] ss:$8 sm:$0x7]
      %v1139 = vld [vmem:[%s1040 + $0x20] sm:$0x1f]
      %v1140 = vld [vmem:[%s1040 + $0x48] sm:$0x1f]
      %v1141 = vld [vmem:[%s1040 + $0x70] sm:$0x1f]
      %v1142 = vld [vmem:[%s1040 + $0x98] sm:$0x1f]
      %v1143 = vld [vmem:[%s1040 + $0xc0] sm:$0x1f]
      %v1145 = vperm.slane %v1138, 0
      %v1146 = vperm.slane %v1138, 1
      %v1147 = vperm.slane %v1138, 2
      %v1151 = vmul.f32 %v1043, %v1145
      %v1152 = vmul.f32 %v1095, %v1146
      %v1153 = vmul.f32 %v1139, %v1147
      %v1154 = vmul.f32 %v1046, %v1145
      %v1155 = vmul.f32 %v1096, %v1146
      %v1156 = vmul.f32 %v1140, %v1147
      %v1157 = vmul.f32 %v1049, %v1145
      %v1158 = vmul.f32 %v1097, %v1146
      %v1159 = vmul.f32 %v1141, %v1147
      %v1160 = vmul.f32 %v1052, %v1145
      %v1161 = vmul.f32 %v1098, %v1146
      %v1162 = vmul.f32 %v1142, %v1147
      %v1163 = vmul.f32 %v1055, %v1145
      %v1164 = vmul.f32 %v1099, %v1146
      %v1165 = vmul.f32 %v1143, %v1147
      %v1166 = vadd.f32 %v1122, %v1151
      %v1167 = vadd.f32 %v1123, %v1152
      %v1168 = vadd.f32 %v1124, %v1153
      %v1169 = vadd.f32 %v1125, %v1154
      %v1170 = vadd.f32 %v1126, %v1155
      %v1171 = vadd.f32 %v1127, %v1156
      %v1172 = vadd.f32 %v1128, %v1157
      %v1173 = vadd.f32 %v1129, %v1158
      %v1174 = vadd.f32 %v1130, %v1159
      %v1175 = vadd.f32 %v1131, %v1160
      %v1176 = vadd.f32 %v1132, %v1161
      %v1177 = vadd.f32 %v1133, %v1162
      %v1178 = vadd.f32 %v1134, %v1163
      %v1179 = vadd.f32 %v1135, %v1164
      %v1180 = vadd.f32 %v1136, %v1165
      %s1181 = scalar_lea.vmem %s0, 28
      %v1182 = vld [vmem:[%s1181] ss:$8 sm:$0x7]
      %v1183 = vld [vmem:[%s1040] sm:$0x3e]
      %v1184 = vld [vmem:[%s1040 + $0x8] sm:$0x3e]
      %v1185 = vld [vmem:[%s1040 + $0x10] sm:$0x3e]
      %v1186 = vld [vmem:[%s1040 + $0x28] sm:$0x3e]
      %v1187 = vld [vmem:[%s1040 + $0x30] sm:$0x3e]
      %v1188 = vld [vmem:[%s1040 + $0x38] sm:$0x3e]
      %v1189 = vld [vmem:[%s1040 + $0x50] sm:$0x3e]
      %v1190 = vld [vmem:[%s1040 + $0x58] sm:$0x3e]
      %v1191 = vld [vmem:[%s1040 + $0x60] sm:$0x3e]
      %v1192 = vld [vmem:[%s1040 + $0x78] sm:$0x3e]
      %v1193 = vld [vmem:[%s1040 + $0x80] sm:$0x3e]
      %v1194 = vld [vmem:[%s1040 + $0x88] sm:$0x3e]
      %v1195 = vld [vmem:[%s1040 + $0xa0] sm:$0x3e]
      %v1196 = vld [vmem:[%s1040 + $0xa8] sm:$0x3e]
      %v1197 = vld [vmem:[%s1040 + $0xb0] sm:$0x3e]
      %v1199 = vperm.slane %v1182, 0
      %v1200 = vperm.slane %v1182, 1
      %v1201 = vperm.slane %v1182, 2
      %v1205 = vmul.f32 %v1183, %v1199
      %v1206 = vmul.f32 %v1184, %v1200
      %v1207 = vmul.f32 %v1185, %v1201
      %v1208 = vmul.f32 %v1186, %v1199
      %v1209 = vmul.f32 %v1187, %v1200
      %v1210 = vmul.f32 %v1188, %v1201
      %v1211 = vmul.f32 %v1189, %v1199
      %v1212 = vmul.f32 %v1190, %v1200
      %v1213 = vmul.f32 %v1191, %v1201
      %v1214 = vmul.f32 %v1192, %v1199
      %v1215 = vmul.f32 %v1193, %v1200
      %v1216 = vmul.f32 %v1194, %v1201
      %v1217 = vmul.f32 %v1195, %v1199
      %v1218 = vmul.f32 %v1196, %v1200
      %v1219 = vmul.f32 %v1197, %v1201
      %v1235 = vrot.slane %v1205, 1
      %v1236 = vrot.slane %v1206, 1
      %v1237 = vrot.slane %v1207, 1
      %v1238 = vrot.slane %v1208, 1
      %v1239 = vrot.slane %v1209, 1
      %v1240 = vrot.slane %v1210, 1
      %v1241 = vrot.slane %v1211, 1
      %v1242 = vrot.slane %v1212, 1
      %v1243 = vrot.slane %v1213, 1
      %v1244 = vrot.slane %v1214, 1
      %v1245 = vrot.slane %v1215, 1
      %v1246 = vrot.slane %v1216, 1
      %v1247 = vrot.slane %v1217, 1
      %v1248 = vrot.slane %v1218, 1
      %v1249 = vrot.slane %v1219, 1
      %v1265 = vadd.f32 %v1166, %v1235
      %v1266 = vadd.f32 %v1167, %v1236
      %v1267 = vadd.f32 %v1168, %v1237
      %v1268 = vadd.f32 %v1169, %v1238
      %v1269 = vadd.f32 %v1170, %v1239
      %v1270 = vadd.f32 %v1171, %v1240
      %v1271 = vadd.f32 %v1172, %v1241
      %v1272 = vadd.f32 %v1173, %v1242
      %v1273 = vadd.f32 %v1174, %v1243
      %v1274 = vadd.f32 %v1175, %v1244
      %v1275 = vadd.f32 %v1176, %v1245
      %v1276 = vadd.f32 %v1177, %v1246
      %v1277 = vadd.f32 %v1178, %v1247
      %v1278 = vadd.f32 %v1179, %v1248
      %v1279 = vadd.f32 %v1180, %v1249
      %s1280 = scalar_lea.vmem %s0, 29
      %v1281 = vld [vmem:[%s1280] ss:$8 sm:$0x7]
      %v1282 = vld [vmem:[%s1040 + $0x18] sm:$0x3e]
      %v1283 = vld [vmem:[%s1040 + $0x40] sm:$0x3e]
      %v1284 = vld [vmem:[%s1040 + $0x68] sm:$0x3e]
      %v1285 = vld [vmem:[%s1040 + $0x90] sm:$0x3e]
      %v1286 = vld [vmem:[%s1040 + $0xb8] sm:$0x3e]
      %v1288 = vperm.slane %v1281, 0
      %v1289 = vperm.slane %v1281, 1
      %v1290 = vperm.slane %v1281, 2
      %v1294 = vmul.f32 %v1184, %v1288
      %v1295 = vmul.f32 %v1185, %v1289
      %v1296 = vmul.f32 %v1282, %v1290
      %v1297 = vmul.f32 %v1187, %v1288
      %v1298 = vmul.f32 %v1188, %v1289
      %v1299 = vmul.f32 %v1283, %v1290
      %v1300 = vmul.f32 %v1190, %v1288
      %v1301 = vmul.f32 %v1191, %v1289
      %v1302 = vmul.f32 %v1284, %v1290
      %v1303 = vmul.f32 %v1193, %v1288
      %v1304 = vmul.f32 %v1194, %v1289
      %v1305 = vmul.f32 %v1285, %v1290
      %v1306 = vmul.f32 %v1196, %v1288
      %v1307 = vmul.f32 %v1197, %v1289
      %v1308 = vmul.f32 %v1286, %v1290
      %v1324 = vrot.slane %v1294, 1
      %v1325 = vrot.slane %v1295, 1
      %v1326 = vrot.slane %v1296, 1
      %v1327 = vrot.slane %v1297, 1
      %v1328 = vrot.slane %v1298, 1
      %v1329 = vrot.slane %v1299, 1
      %v1330 = vrot.slane %v1300, 1
      %v1331 = vrot.slane %v1301, 1
      %v1332 = vrot.slane %v1302, 1
      %v1333 = vrot.slane %v1303, 1
      %v1334 = vrot.slane %v1304, 1
      %v1335 = vrot.slane %v1305, 1
      %v1336 = vrot.slane %v1306, 1
      %v1337 = vrot.slane %v1307, 1
      %v1338 = vrot.slane %v1308, 1
      %v1354 = vadd.f32 %v1265, %v1324
      %v1355 = vadd.f32 %v1266, %v1325
      %v1356 = vadd.f32 %v1267, %v1326
      %v1357 = vadd.f32 %v1268, %v1327
      %v1358 = vadd.f32 %v1269, %v1328
      %v1359 = vadd.f32 %v1270, %v1329
      %v1360 = vadd.f32 %v1271, %v1330
      %v1361 = vadd.f32 %v1272, %v1331
      %v1362 = vadd.f32 %v1273, %v1332
      %v1363 = vadd.f32 %v1274, %v1333
      %v1364 = vadd.f32 %v1275, %v1334
      %v1365 = vadd.f32 %v1276, %v1335
      %v1366 = vadd.f32 %v1277, %v1336
      %v1367 = vadd.f32 %v1278, %v1337
      %v1368 = vadd.f32 %v1279, %v1338
      %s1369 = scalar_lea.vmem %s0, 30
      %v1370 = vld [vmem:[%s1369] ss:$8 sm:$0x7]
      %v1371 = vld [vmem:[%s1040 + $0x20] sm:$0x3e]
      %v1372 = vld [vmem:[%s1040 + $0x48] sm:$0x3e]
      %v1373 = vld [vmem:[%s1040 + $0x70] sm:$0x3e]
      %v1374 = vld [vmem:[%s1040 + $0x98] sm:$0x3e]
      %v1375 = vld [vmem:[%s1040 + $0xc0] sm:$0x3e]
      %v1377 = vperm.slane %v1370, 0
      %v1378 = vperm.slane %v1370, 1
      %v1379 = vperm.slane %v1370, 2
      %v1383 = vmul.f32 %v1185, %v1377
      %v1384 = vmul.f32 %v1282, %v1378
      %v1385 = vmul.f32 %v1371, %v1379
      %v1386 = vmul.f32 %v1188, %v1377
      %v1387 = vmul.f32 %v1283, %v1378
      %v1388 = vmul.f32 %v1372, %v1379
      %v1389 = vmul.f32 %v1191, %v1377
      %v1390 = vmul.f32 %v1284, %v1378
      %v1391 = vmul.f32 %v1373, %v1379
      %v1392 = vmul.f32 %v1194, %v1377
      %v1393 = vmul.f32 %v1285, %v1378
      %v1394 = vmul.f32 %v1374, %v1379
      %v1395 = vmul.f32 %v1197, %v1377
      %v1396 = vmul.f32 %v1286, %v1378
      %v1397 = vmul.f32 %v1375, %v1379
      %v1413 = vrot.slane %v1383, 1
      %v1414 = vrot.slane %v1384, 1
      %v1415 = vrot.slane %v1385, 1
      %v1416 = vrot.slane %v1386, 1
      %v1417 = vrot.slane %v1387, 1
      %v1418 = vrot.slane %v1388, 1
      %v1419 = vrot.slane %v1389, 1
      %v1420 = vrot.slane %v1390, 1
      %v1421 = vrot.slane %v1391, 1
      %v1422 = vrot.slane %v1392, 1
      %v1423 = vrot.slane %v1393, 1
      %v1424 = vrot.slane %v1394, 1
      %v1425 = vrot.slane %v1395, 1
      %v1426 = vrot.slane %v1396, 1
      %v1427 = vrot.slane %v1397, 1
      %v1443 = vadd.f32 %v1354, %v1413
      %v1444 = vadd.f32 %v1355, %v1414
      %v1445 = vadd.f32 %v1356, %v1415
      %v1446 = vadd.f32 %v1357, %v1416
      %v1447 = vadd.f32 %v1358, %v1417
      %v1448 = vadd.f32 %v1359, %v1418
      %v1449 = vadd.f32 %v1360, %v1419
      %v1450 = vadd.f32 %v1361, %v1420
      %v1451 = vadd.f32 %v1362, %v1421
      %v1452 = vadd.f32 %v1363, %v1422
      %v1453 = vadd.f32 %v1364, %v1423
      %v1454 = vadd.f32 %v1365, %v1424
      %v1455 = vadd.f32 %v1366, %v1425
      %v1456 = vadd.f32 %v1367, %v1426
      %v1457 = vadd.f32 %v1368, %v1427
      %s1458 = scalar_lea.vmem %s0, 31
      %v1459 = vld [vmem:[%s1458] ss:$8 sm:$0x7]
      %v1460 = vld [vmem:[%s1040] sm:$0x7c]
      %v1461 = vld [vmem:[%s1040 + $0x8] sm:$0x7c]
      %v1462 = vld [vmem:[%s1040 + $0x10] sm:$0x7c]
      %v1463 = vld [vmem:[%s1040 + $0x28] sm:$0x7c]
      %v1464 = vld [vmem:[%s1040 + $0x30] sm:$0x7c]
      %v1465 = vld [vmem:[%s1040 + $0x38] sm:$0x7c]
      %v1466 = vld [vmem:[%s1040 + $0x50] sm:$0x7c]
      %v1467 = vld [vmem:[%s1040 + $0x58] sm:$0x7c]
      %v1468 = vld [vmem:[%s1040 + $0x60] sm:$0x7c]
      %v1469 = vld [vmem:[%s1040 + $0x78] sm:$0x7c]
      %v1470 = vld [vmem:[%s1040 + $0x80] sm:$0x7c]
      %v1471 = vld [vmem:[%s1040 + $0x88] sm:$0x7c]
      %v1472 = vld [vmem:[%s1040 + $0xa0] sm:$0x7c]
      %v1473 = vld [vmem:[%s1040 + $0xa8] sm:$0x7c]
      %v1474 = vld [vmem:[%s1040 + $0xb0] sm:$0x7c]
      %v1476 = vperm.slane %v1459, 0
      %v1477 = vperm.slane %v1459, 1
      %v1478 = vperm.slane %v1459, 2
      %v1482 = vmul.f32 %v1460, %v1476
      %v1483 = vmul.f32 %v1461, %v1477
      %v1484 = vmul.f32 %v1462, %v1478
      %v1485 = vmul.f32 %v1463, %v1476
      %v1486 = vmul.f32 %v1464, %v1477
      %v1487 = vmul.f32 %v1465, %v1478
      %v1488 = vmul.f32 %v1466, %v1476
      %v1489 = vmul.f32 %v1467, %v1477
      %v1490 = vmul.f32 %v1468, %v1478
      %v1491 = vmul.f32 %v1469, %v1476
      %v1492 = vmul.f32 %v1470, %v1477
      %v1493 = vmul.f32 %v1471, %v1478
      %v1494 = vmul.f32 %v1472, %v1476
      %v1495 = vmul.f32 %v1473, %v1477
      %v1496 = vmul.f32 %v1474, %v1478
      %v1512 = vrot.slane %v1482, 2
      %v1513 = vrot.slane %v1483, 2
      %v1514 = vrot.slane %v1484, 2
      %v1515 = vrot.slane %v1485, 2
      %v1516 = vrot.slane %v1486, 2
      %v1517 = vrot.slane %v1487, 2
      %v1518 = vrot.slane %v1488, 2
      %v1519 = vrot.slane %v1489, 2
      %v1520 = vrot.slane %v1490, 2
      %v1521 = vrot.slane %v1491, 2
      %v1522 = vrot.slane %v1492, 2
      %v1523 = vrot.slane %v1493, 2
      %v1524 = vrot.slane %v1494, 2
      %v1525 = vrot.slane %v1495, 2
      %v1526 = vrot.slane %v1496, 2
      %v1542 = vadd.f32 %v1443, %v1512
      %v1543 = vadd.f32 %v1444, %v1513
      %v1544 = vadd.f32 %v1445, %v1514
      %v1545 = vadd.f32 %v1446, %v1515
      %v1546 = vadd.f32 %v1447, %v1516
      %v1547 = vadd.f32 %v1448, %v1517
      %v1548 = vadd.f32 %v1449, %v1518
      %v1549 = vadd.f32 %v1450, %v1519
      %v1550 = vadd.f32 %v1451, %v1520
      %v1551 = vadd.f32 %v1452, %v1521
      %v1552 = vadd.f32 %v1453, %v1522
      %v1553 = vadd.f32 %v1454, %v1523
      %v1554 = vadd.f32 %v1455, %v1524
      %v1555 = vadd.f32 %v1456, %v1525
      %v1556 = vadd.f32 %v1457, %v1526
      %s1557 = scalar_lea.vmem %s0, 48
      %v1558 = vld [vmem:[%s1557] ss:$8 sm:$0x7]
      %v1559 = vld [vmem:[%s1040 + $0x18] sm:$0x7c]
      %v1560 = vld [vmem:[%s1040 + $0x40] sm:$0x7c]
      %v1561 = vld [vmem:[%s1040 + $0x68] sm:$0x7c]
      %v1562 = vld [vmem:[%s1040 + $0x90] sm:$0x7c]
      %v1563 = vld [vmem:[%s1040 + $0xb8] sm:$0x7c]
      %v1565 = vperm.slane %v1558, 0
      %v1566 = vperm.slane %v1558, 1
      %v1567 = vperm.slane %v1558, 2
      %v1571 = vmul.f32 %v1461, %v1565
      %v1572 = vmul.f32 %v1462, %v1566
      %v1573 = vmul.f32 %v1559, %v1567
      %v1574 = vmul.f32 %v1464, %v1565
      %v1575 = vmul.f32 %v1465, %v1566
      %v1576 = vmul.f32 %v1560, %v1567
      %v1577 = vmul.f32 %v1467, %v1565
      %v1578 = vmul.f32 %v1468, %v1566
      %v1579 = vmul.f32 %v1561, %v1567
      %v1580 = vmul.f32 %v1470, %v1565
      %v1581 = vmul.f32 %v1471, %v1566
      %v1582 = vmul.f32 %v1562, %v1567
      %v1583 = vmul.f32 %v1473, %v1565
      %v1584 = vmul.f32 %v1474, %v1566
      %v1585 = vmul.f32 %v1563, %v1567
      %v1601 = vrot.slane %v1571, 2
      %v1602 = vrot.slane %v1572, 2
      %v1603 = vrot.slane %v1573, 2
      %v1604 = vrot.slane %v1574, 2
      %v1605 = vrot.slane %v1575, 2
      %v1606 = vrot.slane %v1576, 2
      %v1607 = vrot.slane %v1577, 2
      %v1608 = vrot.slane %v1578, 2
      %v1609 = vrot.slane %v1579, 2
      %v1610 = vrot.slane %v1580, 2
      %v1611 = vrot.slane %v1581, 2
      %v1612 = vrot.slane %v1582, 2
      %v1613 = vrot.slane %v1583, 2
      %v1614 = vrot.slane %v1584, 2
      %v1615 = vrot.slane %v1585, 2
      %v1631 = vadd.f32 %v1542, %v1601
      %v1632 = vadd.f32 %v1543, %v1602
      %v1633 = vadd.f32 %v1544, %v1603
      %v1634 = vadd.f32 %v1545, %v1604
      %v1635 = vadd.f32 %v1546, %v1605
      %v1636 = vadd.f32 %v1547, %v1606
      %v1637 = vadd.f32 %v1548, %v1607
      %v1638 = vadd.f32 %v1549, %v1608
      %v1639 = vadd.f32 %v1550, %v1609
      %v1640 = vadd.f32 %v1551, %v1610
      %v1641 = vadd.f32 %v1552, %v1611
      %v1642 = vadd.f32 %v1553, %v1612
      %v1643 = vadd.f32 %v1554, %v1613
      %v1644 = vadd.f32 %v1555, %v1614
      %v1645 = vadd.f32 %v1556, %v1615
      %s1646 = scalar_lea.vmem %s0, 49
      %v1647 = vld [vmem:[%s1646] ss:$8 sm:$0x7]
      %v1648 = vld [vmem:[%s1040 + $0x20] sm:$0x7c]
      %v1649 = vld [vmem:[%s1040 + $0x48] sm:$0x7c]
      %v1650 = vld [vmem:[%s1040 + $0x70] sm:$0x7c]
      %v1651 = vld [vmem:[%s1040 + $0x98] sm:$0x7c]
      %v1652 = vld [vmem:[%s1040 + $0xc0] sm:$0x7c]
      %v1654 = vperm.slane %v1647, 0
      %v1655 = vperm.slane %v1647, 1
      %v1656 = vperm.slane %v1647, 2
      %v1660 = vmul.f32 %v1462, %v1654
      %v1661 = vmul.f32 %v1559, %v1655
      %v1662 = vmul.f32 %v1648, %v1656
      %v1663 = vmul.f32 %v1465, %v1654
      %v1664 = vmul.f32 %v1560, %v1655
      %v1665 = vmul.f32 %v1649, %v1656
      %v1666 = vmul.f32 %v1468, %v1654
      %v1667 = vmul.f32 %v1561, %v1655
      %v1668 = vmul.f32 %v1650, %v1656
      %v1669 = vmul.f32 %v1471, %v1654
      %v1670 = vmul.f32 %v1562, %v1655
      %v1671 = vmul.f32 %v1651, %v1656
      %v1672 = vmul.f32 %v1474, %v1654
      %v1673 = vmul.f32 %v1563, %v1655
      %v1674 = vmul.f32 %v1652, %v1656
      %v1690 = vrot.slane %v1660, 2
      %v1691 = vrot.slane %v1661, 2
      %v1692 = vrot.slane %v1662, 2
      %v1693 = vrot.slane %v1663, 2
      %v1694 = vrot.slane %v1664, 2
      %v1695 = vrot.slane %v1665, 2
      %v1696 = vrot.slane %v1666, 2
      %v1697 = vrot.slane %v1667, 2
      %v1698 = vrot.slane %v1668, 2
      %v1699 = vrot.slane %v1669, 2
      %v1700 = vrot.slane %v1670, 2
      %v1701 = vrot.slane %v1671, 2
      %v1702 = vrot.slane %v1672, 2
      %v1703 = vrot.slane %v1673, 2
      %v1704 = vrot.slane %v1674, 2
      %v1720 = vadd.f32 %v1631, %v1690
      %v1721 = vadd.f32 %v1632, %v1691
      %v1722 = vadd.f32 %v1633, %v1692
      %v1723 = vadd.f32 %v1634, %v1693
      %v1724 = vadd.f32 %v1635, %v1694
      %v1725 = vadd.f32 %v1636, %v1695
      %v1726 = vadd.f32 %v1637, %v1696
      %v1727 = vadd.f32 %v1638, %v1697
      %v1728 = vadd.f32 %v1639, %v1698
      %v1729 = vadd.f32 %v1640, %v1699
      %v1730 = vadd.f32 %v1641, %v1700
      %v1731 = vadd.f32 %v1642, %v1701
      %v1732 = vadd.f32 %v1643, %v1702
      %v1733 = vadd.f32 %v1644, %v1703
      %v1734 = vadd.f32 %v1645, %v1704
      %s1735 = sadd.s32 %s336, 2
      %s1736 = scalar_lea.vmem %s0, 50
      %v1737 = vld [vmem:[%s1736] ss:$8 sm:$0x7]
      %s1738 = smul.u32 %s1735, 5
      %s1739 = smul.addr %s1738, 8
      %s1740 = scalar_lea.vmem %s298, %s1739
      %v1741 = vld [vmem:[%s1740] sm:$0x1f]
      %v1742 = vld [vmem:[%s1740 + $0x8] sm:$0x1f]
      %v1743 = vld [vmem:[%s1740 + $0x10] sm:$0x1f]
      %v1744 = vld [vmem:[%s1740 + $0x28] sm:$0x1f]
      %v1745 = vld [vmem:[%s1740 + $0x30] sm:$0x1f]
      %v1746 = vld [vmem:[%s1740 + $0x38] sm:$0x1f]
      %v1747 = vld [vmem:[%s1740 + $0x50] sm:$0x1f]
      %v1748 = vld [vmem:[%s1740 + $0x58] sm:$0x1f]
      %v1749 = vld [vmem:[%s1740 + $0x60] sm:$0x1f]
      %v1750 = vld [vmem:[%s1740 + $0x78] sm:$0x1f]
      %v1751 = vld [vmem:[%s1740 + $0x80] sm:$0x1f]
      %v1752 = vld [vmem:[%s1740 + $0x88] sm:$0x1f]
      %v1753 = vld [vmem:[%s1740 + $0xa0] sm:$0x1f]
      %v1754 = vld [vmem:[%s1740 + $0xa8] sm:$0x1f]
      %v1755 = vld [vmem:[%s1740 + $0xb0] sm:$0x1f]
      %v1757 = vperm.slane %v1737, 0
      %v1758 = vperm.slane %v1737, 1
      %v1759 = vperm.slane %v1737, 2
      %v1763 = vmul.f32 %v1741, %v1757
      %v1764 = vmul.f32 %v1742, %v1758
      %v1765 = vmul.f32 %v1743, %v1759
      %v1766 = vmul.f32 %v1744, %v1757
      %v1767 = vmul.f32 %v1745, %v1758
      %v1768 = vmul.f32 %v1746, %v1759
      %v1769 = vmul.f32 %v1747, %v1757
      %v1770 = vmul.f32 %v1748, %v1758
      %v1771 = vmul.f32 %v1749, %v1759
      %v1772 = vmul.f32 %v1750, %v1757
      %v1773 = vmul.f32 %v1751, %v1758
      %v1774 = vmul.f32 %v1752, %v1759
      %v1775 = vmul.f32 %v1753, %v1757
      %v1776 = vmul.f32 %v1754, %v1758
      %v1777 = vmul.f32 %v1755, %v1759
      %v1778 = vadd.f32 %v1720, %v1763
      %v1779 = vadd.f32 %v1721, %v1764
      %v1780 = vadd.f32 %v1722, %v1765
      %v1781 = vadd.f32 %v1723, %v1766
      %v1782 = vadd.f32 %v1724, %v1767
      %v1783 = vadd.f32 %v1725, %v1768
      %v1784 = vadd.f32 %v1726, %v1769
      %v1785 = vadd.f32 %v1727, %v1770
      %v1786 = vadd.f32 %v1728, %v1771
      %v1787 = vadd.f32 %v1729, %v1772
      %v1788 = vadd.f32 %v1730, %v1773
      %v1789 = vadd.f32 %v1731, %v1774
      %v1790 = vadd.f32 %v1732, %v1775
      %v1791 = vadd.f32 %v1733, %v1776
      %v1792 = vadd.f32 %v1734, %v1777
      %s1793 = scalar_lea.vmem %s0, 51
      %v1794 = vld [vmem:[%s1793] ss:$8 sm:$0x7]
      %v1795 = vld [vmem:[%s1740 + $0x18] sm:$0x1f]
      %v1796 = vld [vmem:[%s1740 + $0x40] sm:$0x1f]
      %v1797 = vld [vmem:[%s1740 + $0x68] sm:$0x1f]
      %v1798 = vld [vmem:[%s1740 + $0x90] sm:$0x1f]
      %v1799 = vld [vmem:[%s1740 + $0xb8] sm:$0x1f]
      %v1801 = vperm.slane %v1794, 0
      %v1802 = vperm.slane %v1794, 1
      %v1803 = vperm.slane %v1794, 2
      %v1807 = vmul.f32 %v1742, %v1801
      %v1808 = vmul.f32 %v1743, %v1802
      %v1809 = vmul.f32 %v1795, %v1803
      %v1810 = vmul.f32 %v1745, %v1801
      %v1811 = vmul.f32 %v1746, %v1802
      %v1812 = vmul.f32 %v1796, %v1803
      %v1813 = vmul.f32 %v1748, %v1801
      %v1814 = vmul.f32 %v1749, %v1802
      %v1815 = vmul.f32 %v1797, %v1803
      %v1816 = vmul.f32 %v1751, %v1801
      %v1817 = vmul.f32 %v1752, %v1802
      %v1818 = vmul.f32 %v1798, %v1803
      %v1819 = vmul.f32 %v1754, %v1801
      %v1820 = vmul.f32 %v1755, %v1802
      %v1821 = vmul.f32 %v1799, %v1803
      %v1822 = vadd.f32 %v1778, %v1807
      %v1823 = vadd.f32 %v1779, %v1808
      %v1824 = vadd.f32 %v1780, %v1809
      %v1825 = vadd.f32 %v1781, %v1810
      %v1826 = vadd.f32 %v1782, %v1811
      %v1827 = vadd.f32 %v1783, %v1812
      %v1828 = vadd.f32 %v1784, %v1813
      %v1829 = vadd.f32 %v1785, %v1814
      %v1830 = vadd.f32 %v1786, %v1815
      %v1831 = vadd.f32 %v1787, %v1816
      %v1832 = vadd.f32 %v1788, %v1817
      %v1833 = vadd.f32 %v1789, %v1818
      %v1834 = vadd.f32 %v1790, %v1819
      %v1835 = vadd.f32 %v1791, %v1820
      %v1836 = vadd.f32 %v1792, %v1821
      %s1837 = scalar_lea.vmem %s0, 52
      %v1838 = vld [vmem:[%s1837] ss:$8 sm:$0x7]
      %v1839 = vld [vmem:[%s1740 + $0x20] sm:$0x1f]
      %v1840 = vld [vmem:[%s1740 + $0x48] sm:$0x1f]
      %v1841 = vld [vmem:[%s1740 + $0x70] sm:$0x1f]
      %v1842 = vld [vmem:[%s1740 + $0x98] sm:$0x1f]
      %v1843 = vld [vmem:[%s1740 + $0xc0] sm:$0x1f]
      %v1845 = vperm.slane %v1838, 0
      %v1846 = vperm.slane %v1838, 1
      %v1847 = vperm.slane %v1838, 2
      %v1851 = vmul.f32 %v1743, %v1845
      %v1852 = vmul.f32 %v1795, %v1846
      %v1853 = vmul.f32 %v1839, %v1847
      %v1854 = vmul.f32 %v1746, %v1845
      %v1855 = vmul.f32 %v1796, %v1846
      %v1856 = vmul.f32 %v1840, %v1847
      %v1857 = vmul.f32 %v1749, %v1845
      %v1858 = vmul.f32 %v1797, %v1846
      %v1859 = vmul.f32 %v1841, %v1847
      %v1860 = vmul.f32 %v1752, %v1845
      %v1861 = vmul.f32 %v1798, %v1846
      %v1862 = vmul.f32 %v1842, %v1847
      %v1863 = vmul.f32 %v1755, %v1845
      %v1864 = vmul.f32 %v1799, %v1846
      %v1865 = vmul.f32 %v1843, %v1847
      %v1866 = vadd.f32 %v1822, %v1851
      %v1867 = vadd.f32 %v1823, %v1852
      %v1868 = vadd.f32 %v1824, %v1853
      %v1869 = vadd.f32 %v1825, %v1854
      %v1870 = vadd.f32 %v1826, %v1855
      %v1871 = vadd.f32 %v1827, %v1856
      %v1872 = vadd.f32 %v1828, %v1857
      %v1873 = vadd.f32 %v1829, %v1858
      %v1874 = vadd.f32 %v1830, %v1859
      %v1875 = vadd.f32 %v1831, %v1860
      %v1876 = vadd.f32 %v1832, %v1861
      %v1877 = vadd.f32 %v1833, %v1862
      %v1878 = vadd.f32 %v1834, %v1863
      %v1879 = vadd.f32 %v1835, %v1864
      %v1880 = vadd.f32 %v1836, %v1865
      %s1881 = scalar_lea.vmem %s0, 53
      %v1882 = vld [vmem:[%s1881] ss:$8 sm:$0x7]
      %v1883 = vld [vmem:[%s1740] sm:$0x3e]
      %v1884 = vld [vmem:[%s1740 + $0x8] sm:$0x3e]
      %v1885 = vld [vmem:[%s1740 + $0x10] sm:$0x3e]
      %v1886 = vld [vmem:[%s1740 + $0x28] sm:$0x3e]
      %v1887 = vld [vmem:[%s1740 + $0x30] sm:$0x3e]
      %v1888 = vld [vmem:[%s1740 + $0x38] sm:$0x3e]
      %v1889 = vld [vmem:[%s1740 + $0x50] sm:$0x3e]
      %v1890 = vld [vmem:[%s1740 + $0x58] sm:$0x3e]
      %v1891 = vld [vmem:[%s1740 + $0x60] sm:$0x3e]
      %v1892 = vld [vmem:[%s1740 + $0x78] sm:$0x3e]
      %v1893 = vld [vmem:[%s1740 + $0x80] sm:$0x3e]
      %v1894 = vld [vmem:[%s1740 + $0x88] sm:$0x3e]
      %v1895 = vld [vmem:[%s1740 + $0xa0] sm:$0x3e]
      %v1896 = vld [vmem:[%s1740 + $0xa8] sm:$0x3e]
      %v1897 = vld [vmem:[%s1740 + $0xb0] sm:$0x3e]
      %v1899 = vperm.slane %v1882, 0
      %v1900 = vperm.slane %v1882, 1
      %v1901 = vperm.slane %v1882, 2
      %v1905 = vmul.f32 %v1883, %v1899
      %v1906 = vmul.f32 %v1884, %v1900
      %v1907 = vmul.f32 %v1885, %v1901
      %v1908 = vmul.f32 %v1886, %v1899
      %v1909 = vmul.f32 %v1887, %v1900
      %v1910 = vmul.f32 %v1888, %v1901
      %v1911 = vmul.f32 %v1889, %v1899
      %v1912 = vmul.f32 %v1890, %v1900
      %v1913 = vmul.f32 %v1891, %v1901
      %v1914 = vmul.f32 %v1892, %v1899
      %v1915 = vmul.f32 %v1893, %v1900
      %v1916 = vmul.f32 %v1894, %v1901
      %v1917 = vmul.f32 %v1895, %v1899
      %v1918 = vmul.f32 %v1896, %v1900
      %v1919 = vmul.f32 %v1897, %v1901
      %v1935 = vrot.slane %v1905, 1
      %v1936 = vrot.slane %v1906, 1
      %v1937 = vrot.slane %v1907, 1
      %v1938 = vrot.slane %v1908, 1
      %v1939 = vrot.slane %v1909, 1
      %v1940 = vrot.slane %v1910, 1
      %v1941 = vrot.slane %v1911, 1
      %v1942 = vrot.slane %v1912, 1
      %v1943 = vrot.slane %v1913, 1
      %v1944 = vrot.slane %v1914, 1
      %v1945 = vrot.slane %v1915, 1
      %v1946 = vrot.slane %v1916, 1
      %v1947 = vrot.slane %v1917, 1
      %v1948 = vrot.slane %v1918, 1
      %v1949 = vrot.slane %v1919, 1
      %v1965 = vadd.f32 %v1866, %v1935
      %v1966 = vadd.f32 %v1867, %v1936
      %v1967 = vadd.f32 %v1868, %v1937
      %v1968 = vadd.f32 %v1869, %v1938
      %v1969 = vadd.f32 %v1870, %v1939
      %v1970 = vadd.f32 %v1871, %v1940
      %v1971 = vadd.f32 %v1872, %v1941
      %v1972 = vadd.f32 %v1873, %v1942
      %v1973 = vadd.f32 %v1874, %v1943
      %v1974 = vadd.f32 %v1875, %v1944
      %v1975 = vadd.f32 %v1876, %v1945
      %v1976 = vadd.f32 %v1877, %v1946
      %v1977 = vadd.f32 %v1878, %v1947
      %v1978 = vadd.f32 %v1879, %v1948
      %v1979 = vadd.f32 %v1880, %v1949
      %s1980 = scalar_lea.vmem %s0, 54
      %v1981 = vld [vmem:[%s1980] ss:$8 sm:$0x7]
      %v1982 = vld [vmem:[%s1740 + $0x18] sm:$0x3e]
      %v1983 = vld [vmem:[%s1740 + $0x40] sm:$0x3e]
      %v1984 = vld [vmem:[%s1740 + $0x68] sm:$0x3e]
      %v1985 = vld [vmem:[%s1740 + $0x90] sm:$0x3e]
      %v1986 = vld [vmem:[%s1740 + $0xb8] sm:$0x3e]
      %v1988 = vperm.slane %v1981, 0
      %v1989 = vperm.slane %v1981, 1
      %v1990 = vperm.slane %v1981, 2
      %v1994 = vmul.f32 %v1884, %v1988
      %v1995 = vmul.f32 %v1885, %v1989
      %v1996 = vmul.f32 %v1982, %v1990
      %v1997 = vmul.f32 %v1887, %v1988
      %v1998 = vmul.f32 %v1888, %v1989
      %v1999 = vmul.f32 %v1983, %v1990
      %v2000 = vmul.f32 %v1890, %v1988
      %v2001 = vmul.f32 %v1891, %v1989
      %v2002 = vmul.f32 %v1984, %v1990
      %v2003 = vmul.f32 %v1893, %v1988
      %v2004 = vmul.f32 %v1894, %v1989
      %v2005 = vmul.f32 %v1985, %v1990
      %v2006 = vmul.f32 %v1896, %v1988
      %v2007 = vmul.f32 %v1897, %v1989
      %v2008 = vmul.f32 %v1986, %v1990
      %v2024 = vrot.slane %v1994, 1
      %v2025 = vrot.slane %v1995, 1
      %v2026 = vrot.slane %v1996, 1
      %v2027 = vrot.slane %v1997, 1
      %v2028 = vrot.slane %v1998, 1
      %v2029 = vrot.slane %v1999, 1
      %v2030 = vrot.slane %v2000, 1
      %v2031 = vrot.slane %v2001, 1
      %v2032 = vrot.slane %v2002, 1
      %v2033 = vrot.slane %v2003, 1
      %v2034 = vrot.slane %v2004, 1
      %v2035 = vrot.slane %v2005, 1
      %v2036 = vrot.slane %v2006, 1
      %v2037 = vrot.slane %v2007, 1
      %v2038 = vrot.slane %v2008, 1
      %v2054 = vadd.f32 %v1965, %v2024
      %v2055 = vadd.f32 %v1966, %v2025
      %v2056 = vadd.f32 %v1967, %v2026
      %v2057 = vadd.f32 %v1968, %v2027
      %v2058 = vadd.f32 %v1969, %v2028
      %v2059 = vadd.f32 %v1970, %v2029
      %v2060 = vadd.f32 %v1971, %v2030
      %v2061 = vadd.f32 %v1972, %v2031
      %v2062 = vadd.f32 %v1973, %v2032
      %v2063 = vadd.f32 %v1974, %v2033
      %v2064 = vadd.f32 %v1975, %v2034
      %v2065 = vadd.f32 %v1976, %v2035
      %v2066 = vadd.f32 %v1977, %v2036
      %v2067 = vadd.f32 %v1978, %v2037
      %v2068 = vadd.f32 %v1979, %v2038
      %s2069 = scalar_lea.vmem %s0, 55
      %v2070 = vld [vmem:[%s2069] ss:$8 sm:$0x7]
      %v2071 = vld [vmem:[%s1740 + $0x20] sm:$0x3e]
      %v2072 = vld [vmem:[%s1740 + $0x48] sm:$0x3e]
      %v2073 = vld [vmem:[%s1740 + $0x70] sm:$0x3e]
      %v2074 = vld [vmem:[%s1740 + $0x98] sm:$0x3e]
      %v2075 = vld [vmem:[%s1740 + $0xc0] sm:$0x3e]
      %v2077 = vperm.slane %v2070, 0
      %v2078 = vperm.slane %v2070, 1
      %v2079 = vperm.slane %v2070, 2
      %v2083 = vmul.f32 %v1885, %v2077
      %v2084 = vmul.f32 %v1982, %v2078
      %v2085 = vmul.f32 %v2071, %v2079
      %v2086 = vmul.f32 %v1888, %v2077
      %v2087 = vmul.f32 %v1983, %v2078
      %v2088 = vmul.f32 %v2072, %v2079
      %v2089 = vmul.f32 %v1891, %v2077
      %v2090 = vmul.f32 %v1984, %v2078
      %v2091 = vmul.f32 %v2073, %v2079
      %v2092 = vmul.f32 %v1894, %v2077
      %v2093 = vmul.f32 %v1985, %v2078
      %v2094 = vmul.f32 %v2074, %v2079
      %v2095 = vmul.f32 %v1897, %v2077
      %v2096 = vmul.f32 %v1986, %v2078
      %v2097 = vmul.f32 %v2075, %v2079
      %v2113 = vrot.slane %v2083, 1
      %v2114 = vrot.slane %v2084, 1
      %v2115 = vrot.slane %v2085, 1
      %v2116 = vrot.slane %v2086, 1
      %v2117 = vrot.slane %v2087, 1
      %v2118 = vrot.slane %v2088, 1
      %v2119 = vrot.slane %v2089, 1
      %v2120 = vrot.slane %v2090, 1
      %v2121 = vrot.slane %v2091, 1
      %v2122 = vrot.slane %v2092, 1
      %v2123 = vrot.slane %v2093, 1
      %v2124 = vrot.slane %v2094, 1
      %v2125 = vrot.slane %v2095, 1
      %v2126 = vrot.slane %v2096, 1
      %v2127 = vrot.slane %v2097, 1
      %v2143 = vadd.f32 %v2054, %v2113
      %v2144 = vadd.f32 %v2055, %v2114
      %v2145 = vadd.f32 %v2056, %v2115
      %v2146 = vadd.f32 %v2057, %v2116
      %v2147 = vadd.f32 %v2058, %v2117
      %v2148 = vadd.f32 %v2059, %v2118
      %v2149 = vadd.f32 %v2060, %v2119
      %v2150 = vadd.f32 %v2061, %v2120
      %v2151 = vadd.f32 %v2062, %v2121
      %v2152 = vadd.f32 %v2063, %v2122
      %v2153 = vadd.f32 %v2064, %v2123
      %v2154 = vadd.f32 %v2065, %v2124
      %v2155 = vadd.f32 %v2066, %v2125
      %v2156 = vadd.f32 %v2067, %v2126
      %v2157 = vadd.f32 %v2068, %v2127
      %s2158 = scalar_lea.vmem %s0, 72
      %v2159 = vld [vmem:[%s2158] ss:$8 sm:$0x7]
      %v2160 = vld [vmem:[%s1740] sm:$0x7c]
      %v2161 = vld [vmem:[%s1740 + $0x8] sm:$0x7c]
      %v2162 = vld [vmem:[%s1740 + $0x10] sm:$0x7c]
      %v2163 = vld [vmem:[%s1740 + $0x28] sm:$0x7c]
      %v2164 = vld [vmem:[%s1740 + $0x30] sm:$0x7c]
      %v2165 = vld [vmem:[%s1740 + $0x38] sm:$0x7c]
      %v2166 = vld [vmem:[%s1740 + $0x50] sm:$0x7c]
      %v2167 = vld [vmem:[%s1740 + $0x58] sm:$0x7c]
      %v2168 = vld [vmem:[%s1740 + $0x60] sm:$0x7c]
      %v2169 = vld [vmem:[%s1740 + $0x78] sm:$0x7c]
      %v2170 = vld [vmem:[%s1740 + $0x80] sm:$0x7c]
      %v2171 = vld [vmem:[%s1740 + $0x88] sm:$0x7c]
      %v2172 = vld [vmem:[%s1740 + $0xa0] sm:$0x7c]
      %v2173 = vld [vmem:[%s1740 + $0xa8] sm:$0x7c]
      %v2174 = vld [vmem:[%s1740 + $0xb0] sm:$0x7c]
      %v2176 = vperm.slane %v2159, 0
      %v2177 = vperm.slane %v2159, 1
      %v2178 = vperm.slane %v2159, 2
      %v2182 = vmul.f32 %v2160, %v2176
      %v2183 = vmul.f32 %v2161, %v2177
      %v2184 = vmul.f32 %v2162, %v2178
      %v2185 = vmul.f32 %v2163, %v2176
      %v2186 = vmul.f32 %v2164, %v2177
      %v2187 = vmul.f32 %v2165, %v2178
      %v2188 = vmul.f32 %v2166, %v2176
      %v2189 = vmul.f32 %v2167, %v2177
      %v2190 = vmul.f32 %v2168, %v2178
      %v2191 = vmul.f32 %v2169, %v2176
      %v2192 = vmul.f32 %v2170, %v2177
      %v2193 = vmul.f32 %v2171, %v2178
      %v2194 = vmul.f32 %v2172, %v2176
      %v2195 = vmul.f32 %v2173, %v2177
      %v2196 = vmul.f32 %v2174, %v2178
      %v2212 = vrot.slane %v2182, 2
      %v2213 = vrot.slane %v2183, 2
      %v2214 = vrot.slane %v2184, 2
      %v2215 = vrot.slane %v2185, 2
      %v2216 = vrot.slane %v2186, 2
      %v2217 = vrot.slane %v2187, 2
      %v2218 = vrot.slane %v2188, 2
      %v2219 = vrot.slane %v2189, 2
      %v2220 = vrot.slane %v2190, 2
      %v2221 = vrot.slane %v2191, 2
      %v2222 = vrot.slane %v2192, 2
      %v2223 = vrot.slane %v2193, 2
      %v2224 = vrot.slane %v2194, 2
      %v2225 = vrot.slane %v2195, 2
      %v2226 = vrot.slane %v2196, 2
      %v2242 = vadd.f32 %v2143, %v2212
      %v2243 = vadd.f32 %v2144, %v2213
      %v2244 = vadd.f32 %v2145, %v2214
      %v2245 = vadd.f32 %v2146, %v2215
      %v2246 = vadd.f32 %v2147, %v2216
      %v2247 = vadd.f32 %v2148, %v2217
      %v2248 = vadd.f32 %v2149, %v2218
      %v2249 = vadd.f32 %v2150, %v2219
      %v2250 = vadd.f32 %v2151, %v2220
      %v2251 = vadd.f32 %v2152, %v2221
      %v2252 = vadd.f32 %v2153, %v2222
      %v2253 = vadd.f32 %v2154, %v2223
      %v2254 = vadd.f32 %v2155, %v2224
      %v2255 = vadd.f32 %v2156, %v2225
      %v2256 = vadd.f32 %v2157, %v2226
      %s2257 = scalar_lea.vmem %s0, 73
      %v2258 = vld [vmem:[%s2257] ss:$8 sm:$0x7]
      %v2259 = vld [vmem:[%s1740 + $0x18] sm:$0x7c]
      %v2260 = vld [vmem:[%s1740 + $0x40] sm:$0x7c]
      %v2261 = vld [vmem:[%s1740 + $0x68] sm:$0x7c]
      %v2262 = vld [vmem:[%s1740 + $0x90] sm:$0x7c]
      %v2263 = vld [vmem:[%s1740 + $0xb8] sm:$0x7c]
      %v2265 = vperm.slane %v2258, 0
      %v2266 = vperm.slane %v2258, 1
      %v2267 = vperm.slane %v2258, 2
      %v2271 = vmul.f32 %v2161, %v2265
      %v2272 = vmul.f32 %v2162, %v2266
      %v2273 = vmul.f32 %v2259, %v2267
      %v2274 = vmul.f32 %v2164, %v2265
      %v2275 = vmul.f32 %v2165, %v2266
      %v2276 = vmul.f32 %v2260, %v2267
      %v2277 = vmul.f32 %v2167, %v2265
      %v2278 = vmul.f32 %v2168, %v2266
      %v2279 = vmul.f32 %v2261, %v2267
      %v2280 = vmul.f32 %v2170, %v2265
      %v2281 = vmul.f32 %v2171, %v2266
      %v2282 = vmul.f32 %v2262, %v2267
      %v2283 = vmul.f32 %v2173, %v2265
      %v2284 = vmul.f32 %v2174, %v2266
      %v2285 = vmul.f32 %v2263, %v2267
      %v2301 = vrot.slane %v2271, 2
      %v2302 = vrot.slane %v2272, 2
      %v2303 = vrot.slane %v2273, 2
      %v2304 = vrot.slane %v2274, 2
      %v2305 = vrot.slane %v2275, 2
      %v2306 = vrot.slane %v2276, 2
      %v2307 = vrot.slane %v2277, 2
      %v2308 = vrot.slane %v2278, 2
      %v2309 = vrot.slane %v2279, 2
      %v2310 = vrot.slane %v2280, 2
      %v2311 = vrot.slane %v2281, 2
      %v2312 = vrot.slane %v2282, 2
      %v2313 = vrot.slane %v2283, 2
      %v2314 = vrot.slane %v2284, 2
      %v2315 = vrot.slane %v2285, 2
      %v2331 = vadd.f32 %v2242, %v2301
      %v2332 = vadd.f32 %v2243, %v2302
      %v2333 = vadd.f32 %v2244, %v2303
      %v2334 = vadd.f32 %v2245, %v2304
      %v2335 = vadd.f32 %v2246, %v2305
      %v2336 = vadd.f32 %v2247, %v2306
      %v2337 = vadd.f32 %v2248, %v2307
      %v2338 = vadd.f32 %v2249, %v2308
      %v2339 = vadd.f32 %v2250, %v2309
      %v2340 = vadd.f32 %v2251, %v2310
      %v2341 = vadd.f32 %v2252, %v2311
      %v2342 = vadd.f32 %v2253, %v2312
      %v2343 = vadd.f32 %v2254, %v2313
      %v2344 = vadd.f32 %v2255, %v2314
      %v2345 = vadd.f32 %v2256, %v2315
      %s2346 = scalar_lea.vmem %s0, 74
      %v2347 = vld [vmem:[%s2346] ss:$8 sm:$0x7]
      %v2348 = vld [vmem:[%s1740 + $0x20] sm:$0x7c]
      %v2349 = vld [vmem:[%s1740 + $0x48] sm:$0x7c]
      %v2350 = vld [vmem:[%s1740 + $0x70] sm:$0x7c]
      %v2351 = vld [vmem:[%s1740 + $0x98] sm:$0x7c]
      %v2352 = vld [vmem:[%s1740 + $0xc0] sm:$0x7c]
      %v2354 = vperm.slane %v2347, 0
      %v2355 = vperm.slane %v2347, 1
      %v2356 = vperm.slane %v2347, 2
      %v2360 = vmul.f32 %v2162, %v2354
      %v2361 = vmul.f32 %v2259, %v2355
      %v2362 = vmul.f32 %v2348, %v2356
      %v2363 = vmul.f32 %v2165, %v2354
      %v2364 = vmul.f32 %v2260, %v2355
      %v2365 = vmul.f32 %v2349, %v2356
      %v2366 = vmul.f32 %v2168, %v2354
      %v2367 = vmul.f32 %v2261, %v2355
      %v2368 = vmul.f32 %v2350, %v2356
      %v2369 = vmul.f32 %v2171, %v2354
      %v2370 = vmul.f32 %v2262, %v2355
      %v2371 = vmul.f32 %v2351, %v2356
      %v2372 = vmul.f32 %v2174, %v2354
      %v2373 = vmul.f32 %v2263, %v2355
      %v2374 = vmul.f32 %v2352, %v2356
      %v2390 = vrot.slane %v2360, 2
      %v2391 = vrot.slane %v2361, 2
      %v2392 = vrot.slane %v2362, 2
      %v2393 = vrot.slane %v2363, 2
      %v2394 = vrot.slane %v2364, 2
      %v2395 = vrot.slane %v2365, 2
      %v2396 = vrot.slane %v2366, 2
      %v2397 = vrot.slane %v2367, 2
      %v2398 = vrot.slane %v2368, 2
      %v2399 = vrot.slane %v2369, 2
      %v2400 = vrot.slane %v2370, 2
      %v2401 = vrot.slane %v2371, 2
      %v2402 = vrot.slane %v2372, 2
      %v2403 = vrot.slane %v2373, 2
      %v2404 = vrot.slane %v2374, 2
      %v2420 = vadd.f32 %v2331, %v2390
      %v2421 = vadd.f32 %v2332, %v2391
      %v2422 = vadd.f32 %v2333, %v2392
      %v2423 = vadd.f32 %v2334, %v2393
      %v2424 = vadd.f32 %v2335, %v2394
      %v2425 = vadd.f32 %v2336, %v2395
      %v2426 = vadd.f32 %v2337, %v2396
      %v2427 = vadd.f32 %v2338, %v2397
      %v2428 = vadd.f32 %v2339, %v2398
      %v2429 = vadd.f32 %v2340, %v2399
      %v2430 = vadd.f32 %v2341, %v2400
      %v2431 = vadd.f32 %v2342, %v2401
      %v2432 = vadd.f32 %v2343, %v2402
      %v2433 = vadd.f32 %v2344, %v2403
      %v2434 = vadd.f32 %v2345, %v2404
      %s2435 = scalar_lea.vmem %s0, 75
      %v2436 = vld [vmem:[%s2435] ss:$8 sm:$0x7]
      %s2437 = smul.addr %s338, 8
      %s2438 = scalar_lea.vmem %s308, %s2437
      %v2439 = vld [vmem:[%s2438] sm:$0x1f]
      %v2440 = vld [vmem:[%s2438 + $0x8] sm:$0x1f]
      %v2441 = vld [vmem:[%s2438 + $0x10] sm:$0x1f]
      %v2442 = vld [vmem:[%s2438 + $0x28] sm:$0x1f]
      %v2443 = vld [vmem:[%s2438 + $0x30] sm:$0x1f]
      %v2444 = vld [vmem:[%s2438 + $0x38] sm:$0x1f]
      %v2445 = vld [vmem:[%s2438 + $0x50] sm:$0x1f]
      %v2446 = vld [vmem:[%s2438 + $0x58] sm:$0x1f]
      %v2447 = vld [vmem:[%s2438 + $0x60] sm:$0x1f]
      %v2448 = vld [vmem:[%s2438 + $0x78] sm:$0x1f]
      %v2449 = vld [vmem:[%s2438 + $0x80] sm:$0x1f]
      %v2450 = vld [vmem:[%s2438 + $0x88] sm:$0x1f]
      %v2451 = vld [vmem:[%s2438 + $0xa0] sm:$0x1f]
      %v2452 = vld [vmem:[%s2438 + $0xa8] sm:$0x1f]
      %v2453 = vld [vmem:[%s2438 + $0xb0] sm:$0x1f]
      %v2455 = vperm.slane %v2436, 0
      %v2456 = vperm.slane %v2436, 1
      %v2457 = vperm.slane %v2436, 2
      %v2461 = vmul.f32 %v2439, %v2455
      %v2462 = vmul.f32 %v2440, %v2456
      %v2463 = vmul.f32 %v2441, %v2457
      %v2464 = vmul.f32 %v2442, %v2455
      %v2465 = vmul.f32 %v2443, %v2456
      %v2466 = vmul.f32 %v2444, %v2457
      %v2467 = vmul.f32 %v2445, %v2455
      %v2468 = vmul.f32 %v2446, %v2456
      %v2469 = vmul.f32 %v2447, %v2457
      %v2470 = vmul.f32 %v2448, %v2455
      %v2471 = vmul.f32 %v2449, %v2456
      %v2472 = vmul.f32 %v2450, %v2457
      %v2473 = vmul.f32 %v2451, %v2455
      %v2474 = vmul.f32 %v2452, %v2456
      %v2475 = vmul.f32 %v2453, %v2457
      %v2476 = vadd.f32 %v2420, %v2461
      %v2477 = vadd.f32 %v2421, %v2462
      %v2478 = vadd.f32 %v2422, %v2463
      %v2479 = vadd.f32 %v2423, %v2464
      %v2480 = vadd.f32 %v2424, %v2465
      %v2481 = vadd.f32 %v2425, %v2466
      %v2482 = vadd.f32 %v2426, %v2467
      %v2483 = vadd.f32 %v2427, %v2468
      %v2484 = vadd.f32 %v2428, %v2469
      %v2485 = vadd.f32 %v2429, %v2470
      %v2486 = vadd.f32 %v2430, %v2471
      %v2487 = vadd.f32 %v2431, %v2472
      %v2488 = vadd.f32 %v2432, %v2473
      %v2489 = vadd.f32 %v2433, %v2474
      %v2490 = vadd.f32 %v2434, %v2475
      %s2491 = scalar_lea.vmem %s0, 76
      %v2492 = vld [vmem:[%s2491] ss:$8 sm:$0x7]
      %v2493 = vld [vmem:[%s2438 + $0x18] sm:$0x1f]
      %v2494 = vld [vmem:[%s2438 + $0x40] sm:$0x1f]
      %v2495 = vld [vmem:[%s2438 + $0x68] sm:$0x1f]
      %v2496 = vld [vmem:[%s2438 + $0x90] sm:$0x1f]
      %v2497 = vld [vmem:[%s2438 + $0xb8] sm:$0x1f]
      %v2499 = vperm.slane %v2492, 0
      %v2500 = vperm.slane %v2492, 1
      %v2501 = vperm.slane %v2492, 2
      %v2505 = vmul.f32 %v2440, %v2499
      %v2506 = vmul.f32 %v2441, %v2500
      %v2507 = vmul.f32 %v2493, %v2501
      %v2508 = vmul.f32 %v2443, %v2499
      %v2509 = vmul.f32 %v2444, %v2500
      %v2510 = vmul.f32 %v2494, %v2501
      %v2511 = vmul.f32 %v2446, %v2499
      %v2512 = vmul.f32 %v2447, %v2500
      %v2513 = vmul.f32 %v2495, %v2501
      %v2514 = vmul.f32 %v2449, %v2499
      %v2515 = vmul.f32 %v2450, %v2500
      %v2516 = vmul.f32 %v2496, %v2501
      %v2517 = vmul.f32 %v2452, %v2499
      %v2518 = vmul.f32 %v2453, %v2500
      %v2519 = vmul.f32 %v2497, %v2501
      %v2520 = vadd.f32 %v2476, %v2505
      %v2521 = vadd.f32 %v2477, %v2506
      %v2522 = vadd.f32 %v2478, %v2507
      %v2523 = vadd.f32 %v2479, %v2508
      %v2524 = vadd.f32 %v2480, %v2509
      %v2525 = vadd.f32 %v2481, %v2510
      %v2526 = vadd.f32 %v2482, %v2511
      %v2527 = vadd.f32 %v2483, %v2512
      %v2528 = vadd.f32 %v2484, %v2513
      %v2529 = vadd.f32 %v2485, %v2514
      %v2530 = vadd.f32 %v2486, %v2515
      %v2531 = vadd.f32 %v2487, %v2516
      %v2532 = vadd.f32 %v2488, %v2517
      %v2533 = vadd.f32 %v2489, %v2518
      %v2534 = vadd.f32 %v2490, %v2519
      %s2535 = scalar_lea.vmem %s0, 77
      %v2536 = vld [vmem:[%s2535] ss:$8 sm:$0x7]
      %v2537 = vld [vmem:[%s2438 + $0x20] sm:$0x1f]
      %v2538 = vld [vmem:[%s2438 + $0x48] sm:$0x1f]
      %v2539 = vld [vmem:[%s2438 + $0x70] sm:$0x1f]
      %v2540 = vld [vmem:[%s2438 + $0x98] sm:$0x1f]
      %v2541 = vld [vmem:[%s2438 + $0xc0] sm:$0x1f]
      %v2543 = vperm.slane %v2536, 0
      %v2544 = vperm.slane %v2536, 1
      %v2545 = vperm.slane %v2536, 2
      %v2549 = vmul.f32 %v2441, %v2543
      %v2550 = vmul.f32 %v2493, %v2544
      %v2551 = vmul.f32 %v2537, %v2545
      %v2552 = vmul.f32 %v2444, %v2543
      %v2553 = vmul.f32 %v2494, %v2544
      %v2554 = vmul.f32 %v2538, %v2545
      %v2555 = vmul.f32 %v2447, %v2543
      %v2556 = vmul.f32 %v2495, %v2544
      %v2557 = vmul.f32 %v2539, %v2545
      %v2558 = vmul.f32 %v2450, %v2543
      %v2559 = vmul.f32 %v2496, %v2544
      %v2560 = vmul.f32 %v2540, %v2545
      %v2561 = vmul.f32 %v2453, %v2543
      %v2562 = vmul.f32 %v2497, %v2544
      %v2563 = vmul.f32 %v2541, %v2545
      %v2564 = vadd.f32 %v2520, %v2549
      %v2565 = vadd.f32 %v2521, %v2550
      %v2566 = vadd.f32 %v2522, %v2551
      %v2567 = vadd.f32 %v2523, %v2552
      %v2568 = vadd.f32 %v2524, %v2553
      %v2569 = vadd.f32 %v2525, %v2554
      %v2570 = vadd.f32 %v2526, %v2555
      %v2571 = vadd.f32 %v2527, %v2556
      %v2572 = vadd.f32 %v2528, %v2557
      %v2573 = vadd.f32 %v2529, %v2558
      %v2574 = vadd.f32 %v2530, %v2559
      %v2575 = vadd.f32 %v2531, %v2560
      %v2576 = vadd.f32 %v2532, %v2561
      %v2577 = vadd.f32 %v2533, %v2562
      %v2578 = vadd.f32 %v2534, %v2563
      %s2579 = scalar_lea.vmem %s0, 78
      %v2580 = vld [vmem:[%s2579] ss:$8 sm:$0x7]
      %v2581 = vld [vmem:[%s2438] sm:$0x3e]
      %v2582 = vld [vmem:[%s2438 + $0x8] sm:$0x3e]
      %v2583 = vld [vmem:[%s2438 + $0x10] sm:$0x3e]
      %v2584 = vld [vmem:[%s2438 + $0x28] sm:$0x3e]
      %v2585 = vld [vmem:[%s2438 + $0x30] sm:$0x3e]
      %v2586 = vld [vmem:[%s2438 + $0x38] sm:$0x3e]
      %v2587 = vld [vmem:[%s2438 + $0x50] sm:$0x3e]
      %v2588 = vld [vmem:[%s2438 + $0x58] sm:$0x3e]
      %v2589 = vld [vmem:[%s2438 + $0x60] sm:$0x3e]
      %v2590 = vld [vmem:[%s2438 + $0x78] sm:$0x3e]
      %v2591 = vld [vmem:[%s2438 + $0x80] sm:$0x3e]
      %v2592 = vld [vmem:[%s2438 + $0x88] sm:$0x3e]
      %v2593 = vld [vmem:[%s2438 + $0xa0] sm:$0x3e]
      %v2594 = vld [vmem:[%s2438 + $0xa8] sm:$0x3e]
      %v2595 = vld [vmem:[%s2438 + $0xb0] sm:$0x3e]
      %v2597 = vperm.slane %v2580, 0
      %v2598 = vperm.slane %v2580, 1
      %v2599 = vperm.slane %v2580, 2
      %v2603 = vmul.f32 %v2581, %v2597
      %v2604 = vmul.f32 %v2582, %v2598
      %v2605 = vmul.f32 %v2583, %v2599
      %v2606 = vmul.f32 %v2584, %v2597
      %v2607 = vmul.f32 %v2585, %v2598
      %v2608 = vmul.f32 %v2586, %v2599
      %v2609 = vmul.f32 %v2587, %v2597
      %v2610 = vmul.f32 %v2588, %v2598
      %v2611 = vmul.f32 %v2589, %v2599
      %v2612 = vmul.f32 %v2590, %v2597
      %v2613 = vmul.f32 %v2591, %v2598
      %v2614 = vmul.f32 %v2592, %v2599
      %v2615 = vmul.f32 %v2593, %v2597
      %v2616 = vmul.f32 %v2594, %v2598
      %v2617 = vmul.f32 %v2595, %v2599
      %v2633 = vrot.slane %v2603, 1
      %v2634 = vrot.slane %v2604, 1
      %v2635 = vrot.slane %v2605, 1
      %v2636 = vrot.slane %v2606, 1
      %v2637 = vrot.slane %v2607, 1
      %v2638 = vrot.slane %v2608, 1
      %v2639 = vrot.slane %v2609, 1
      %v2640 = vrot.slane %v2610, 1
      %v2641 = vrot.slane %v2611, 1
      %v2642 = vrot.slane %v2612, 1
      %v2643 = vrot.slane %v2613, 1
      %v2644 = vrot.slane %v2614, 1
      %v2645 = vrot.slane %v2615, 1
      %v2646 = vrot.slane %v2616, 1
      %v2647 = vrot.slane %v2617, 1
      %v2663 = vadd.f32 %v2564, %v2633
      %v2664 = vadd.f32 %v2565, %v2634
      %v2665 = vadd.f32 %v2566, %v2635
      %v2666 = vadd.f32 %v2567, %v2636
      %v2667 = vadd.f32 %v2568, %v2637
      %v2668 = vadd.f32 %v2569, %v2638
      %v2669 = vadd.f32 %v2570, %v2639
      %v2670 = vadd.f32 %v2571, %v2640
      %v2671 = vadd.f32 %v2572, %v2641
      %v2672 = vadd.f32 %v2573, %v2642
      %v2673 = vadd.f32 %v2574, %v2643
      %v2674 = vadd.f32 %v2575, %v2644
      %v2675 = vadd.f32 %v2576, %v2645
      %v2676 = vadd.f32 %v2577, %v2646
      %v2677 = vadd.f32 %v2578, %v2647
      %s2678 = scalar_lea.vmem %s0, 79
      %v2679 = vld [vmem:[%s2678] ss:$8 sm:$0x7]
      %v2680 = vld [vmem:[%s2438 + $0x18] sm:$0x3e]
      %v2681 = vld [vmem:[%s2438 + $0x40] sm:$0x3e]
      %v2682 = vld [vmem:[%s2438 + $0x68] sm:$0x3e]
      %v2683 = vld [vmem:[%s2438 + $0x90] sm:$0x3e]
      %v2684 = vld [vmem:[%s2438 + $0xb8] sm:$0x3e]
      %v2686 = vperm.slane %v2679, 0
      %v2687 = vperm.slane %v2679, 1
      %v2688 = vperm.slane %v2679, 2
      %v2692 = vmul.f32 %v2582, %v2686
      %v2693 = vmul.f32 %v2583, %v2687
      %v2694 = vmul.f32 %v2680, %v2688
      %v2695 = vmul.f32 %v2585, %v2686
      %v2696 = vmul.f32 %v2586, %v2687
      %v2697 = vmul.f32 %v2681, %v2688
      %v2698 = vmul.f32 %v2588, %v2686
      %v2699 = vmul.f32 %v2589, %v2687
      %v2700 = vmul.f32 %v2682, %v2688
      %v2701 = vmul.f32 %v2591, %v2686
      %v2702 = vmul.f32 %v2592, %v2687
      %v2703 = vmul.f32 %v2683, %v2688
      %v2704 = vmul.f32 %v2594, %v2686
      %v2705 = vmul.f32 %v2595, %v2687
      %v2706 = vmul.f32 %v2684, %v2688
      %v2722 = vrot.slane %v2692, 1
      %v2723 = vrot.slane %v2693, 1
      %v2724 = vrot.slane %v2694, 1
      %v2725 = vrot.slane %v2695, 1
      %v2726 = vrot.slane %v2696, 1
      %v2727 = vrot.slane %v2697, 1
      %v2728 = vrot.slane %v2698, 1
      %v2729 = vrot.slane %v2699, 1
      %v2730 = vrot.slane %v2700, 1
      %v2731 = vrot.slane %v2701, 1
      %v2732 = vrot.slane %v2702, 1
      %v2733 = vrot.slane %v2703, 1
      %v2734 = vrot.slane %v2704, 1
      %v2735 = vrot.slane %v2705, 1
      %v2736 = vrot.slane %v2706, 1
      %v2752 = vadd.f32 %v2663, %v2722
      %v2753 = vadd.f32 %v2664, %v2723
      %v2754 = vadd.f32 %v2665, %v2724
      %v2755 = vadd.f32 %v2666, %v2725
      %v2756 = vadd.f32 %v2667, %v2726
      %v2757 = vadd.f32 %v2668, %v2727
      %v2758 = vadd.f32 %v2669, %v2728
      %v2759 = vadd.f32 %v2670, %v2729
      %v2760 = vadd.f32 %v2671, %v2730
      %v2761 = vadd.f32 %v2672, %v2731
      %v2762 = vadd.f32 %v2673, %v2732
      %v2763 = vadd.f32 %v2674, %v2733
      %v2764 = vadd.f32 %v2675, %v2734
      %v2765 = vadd.f32 %v2676, %v2735
      %v2766 = vadd.f32 %v2677, %v2736
      %s2767 = scalar_lea.vmem %s0, 96
      %v2768 = vld [vmem:[%s2767] ss:$8 sm:$0x7]
      %v2769 = vld [vmem:[%s2438 + $0x20] sm:$0x3e]
      %v2770 = vld [vmem:[%s2438 + $0x48] sm:$0x3e]
      %v2771 = vld [vmem:[%s2438 + $0x70] sm:$0x3e]
      %v2772 = vld [vmem:[%s2438 + $0x98] sm:$0x3e]
      %v2773 = vld [vmem:[%s2438 + $0xc0] sm:$0x3e]
      %v2775 = vperm.slane %v2768, 0
      %v2776 = vperm.slane %v2768, 1
      %v2777 = vperm.slane %v2768, 2
      %v2781 = vmul.f32 %v2583, %v2775
      %v2782 = vmul.f32 %v2680, %v2776
      %v2783 = vmul.f32 %v2769, %v2777
      %v2784 = vmul.f32 %v2586, %v2775
      %v2785 = vmul.f32 %v2681, %v2776
      %v2786 = vmul.f32 %v2770, %v2777
      %v2787 = vmul.f32 %v2589, %v2775
      %v2788 = vmul.f32 %v2682, %v2776
      %v2789 = vmul.f32 %v2771, %v2777
      %v2790 = vmul.f32 %v2592, %v2775
      %v2791 = vmul.f32 %v2683, %v2776
      %v2792 = vmul.f32 %v2772, %v2777
      %v2793 = vmul.f32 %v2595, %v2775
      %v2794 = vmul.f32 %v2684, %v2776
      %v2795 = vmul.f32 %v2773, %v2777
      %v2811 = vrot.slane %v2781, 1
      %v2812 = vrot.slane %v2782, 1
      %v2813 = vrot.slane %v2783, 1
      %v2814 = vrot.slane %v2784, 1
      %v2815 = vrot.slane %v2785, 1
      %v2816 = vrot.slane %v2786, 1
      %v2817 = vrot.slane %v2787, 1
      %v2818 = vrot.slane %v2788, 1
      %v2819 = vrot.slane %v2789, 1
      %v2820 = vrot.slane %v2790, 1
      %v2821 = vrot.slane %v2791, 1
      %v2822 = vrot.slane %v2792, 1
      %v2823 = vrot.slane %v2793, 1
      %v2824 = vrot.slane %v2794, 1
      %v2825 = vrot.slane %v2795, 1
      %v2841 = vadd.f32 %v2752, %v2811
      %v2842 = vadd.f32 %v2753, %v2812
      %v2843 = vadd.f32 %v2754, %v2813
      %v2844 = vadd.f32 %v2755, %v2814
      %v2845 = vadd.f32 %v2756, %v2815
      %v2846 = vadd.f32 %v2757, %v2816
      %v2847 = vadd.f32 %v2758, %v2817
      %v2848 = vadd.f32 %v2759, %v2818
      %v2849 = vadd.f32 %v2760, %v2819
      %v2850 = vadd.f32 %v2761, %v2820
      %v2851 = vadd.f32 %v2762, %v2821
      %v2852 = vadd.f32 %v2763, %v2822
      %v2853 = vadd.f32 %v2764, %v2823
      %v2854 = vadd.f32 %v2765, %v2824
      %v2855 = vadd.f32 %v2766, %v2825
      %s2856 = scalar_lea.vmem %s0, 97
      %v2857 = vld [vmem:[%s2856] ss:$8 sm:$0x7]
      %v2858 = vld [vmem:[%s2438] sm:$0x7c]
      %v2859 = vld [vmem:[%s2438 + $0x8] sm:$0x7c]
      %v2860 = vld [vmem:[%s2438 + $0x10] sm:$0x7c]
      %v2861 = vld [vmem:[%s2438 + $0x28] sm:$0x7c]
      %v2862 = vld [vmem:[%s2438 + $0x30] sm:$0x7c]
      %v2863 = vld [vmem:[%s2438 + $0x38] sm:$0x7c]
      %v2864 = vld [vmem:[%s2438 + $0x50] sm:$0x7c]
      %v2865 = vld [vmem:[%s2438 + $0x58] sm:$0x7c]
      %v2866 = vld [vmem:[%s2438 + $0x60] sm:$0x7c]
      %v2867 = vld [vmem:[%s2438 + $0x78] sm:$0x7c]
      %v2868 = vld [vmem:[%s2438 + $0x80] sm:$0x7c]
      %v2869 = vld [vmem:[%s2438 + $0x88] sm:$0x7c]
      %v2870 = vld [vmem:[%s2438 + $0xa0] sm:$0x7c]
      %v2871 = vld [vmem:[%s2438 + $0xa8] sm:$0x7c]
      %v2872 = vld [vmem:[%s2438 + $0xb0] sm:$0x7c]
      %v2874 = vperm.slane %v2857, 0
      %v2875 = vperm.slane %v2857, 1
      %v2876 = vperm.slane %v2857, 2
      %v2880 = vmul.f32 %v2858, %v2874
      %v2881 = vmul.f32 %v2859, %v2875
      %v2882 = vmul.f32 %v2860, %v2876
      %v2883 = vmul.f32 %v2861, %v2874
      %v2884 = vmul.f32 %v2862, %v2875
      %v2885 = vmul.f32 %v2863, %v2876
      %v2886 = vmul.f32 %v2864, %v2874
      %v2887 = vmul.f32 %v2865, %v2875
      %v2888 = vmul.f32 %v2866, %v2876
      %v2889 = vmul.f32 %v2867, %v2874
      %v2890 = vmul.f32 %v2868, %v2875
      %v2891 = vmul.f32 %v2869, %v2876
      %v2892 = vmul.f32 %v2870, %v2874
      %v2893 = vmul.f32 %v2871, %v2875
      %v2894 = vmul.f32 %v2872, %v2876
      %v2910 = vrot.slane %v2880, 2
      %v2911 = vrot.slane %v2881, 2
      %v2912 = vrot.slane %v2882, 2
      %v2913 = vrot.slane %v2883, 2
      %v2914 = vrot.slane %v2884, 2
      %v2915 = vrot.slane %v2885, 2
      %v2916 = vrot.slane %v2886, 2
      %v2917 = vrot.slane %v2887, 2
      %v2918 = vrot.slane %v2888, 2
      %v2919 = vrot.slane %v2889, 2
      %v2920 = vrot.slane %v2890, 2
      %v2921 = vrot.slane %v2891, 2
      %v2922 = vrot.slane %v2892, 2
      %v2923 = vrot.slane %v2893, 2
      %v2924 = vrot.slane %v2894, 2
      %v2940 = vadd.f32 %v2841, %v2910
      %v2941 = vadd.f32 %v2842, %v2911
      %v2942 = vadd.f32 %v2843, %v2912
      %v2943 = vadd.f32 %v2844, %v2913
      %v2944 = vadd.f32 %v2845, %v2914
      %v2945 = vadd.f32 %v2846, %v2915
      %v2946 = vadd.f32 %v2847, %v2916
      %v2947 = vadd.f32 %v2848, %v2917
      %v2948 = vadd.f32 %v2849, %v2918
      %v2949 = vadd.f32 %v2850, %v2919
      %v2950 = vadd.f32 %v2851, %v2920
      %v2951 = vadd.f32 %v2852, %v2921
      %v2952 = vadd.f32 %v2853, %v2922
      %v2953 = vadd.f32 %v2854, %v2923
      %v2954 = vadd.f32 %v2855, %v2924
      %s2955 = scalar_lea.vmem %s0, 98
      %v2956 = vld [vmem:[%s2955] ss:$8 sm:$0x7]
      %v2957 = vld [vmem:[%s2438 + $0x18] sm:$0x7c]
      %v2958 = vld [vmem:[%s2438 + $0x40] sm:$0x7c]
      %v2959 = vld [vmem:[%s2438 + $0x68] sm:$0x7c]
      %v2960 = vld [vmem:[%s2438 + $0x90] sm:$0x7c]
      %v2961 = vld [vmem:[%s2438 + $0xb8] sm:$0x7c]
      %v2963 = vperm.slane %v2956, 0
      %v2964 = vperm.slane %v2956, 1
      %v2965 = vperm.slane %v2956, 2
      %v2969 = vmul.f32 %v2859, %v2963
      %v2970 = vmul.f32 %v2860, %v2964
      %v2971 = vmul.f32 %v2957, %v2965
      %v2972 = vmul.f32 %v2862, %v2963
      %v2973 = vmul.f32 %v2863, %v2964
      %v2974 = vmul.f32 %v2958, %v2965
      %v2975 = vmul.f32 %v2865, %v2963
      %v2976 = vmul.f32 %v2866, %v2964
      %v2977 = vmul.f32 %v2959, %v2965
      %v2978 = vmul.f32 %v2868, %v2963
      %v2979 = vmul.f32 %v2869, %v2964
      %v2980 = vmul.f32 %v2960, %v2965
      %v2981 = vmul.f32 %v2871, %v2963
      %v2982 = vmul.f32 %v2872, %v2964
      %v2983 = vmul.f32 %v2961, %v2965
      %v2999 = vrot.slane %v2969, 2
      %v3000 = vrot.slane %v2970, 2
      %v3001 = vrot.slane %v2971, 2
      %v3002 = vrot.slane %v2972, 2
      %v3003 = vrot.slane %v2973, 2
      %v3004 = vrot.slane %v2974, 2
      %v3005 = vrot.slane %v2975, 2
      %v3006 = vrot.slane %v2976, 2
      %v3007 = vrot.slane %v2977, 2
      %v3008 = vrot.slane %v2978, 2
      %v3009 = vrot.slane %v2979, 2
      %v3010 = vrot.slane %v2980, 2
      %v3011 = vrot.slane %v2981, 2
      %v3012 = vrot.slane %v2982, 2
      %v3013 = vrot.slane %v2983, 2
      %v3029 = vadd.f32 %v2940, %v2999
      %v3030 = vadd.f32 %v2941, %v3000
      %v3031 = vadd.f32 %v2942, %v3001
      %v3032 = vadd.f32 %v2943, %v3002
      %v3033 = vadd.f32 %v2944, %v3003
      %v3034 = vadd.f32 %v2945, %v3004
      %v3035 = vadd.f32 %v2946, %v3005
      %v3036 = vadd.f32 %v2947, %v3006
      %v3037 = vadd.f32 %v2948, %v3007
      %v3038 = vadd.f32 %v2949, %v3008
      %v3039 = vadd.f32 %v2950, %v3009
      %v3040 = vadd.f32 %v2951, %v3010
      %v3041 = vadd.f32 %v2952, %v3011
      %v3042 = vadd.f32 %v2953, %v3012
      %v3043 = vadd.f32 %v2954, %v3013
      %s3044 = scalar_lea.vmem %s0, 99
      %v3045 = vld [vmem:[%s3044] ss:$8 sm:$0x7]
      %v3046 = vld [vmem:[%s2438 + $0x20] sm:$0x7c]
      %v3047 = vld [vmem:[%s2438 + $0x48] sm:$0x7c]
      %v3048 = vld [vmem:[%s2438 + $0x70] sm:$0x7c]
      %v3049 = vld [vmem:[%s2438 + $0x98] sm:$0x7c]
      %v3050 = vld [vmem:[%s2438 + $0xc0] sm:$0x7c]
      %v3052 = vperm.slane %v3045, 0
      %v3053 = vperm.slane %v3045, 1
      %v3054 = vperm.slane %v3045, 2
      %v3058 = vmul.f32 %v2860, %v3052
      %v3059 = vmul.f32 %v2957, %v3053
      %v3060 = vmul.f32 %v3046, %v3054
      %v3061 = vmul.f32 %v2863, %v3052
      %v3062 = vmul.f32 %v2958, %v3053
      %v3063 = vmul.f32 %v3047, %v3054
      %v3064 = vmul.f32 %v2866, %v3052
      %v3065 = vmul.f32 %v2959, %v3053
      %v3066 = vmul.f32 %v3048, %v3054
      %v3067 = vmul.f32 %v2869, %v3052
      %v3068 = vmul.f32 %v2960, %v3053
      %v3069 = vmul.f32 %v3049, %v3054
      %v3070 = vmul.f32 %v2872, %v3052
      %v3071 = vmul.f32 %v2961, %v3053
      %v3072 = vmul.f32 %v3050, %v3054
      %v3088 = vrot.slane %v3058, 2
      %v3089 = vrot.slane %v3059, 2
      %v3090 = vrot.slane %v3060, 2
      %v3091 = vrot.slane %v3061, 2
      %v3092 = vrot.slane %v3062, 2
      %v3093 = vrot.slane %v3063, 2
      %v3094 = vrot.slane %v3064, 2
      %v3095 = vrot.slane %v3065, 2
      %v3096 = vrot.slane %v3066, 2
      %v3097 = vrot.slane %v3067, 2
      %v3098 = vrot.slane %v3068, 2
      %v3099 = vrot.slane %v3069, 2
      %v3100 = vrot.slane %v3070, 2
      %v3101 = vrot.slane %v3071, 2
      %v3102 = vrot.slane %v3072, 2
      %v3118 = vadd.f32 %v3029, %v3088
      %v3119 = vadd.f32 %v3030, %v3089
      %v3120 = vadd.f32 %v3031, %v3090
      %v3121 = vadd.f32 %v3032, %v3091
      %v3122 = vadd.f32 %v3033, %v3092
      %v3123 = vadd.f32 %v3034, %v3093
      %v3124 = vadd.f32 %v3035, %v3094
      %v3125 = vadd.f32 %v3036, %v3095
      %v3126 = vadd.f32 %v3037, %v3096
      %v3127 = vadd.f32 %v3038, %v3097
      %v3128 = vadd.f32 %v3039, %v3098
      %v3129 = vadd.f32 %v3040, %v3099
      %v3130 = vadd.f32 %v3041, %v3100
      %v3131 = vadd.f32 %v3042, %v3101
      %v3132 = vadd.f32 %v3043, %v3102
      %s3133 = scalar_lea.vmem %s0, 100
      %v3134 = vld [vmem:[%s3133] ss:$8 sm:$0x7]
      %s3135 = smul.addr %s1038, 8
      %s3136 = scalar_lea.vmem %s308, %s3135
      %v3137 = vld [vmem:[%s3136] sm:$0x1f]
      %v3138 = vld [vmem:[%s3136 + $0x8] sm:$0x1f]
      %v3139 = vld [vmem:[%s3136 + $0x10] sm:$0x1f]
      %v3140 = vld [vmem:[%s3136 + $0x28] sm:$0x1f]
      %v3141 = vld [vmem:[%s3136 + $0x30] sm:$0x1f]
      %v3142 = vld [vmem:[%s3136 + $0x38] sm:$0x1f]
      %v3143 = vld [vmem:[%s3136 + $0x50] sm:$0x1f]
      %v3144 = vld [vmem:[%s3136 + $0x58] sm:$0x1f]
      %v3145 = vld [vmem:[%s3136 + $0x60] sm:$0x1f]
      %v3146 = vld [vmem:[%s3136 + $0x78] sm:$0x1f]
      %v3147 = vld [vmem:[%s3136 + $0x80] sm:$0x1f]
      %v3148 = vld [vmem:[%s3136 + $0x88] sm:$0x1f]
      %v3149 = vld [vmem:[%s3136 + $0xa0] sm:$0x1f]
      %v3150 = vld [vmem:[%s3136 + $0xa8] sm:$0x1f]
      %v3151 = vld [vmem:[%s3136 + $0xb0] sm:$0x1f]
      %v3153 = vperm.slane %v3134, 0
      %v3154 = vperm.slane %v3134, 1
      %v3155 = vperm.slane %v3134, 2
      %v3159 = vmul.f32 %v3137, %v3153
      %v3160 = vmul.f32 %v3138, %v3154
      %v3161 = vmul.f32 %v3139, %v3155
      %v3162 = vmul.f32 %v3140, %v3153
      %v3163 = vmul.f32 %v3141, %v3154
      %v3164 = vmul.f32 %v3142, %v3155
      %v3165 = vmul.f32 %v3143, %v3153
      %v3166 = vmul.f32 %v3144, %v3154
      %v3167 = vmul.f32 %v3145, %v3155
      %v3168 = vmul.f32 %v3146, %v3153
      %v3169 = vmul.f32 %v3147, %v3154
      %v3170 = vmul.f32 %v3148, %v3155
      %v3171 = vmul.f32 %v3149, %v3153
      %v3172 = vmul.f32 %v3150, %v3154
      %v3173 = vmul.f32 %v3151, %v3155
      %v3174 = vadd.f32 %v3118, %v3159
      %v3175 = vadd.f32 %v3119, %v3160
      %v3176 = vadd.f32 %v3120, %v3161
      %v3177 = vadd.f32 %v3121, %v3162
      %v3178 = vadd.f32 %v3122, %v3163
      %v3179 = vadd.f32 %v3123, %v3164
      %v3180 = vadd.f32 %v3124, %v3165
      %v3181 = vadd.f32 %v3125, %v3166
      %v3182 = vadd.f32 %v3126, %v3167
      %v3183 = vadd.f32 %v3127, %v3168
      %v3184 = vadd.f32 %v3128, %v3169
      %v3185 = vadd.f32 %v3129, %v3170
      %v3186 = vadd.f32 %v3130, %v3171
      %v3187 = vadd.f32 %v3131, %v3172
      %v3188 = vadd.f32 %v3132, %v3173
      %s3189 = scalar_lea.vmem %s0, 101
      %v3190 = vld [vmem:[%s3189] ss:$8 sm:$0x7]
      %v3191 = vld [vmem:[%s3136 + $0x18] sm:$0x1f]
      %v3192 = vld [vmem:[%s3136 + $0x40] sm:$0x1f]
      %v3193 = vld [vmem:[%s3136 + $0x68] sm:$0x1f]
      %v3194 = vld [vmem:[%s3136 + $0x90] sm:$0x1f]
      %v3195 = vld [vmem:[%s3136 + $0xb8] sm:$0x1f]
      %v3197 = vperm.slane %v3190, 0
      %v3198 = vperm.slane %v3190, 1
      %v3199 = vperm.slane %v3190, 2
      %v3203 = vmul.f32 %v3138, %v3197
      %v3204 = vmul.f32 %v3139, %v3198
      %v3205 = vmul.f32 %v3191, %v3199
      %v3206 = vmul.f32 %v3141, %v3197
      %v3207 = vmul.f32 %v3142, %v3198
      %v3208 = vmul.f32 %v3192, %v3199
      %v3209 = vmul.f32 %v3144, %v3197
      %v3210 = vmul.f32 %v3145, %v3198
      %v3211 = vmul.f32 %v3193, %v3199
      %v3212 = vmul.f32 %v3147, %v3197
      %v3213 = vmul.f32 %v3148, %v3198
      %v3214 = vmul.f32 %v3194, %v3199
      %v3215 = vmul.f32 %v3150, %v3197
      %v3216 = vmul.f32 %v3151, %v3198
      %v3217 = vmul.f32 %v3195, %v3199
      %v3218 = vadd.f32 %v3174, %v3203
      %v3219 = vadd.f32 %v3175, %v3204
      %v3220 = vadd.f32 %v3176, %v3205
      %v3221 = vadd.f32 %v3177, %v3206
      %v3222 = vadd.f32 %v3178, %v3207
      %v3223 = vadd.f32 %v3179, %v3208
      %v3224 = vadd.f32 %v3180, %v3209
      %v3225 = vadd.f32 %v3181, %v3210
      %v3226 = vadd.f32 %v3182, %v3211
      %v3227 = vadd.f32 %v3183, %v3212
      %v3228 = vadd.f32 %v3184, %v3213
      %v3229 = vadd.f32 %v3185, %v3214
      %v3230 = vadd.f32 %v3186, %v3215
      %v3231 = vadd.f32 %v3187, %v3216
      %v3232 = vadd.f32 %v3188, %v3217
      %s3233 = scalar_lea.vmem %s0, 102
      %v3234 = vld [vmem:[%s3233] ss:$8 sm:$0x7]
      %v3235 = vld [vmem:[%s3136 + $0x20] sm:$0x1f]
      %v3236 = vld [vmem:[%s3136 + $0x48] sm:$0x1f]
      %v3237 = vld [vmem:[%s3136 + $0x70] sm:$0x1f]
      %v3238 = vld [vmem:[%s3136 + $0x98] sm:$0x1f]
      %v3239 = vld [vmem:[%s3136 + $0xc0] sm:$0x1f]
      %v3241 = vperm.slane %v3234, 0
      %v3242 = vperm.slane %v3234, 1
      %v3243 = vperm.slane %v3234, 2
      %v3247 = vmul.f32 %v3139, %v3241
      %v3248 = vmul.f32 %v3191, %v3242
      %v3249 = vmul.f32 %v3235, %v3243
      %v3250 = vmul.f32 %v3142, %v3241
      %v3251 = vmul.f32 %v3192, %v3242
      %v3252 = vmul.f32 %v3236, %v3243
      %v3253 = vmul.f32 %v3145, %v3241
      %v3254 = vmul.f32 %v3193, %v3242
      %v3255 = vmul.f32 %v3237, %v3243
      %v3256 = vmul.f32 %v3148, %v3241
      %v3257 = vmul.f32 %v3194, %v3242
      %v3258 = vmul.f32 %v3238, %v3243
      %v3259 = vmul.f32 %v3151, %v3241
      %v3260 = vmul.f32 %v3195, %v3242
      %v3261 = vmul.f32 %v3239, %v3243
      %v3262 = vadd.f32 %v3218, %v3247
      %v3263 = vadd.f32 %v3219, %v3248
      %v3264 = vadd.f32 %v3220, %v3249
      %v3265 = vadd.f32 %v3221, %v3250
      %v3266 = vadd.f32 %v3222, %v3251
      %v3267 = vadd.f32 %v3223, %v3252
      %v3268 = vadd.f32 %v3224, %v3253
      %v3269 = vadd.f32 %v3225, %v3254
      %v3270 = vadd.f32 %v3226, %v3255
      %v3271 = vadd.f32 %v3227, %v3256
      %v3272 = vadd.f32 %v3228, %v3257
      %v3273 = vadd.f32 %v3229, %v3258
      %v3274 = vadd.f32 %v3230, %v3259
      %v3275 = vadd.f32 %v3231, %v3260
      %v3276 = vadd.f32 %v3232, %v3261
      %s3277 = scalar_lea.vmem %s0, 103
      %v3278 = vld [vmem:[%s3277] ss:$8 sm:$0x7]
      %v3279 = vld [vmem:[%s3136] sm:$0x3e]
      %v3280 = vld [vmem:[%s3136 + $0x8] sm:$0x3e]
      %v3281 = vld [vmem:[%s3136 + $0x10] sm:$0x3e]
      %v3282 = vld [vmem:[%s3136 + $0x28] sm:$0x3e]
      %v3283 = vld [vmem:[%s3136 + $0x30] sm:$0x3e]
      %v3284 = vld [vmem:[%s3136 + $0x38] sm:$0x3e]
      %v3285 = vld [vmem:[%s3136 + $0x50] sm:$0x3e]
      %v3286 = vld [vmem:[%s3136 + $0x58] sm:$0x3e]
      %v3287 = vld [vmem:[%s3136 + $0x60] sm:$0x3e]
      %v3288 = vld [vmem:[%s3136 + $0x78] sm:$0x3e]
      %v3289 = vld [vmem:[%s3136 + $0x80] sm:$0x3e]
      %v3290 = vld [vmem:[%s3136 + $0x88] sm:$0x3e]
      %v3291 = vld [vmem:[%s3136 + $0xa0] sm:$0x3e]
      %v3292 = vld [vmem:[%s3136 + $0xa8] sm:$0x3e]
      %v3293 = vld [vmem:[%s3136 + $0xb0] sm:$0x3e]
      %v3295 = vperm.slane %v3278, 0
      %v3296 = vperm.slane %v3278, 1
      %v3297 = vperm.slane %v3278, 2
      %v3301 = vmul.f32 %v3279, %v3295
      %v3302 = vmul.f32 %v3280, %v3296
      %v3303 = vmul.f32 %v3281, %v3297
      %v3304 = vmul.f32 %v3282, %v3295
      %v3305 = vmul.f32 %v3283, %v3296
      %v3306 = vmul.f32 %v3284, %v3297
      %v3307 = vmul.f32 %v3285, %v3295
      %v3308 = vmul.f32 %v3286, %v3296
      %v3309 = vmul.f32 %v3287, %v3297
      %v3310 = vmul.f32 %v3288, %v3295
      %v3311 = vmul.f32 %v3289, %v3296
      %v3312 = vmul.f32 %v3290, %v3297
      %v3313 = vmul.f32 %v3291, %v3295
      %v3314 = vmul.f32 %v3292, %v3296
      %v3315 = vmul.f32 %v3293, %v3297
      %v3331 = vrot.slane %v3301, 1
      %v3332 = vrot.slane %v3302, 1
      %v3333 = vrot.slane %v3303, 1
      %v3334 = vrot.slane %v3304, 1
      %v3335 = vrot.slane %v3305, 1
      %v3336 = vrot.slane %v3306, 1
      %v3337 = vrot.slane %v3307, 1
      %v3338 = vrot.slane %v3308, 1
      %v3339 = vrot.slane %v3309, 1
      %v3340 = vrot.slane %v3310, 1
      %v3341 = vrot.slane %v3311, 1
      %v3342 = vrot.slane %v3312, 1
      %v3343 = vrot.slane %v3313, 1
      %v3344 = vrot.slane %v3314, 1
      %v3345 = vrot.slane %v3315, 1
      %v3361 = vadd.f32 %v3262, %v3331
      %v3362 = vadd.f32 %v3263, %v3332
      %v3363 = vadd.f32 %v3264, %v3333
      %v3364 = vadd.f32 %v3265, %v3334
      %v3365 = vadd.f32 %v3266, %v3335
      %v3366 = vadd.f32 %v3267, %v3336
      %v3367 = vadd.f32 %v3268, %v3337
      %v3368 = vadd.f32 %v3269, %v3338
      %v3369 = vadd.f32 %v3270, %v3339
      %v3370 = vadd.f32 %v3271, %v3340
      %v3371 = vadd.f32 %v3272, %v3341
      %v3372 = vadd.f32 %v3273, %v3342
      %v3373 = vadd.f32 %v3274, %v3343
      %v3374 = vadd.f32 %v3275, %v3344
      %v3375 = vadd.f32 %v3276, %v3345
      %s3376 = scalar_lea.vmem %s0, 120
      %v3377 = vld [vmem:[%s3376] ss:$8 sm:$0x7]
      %v3378 = vld [vmem:[%s3136 + $0x18] sm:$0x3e]
      %v3379 = vld [vmem:[%s3136 + $0x40] sm:$0x3e]
      %v3380 = vld [vmem:[%s3136 + $0x68] sm:$0x3e]
      %v3381 = vld [vmem:[%s3136 + $0x90] sm:$0x3e]
      %v3382 = vld [vmem:[%s3136 + $0xb8] sm:$0x3e]
      %v3384 = vperm.slane %v3377, 0
      %v3385 = vperm.slane %v3377, 1
      %v3386 = vperm.slane %v3377, 2
      %v3390 = vmul.f32 %v3280, %v3384
      %v3391 = vmul.f32 %v3281, %v3385
      %v3392 = vmul.f32 %v3378, %v3386
      %v3393 = vmul.f32 %v3283, %v3384
      %v3394 = vmul.f32 %v3284, %v3385
      %v3395 = vmul.f32 %v3379, %v3386
      %v3396 = vmul.f32 %v3286, %v3384
      %v3397 = vmul.f32 %v3287, %v3385
      %v3398 = vmul.f32 %v3380, %v3386
      %v3399 = vmul.f32 %v3289, %v3384
      %v3400 = vmul.f32 %v3290, %v3385
      %v3401 = vmul.f32 %v3381, %v3386
      %v3402 = vmul.f32 %v3292, %v3384
      %v3403 = vmul.f32 %v3293, %v3385
      %v3404 = vmul.f32 %v3382, %v3386
      %v3420 = vrot.slane %v3390, 1
      %v3421 = vrot.slane %v3391, 1
      %v3422 = vrot.slane %v3392, 1
      %v3423 = vrot.slane %v3393, 1
      %v3424 = vrot.slane %v3394, 1
      %v3425 = vrot.slane %v3395, 1
      %v3426 = vrot.slane %v3396, 1
      %v3427 = vrot.slane %v3397, 1
      %v3428 = vrot.slane %v3398, 1
      %v3429 = vrot.slane %v3399, 1
      %v3430 = vrot.slane %v3400, 1
      %v3431 = vrot.slane %v3401, 1
      %v3432 = vrot.slane %v3402, 1
      %v3433 = vrot.slane %v3403, 1
      %v3434 = vrot.slane %v3404, 1
      %v3450 = vadd.f32 %v3361, %v3420
      %v3451 = vadd.f32 %v3362, %v3421
      %v3452 = vadd.f32 %v3363, %v3422
      %v3453 = vadd.f32 %v3364, %v3423
      %v3454 = vadd.f32 %v3365, %v3424
      %v3455 = vadd.f32 %v3366, %v3425
      %v3456 = vadd.f32 %v3367, %v3426
      %v3457 = vadd.f32 %v3368, %v3427
      %v3458 = vadd.f32 %v3369, %v3428
      %v3459 = vadd.f32 %v3370, %v3429
      %v3460 = vadd.f32 %v3371, %v3430
      %v3461 = vadd.f32 %v3372, %v3431
      %v3462 = vadd.f32 %v3373, %v3432
      %v3463 = vadd.f32 %v3374, %v3433
      %v3464 = vadd.f32 %v3375, %v3434
      %s3465 = scalar_lea.vmem %s0, 121
      %v3466 = vld [vmem:[%s3465] ss:$8 sm:$0x7]
      %v3467 = vld [vmem:[%s3136 + $0x20] sm:$0x3e]
      %v3468 = vld [vmem:[%s3136 + $0x48] sm:$0x3e]
      %v3469 = vld [vmem:[%s3136 + $0x70] sm:$0x3e]
      %v3470 = vld [vmem:[%s3136 + $0x98] sm:$0x3e]
      %v3471 = vld [vmem:[%s3136 + $0xc0] sm:$0x3e]
      %v3473 = vperm.slane %v3466, 0
      %v3474 = vperm.slane %v3466, 1
      %v3475 = vperm.slane %v3466, 2
      %v3479 = vmul.f32 %v3281, %v3473
      %v3480 = vmul.f32 %v3378, %v3474
      %v3481 = vmul.f32 %v3467, %v3475
      %v3482 = vmul.f32 %v3284, %v3473
      %v3483 = vmul.f32 %v3379, %v3474
      %v3484 = vmul.f32 %v3468, %v3475
      %v3485 = vmul.f32 %v3287, %v3473
      %v3486 = vmul.f32 %v3380, %v3474
      %v3487 = vmul.f32 %v3469, %v3475
      %v3488 = vmul.f32 %v3290, %v3473
      %v3489 = vmul.f32 %v3381, %v3474
      %v3490 = vmul.f32 %v3470, %v3475
      %v3491 = vmul.f32 %v3293, %v3473
      %v3492 = vmul.f32 %v3382, %v3474
      %v3493 = vmul.f32 %v3471, %v3475
      %v3509 = vrot.slane %v3479, 1
      %v3510 = vrot.slane %v3480, 1
      %v3511 = vrot.slane %v3481, 1
      %v3512 = vrot.slane %v3482, 1
      %v3513 = vrot.slane %v3483, 1
      %v3514 = vrot.slane %v3484, 1
      %v3515 = vrot.slane %v3485, 1
      %v3516 = vrot.slane %v3486, 1
      %v3517 = vrot.slane %v3487, 1
      %v3518 = vrot.slane %v3488, 1
      %v3519 = vrot.slane %v3489, 1
      %v3520 = vrot.slane %v3490, 1
      %v3521 = vrot.slane %v3491, 1
      %v3522 = vrot.slane %v3492, 1
      %v3523 = vrot.slane %v3493, 1
      %v3539 = vadd.f32 %v3450, %v3509
      %v3540 = vadd.f32 %v3451, %v3510
      %v3541 = vadd.f32 %v3452, %v3511
      %v3542 = vadd.f32 %v3453, %v3512
      %v3543 = vadd.f32 %v3454, %v3513
      %v3544 = vadd.f32 %v3455, %v3514
      %v3545 = vadd.f32 %v3456, %v3515
      %v3546 = vadd.f32 %v3457, %v3516
      %v3547 = vadd.f32 %v3458, %v3517
      %v3548 = vadd.f32 %v3459, %v3518
      %v3549 = vadd.f32 %v3460, %v3519
      %v3550 = vadd.f32 %v3461, %v3520
      %v3551 = vadd.f32 %v3462, %v3521
      %v3552 = vadd.f32 %v3463, %v3522
      %v3553 = vadd.f32 %v3464, %v3523
      %s3554 = scalar_lea.vmem %s0, 122
      %v3555 = vld [vmem:[%s3554] ss:$8 sm:$0x7]
      %v3556 = vld [vmem:[%s3136] sm:$0x7c]
      %v3557 = vld [vmem:[%s3136 + $0x8] sm:$0x7c]
      %v3558 = vld [vmem:[%s3136 + $0x10] sm:$0x7c]
      %v3559 = vld [vmem:[%s3136 + $0x28] sm:$0x7c]
      %v3560 = vld [vmem:[%s3136 + $0x30] sm:$0x7c]
      %v3561 = vld [vmem:[%s3136 + $0x38] sm:$0x7c]
      %v3562 = vld [vmem:[%s3136 + $0x50] sm:$0x7c]
      %v3563 = vld [vmem:[%s3136 + $0x58] sm:$0x7c]
      %v3564 = vld [vmem:[%s3136 + $0x60] sm:$0x7c]
      %v3565 = vld [vmem:[%s3136 + $0x78] sm:$0x7c]
      %v3566 = vld [vmem:[%s3136 + $0x80] sm:$0x7c]
      %v3567 = vld [vmem:[%s3136 + $0x88] sm:$0x7c]
      %v3568 = vld [vmem:[%s3136 + $0xa0] sm:$0x7c]
      %v3569 = vld [vmem:[%s3136 + $0xa8] sm:$0x7c]
      %v3570 = vld [vmem:[%s3136 + $0xb0] sm:$0x7c]
      %v3572 = vperm.slane %v3555, 0
      %v3573 = vperm.slane %v3555, 1
      %v3574 = vperm.slane %v3555, 2
      %v3578 = vmul.f32 %v3556, %v3572
      %v3579 = vmul.f32 %v3557, %v3573
      %v3580 = vmul.f32 %v3558, %v3574
      %v3581 = vmul.f32 %v3559, %v3572
      %v3582 = vmul.f32 %v3560, %v3573
      %v3583 = vmul.f32 %v3561, %v3574
      %v3584 = vmul.f32 %v3562, %v3572
      %v3585 = vmul.f32 %v3563, %v3573
      %v3586 = vmul.f32 %v3564, %v3574
      %v3587 = vmul.f32 %v3565, %v3572
      %v3588 = vmul.f32 %v3566, %v3573
      %v3589 = vmul.f32 %v3567, %v3574
      %v3590 = vmul.f32 %v3568, %v3572
      %v3591 = vmul.f32 %v3569, %v3573
      %v3592 = vmul.f32 %v3570, %v3574
      %v3608 = vrot.slane %v3578, 2
      %v3609 = vrot.slane %v3579, 2
      %v3610 = vrot.slane %v3580, 2
      %v3611 = vrot.slane %v3581, 2
      %v3612 = vrot.slane %v3582, 2
      %v3613 = vrot.slane %v3583, 2
      %v3614 = vrot.slane %v3584, 2
      %v3615 = vrot.slane %v3585, 2
      %v3616 = vrot.slane %v3586, 2
      %v3617 = vrot.slane %v3587, 2
      %v3618 = vrot.slane %v3588, 2
      %v3619 = vrot.slane %v3589, 2
      %v3620 = vrot.slane %v3590, 2
      %v3621 = vrot.slane %v3591, 2
      %v3622 = vrot.slane %v3592, 2
      %v3638 = vadd.f32 %v3539, %v3608
      %v3639 = vadd.f32 %v3540, %v3609
      %v3640 = vadd.f32 %v3541, %v3610
      %v3641 = vadd.f32 %v3542, %v3611
      %v3642 = vadd.f32 %v3543, %v3612
      %v3643 = vadd.f32 %v3544, %v3613
      %v3644 = vadd.f32 %v3545, %v3614
      %v3645 = vadd.f32 %v3546, %v3615
      %v3646 = vadd.f32 %v3547, %v3616
      %v3647 = vadd.f32 %v3548, %v3617
      %v3648 = vadd.f32 %v3549, %v3618
      %v3649 = vadd.f32 %v3550, %v3619
      %v3650 = vadd.f32 %v3551, %v3620
      %v3651 = vadd.f32 %v3552, %v3621
      %v3652 = vadd.f32 %v3553, %v3622
      %s3653 = scalar_lea.vmem %s0, 123
      %v3654 = vld [vmem:[%s3653] ss:$8 sm:$0x7]
      %v3655 = vld [vmem:[%s3136 + $0x18] sm:$0x7c]
      %v3656 = vld [vmem:[%s3136 + $0x40] sm:$0x7c]
      %v3657 = vld [vmem:[%s3136 + $0x68] sm:$0x7c]
      %v3658 = vld [vmem:[%s3136 + $0x90] sm:$0x7c]
      %v3659 = vld [vmem:[%s3136 + $0xb8] sm:$0x7c]
      %v3661 = vperm.slane %v3654, 0
      %v3662 = vperm.slane %v3654, 1
      %v3663 = vperm.slane %v3654, 2
      %v3667 = vmul.f32 %v3557, %v3661
      %v3668 = vmul.f32 %v3558, %v3662
      %v3669 = vmul.f32 %v3655, %v3663
      %v3670 = vmul.f32 %v3560, %v3661
      %v3671 = vmul.f32 %v3561, %v3662
      %v3672 = vmul.f32 %v3656, %v3663
      %v3673 = vmul.f32 %v3563, %v3661
      %v3674 = vmul.f32 %v3564, %v3662
      %v3675 = vmul.f32 %v3657, %v3663
      %v3676 = vmul.f32 %v3566, %v3661
      %v3677 = vmul.f32 %v3567, %v3662
      %v3678 = vmul.f32 %v3658, %v3663
      %v3679 = vmul.f32 %v3569, %v3661
      %v3680 = vmul.f32 %v3570, %v3662
      %v3681 = vmul.f32 %v3659, %v3663
      %v3697 = vrot.slane %v3667, 2
      %v3698 = vrot.slane %v3668, 2
      %v3699 = vrot.slane %v3669, 2
      %v3700 = vrot.slane %v3670, 2
      %v3701 = vrot.slane %v3671, 2
      %v3702 = vrot.slane %v3672, 2
      %v3703 = vrot.slane %v3673, 2
      %v3704 = vrot.slane %v3674, 2
      %v3705 = vrot.slane %v3675, 2
      %v3706 = vrot.slane %v3676, 2
      %v3707 = vrot.slane %v3677, 2
      %v3708 = vrot.slane %v3678, 2
      %v3709 = vrot.slane %v3679, 2
      %v3710 = vrot.slane %v3680, 2
      %v3711 = vrot.slane %v3681, 2
      %v3727 = vadd.f32 %v3638, %v3697
      %v3728 = vadd.f32 %v3639, %v3698
      %v3729 = vadd.f32 %v3640, %v3699
      %v3730 = vadd.f32 %v3641, %v3700
      %v3731 = vadd.f32 %v3642, %v3701
      %v3732 = vadd.f32 %v3643, %v3702
      %v3733 = vadd.f32 %v3644, %v3703
      %v3734 = vadd.f32 %v3645, %v3704
      %v3735 = vadd.f32 %v3646, %v3705
      %v3736 = vadd.f32 %v3647, %v3706
      %v3737 = vadd.f32 %v3648, %v3707
      %v3738 = vadd.f32 %v3649, %v3708
      %v3739 = vadd.f32 %v3650, %v3709
      %v3740 = vadd.f32 %v3651, %v3710
      %v3741 = vadd.f32 %v3652, %v3711
      %s3742 = scalar_lea.vmem %s0, 124
      %v3743 = vld [vmem:[%s3742] ss:$8 sm:$0x7]
      %v3744 = vld [vmem:[%s3136 + $0x20] sm:$0x7c]
      %v3745 = vld [vmem:[%s3136 + $0x48] sm:$0x7c]
      %v3746 = vld [vmem:[%s3136 + $0x70] sm:$0x7c]
      %v3747 = vld [vmem:[%s3136 + $0x98] sm:$0x7c]
      %v3748 = vld [vmem:[%s3136 + $0xc0] sm:$0x7c]
      %v3750 = vperm.slane %v3743, 0
      %v3751 = vperm.slane %v3743, 1
      %v3752 = vperm.slane %v3743, 2
      %v3756 = vmul.f32 %v3558, %v3750
      %v3757 = vmul.f32 %v3655, %v3751
      %v3758 = vmul.f32 %v3744, %v3752
      %v3759 = vmul.f32 %v3561, %v3750
      %v3760 = vmul.f32 %v3656, %v3751
      %v3761 = vmul.f32 %v3745, %v3752
      %v3762 = vmul.f32 %v3564, %v3750
      %v3763 = vmul.f32 %v3657, %v3751
      %v3764 = vmul.f32 %v3746, %v3752
      %v3765 = vmul.f32 %v3567, %v3750
      %v3766 = vmul.f32 %v3658, %v3751
      %v3767 = vmul.f32 %v3747, %v3752
      %v3768 = vmul.f32 %v3570, %v3750
      %v3769 = vmul.f32 %v3659, %v3751
      %v3770 = vmul.f32 %v3748, %v3752
      %v3786 = vrot.slane %v3756, 2
      %v3787 = vrot.slane %v3757, 2
      %v3788 = vrot.slane %v3758, 2
      %v3789 = vrot.slane %v3759, 2
      %v3790 = vrot.slane %v3760, 2
      %v3791 = vrot.slane %v3761, 2
      %v3792 = vrot.slane %v3762, 2
      %v3793 = vrot.slane %v3763, 2
      %v3794 = vrot.slane %v3764, 2
      %v3795 = vrot.slane %v3765, 2
      %v3796 = vrot.slane %v3766, 2
      %v3797 = vrot.slane %v3767, 2
      %v3798 = vrot.slane %v3768, 2
      %v3799 = vrot.slane %v3769, 2
      %v3800 = vrot.slane %v3770, 2
      %v3816 = vadd.f32 %v3727, %v3786
      %v3817 = vadd.f32 %v3728, %v3787
      %v3818 = vadd.f32 %v3729, %v3788
      %v3819 = vadd.f32 %v3730, %v3789
      %v3820 = vadd.f32 %v3731, %v3790
      %v3821 = vadd.f32 %v3732, %v3791
      %v3822 = vadd.f32 %v3733, %v3792
      %v3823 = vadd.f32 %v3734, %v3793
      %v3824 = vadd.f32 %v3735, %v3794
      %v3825 = vadd.f32 %v3736, %v3795
      %v3826 = vadd.f32 %v3737, %v3796
      %v3827 = vadd.f32 %v3738, %v3797
      %v3828 = vadd.f32 %v3739, %v3798
      %v3829 = vadd.f32 %v3740, %v3799
      %v3830 = vadd.f32 %v3741, %v3800
      %s3831 = scalar_lea.vmem %s0, 125
      %v3832 = vld [vmem:[%s3831] ss:$8 sm:$0x7]
      %s3833 = smul.addr %s1738, 8
      %s3834 = scalar_lea.vmem %s308, %s3833
      %v3835 = vld [vmem:[%s3834] sm:$0x1f]
      %v3836 = vld [vmem:[%s3834 + $0x8] sm:$0x1f]
      %v3837 = vld [vmem:[%s3834 + $0x10] sm:$0x1f]
      %v3838 = vld [vmem:[%s3834 + $0x28] sm:$0x1f]
      %v3839 = vld [vmem:[%s3834 + $0x30] sm:$0x1f]
      %v3840 = vld [vmem:[%s3834 + $0x38] sm:$0x1f]
      %v3841 = vld [vmem:[%s3834 + $0x50] sm:$0x1f]
      %v3842 = vld [vmem:[%s3834 + $0x58] sm:$0x1f]
      %v3843 = vld [vmem:[%s3834 + $0x60] sm:$0x1f]
      %v3844 = vld [vmem:[%s3834 + $0x78] sm:$0x1f]
      %v3845 = vld [vmem:[%s3834 + $0x80] sm:$0x1f]
      %v3846 = vld [vmem:[%s3834 + $0x88] sm:$0x1f]
      %v3847 = vld [vmem:[%s3834 + $0xa0] sm:$0x1f]
      %v3848 = vld [vmem:[%s3834 + $0xa8] sm:$0x1f]
      %v3849 = vld [vmem:[%s3834 + $0xb0] sm:$0x1f]
      %v3851 = vperm.slane %v3832, 0
      %v3852 = vperm.slane %v3832, 1
      %v3853 = vperm.slane %v3832, 2
      %v3857 = vmul.f32 %v3835, %v3851
      %v3858 = vmul.f32 %v3836, %v3852
      %v3859 = vmul.f32 %v3837, %v3853
      %v3860 = vmul.f32 %v3838, %v3851
      %v3861 = vmul.f32 %v3839, %v3852
      %v3862 = vmul.f32 %v3840, %v3853
      %v3863 = vmul.f32 %v3841, %v3851
      %v3864 = vmul.f32 %v3842, %v3852
      %v3865 = vmul.f32 %v3843, %v3853
      %v3866 = vmul.f32 %v3844, %v3851
      %v3867 = vmul.f32 %v3845, %v3852
      %v3868 = vmul.f32 %v3846, %v3853
      %v3869 = vmul.f32 %v3847, %v3851
      %v3870 = vmul.f32 %v3848, %v3852
      %v3871 = vmul.f32 %v3849, %v3853
      %v3872 = vadd.f32 %v3816, %v3857
      %v3873 = vadd.f32 %v3817, %v3858
      %v3874 = vadd.f32 %v3818, %v3859
      %v3875 = vadd.f32 %v3819, %v3860
      %v3876 = vadd.f32 %v3820, %v3861
      %v3877 = vadd.f32 %v3821, %v3862
      %v3878 = vadd.f32 %v3822, %v3863
      %v3879 = vadd.f32 %v3823, %v3864
      %v3880 = vadd.f32 %v3824, %v3865
      %v3881 = vadd.f32 %v3825, %v3866
      %v3882 = vadd.f32 %v3826, %v3867
      %v3883 = vadd.f32 %v3827, %v3868
      %v3884 = vadd.f32 %v3828, %v3869
      %v3885 = vadd.f32 %v3829, %v3870
      %v3886 = vadd.f32 %v3830, %v3871
      %s3887 = scalar_lea.vmem %s0, 126
      %v3888 = vld [vmem:[%s3887] ss:$8 sm:$0x7]
      %v3889 = vld [vmem:[%s3834 + $0x18] sm:$0x1f]
      %v3890 = vld [vmem:[%s3834 + $0x40] sm:$0x1f]
      %v3891 = vld [vmem:[%s3834 + $0x68] sm:$0x1f]
      %v3892 = vld [vmem:[%s3834 + $0x90] sm:$0x1f]
      %v3893 = vld [vmem:[%s3834 + $0xb8] sm:$0x1f]
      %v3895 = vperm.slane %v3888, 0
      %v3896 = vperm.slane %v3888, 1
      %v3897 = vperm.slane %v3888, 2
      %v3901 = vmul.f32 %v3836, %v3895
      %v3902 = vmul.f32 %v3837, %v3896
      %v3903 = vmul.f32 %v3889, %v3897
      %v3904 = vmul.f32 %v3839, %v3895
      %v3905 = vmul.f32 %v3840, %v3896
      %v3906 = vmul.f32 %v3890, %v3897
      %v3907 = vmul.f32 %v3842, %v3895
      %v3908 = vmul.f32 %v3843, %v3896
      %v3909 = vmul.f32 %v3891, %v3897
      %v3910 = vmul.f32 %v3845, %v3895
      %v3911 = vmul.f32 %v3846, %v3896
      %v3912 = vmul.f32 %v3892, %v3897
      %v3913 = vmul.f32 %v3848, %v3895
      %v3914 = vmul.f32 %v3849, %v3896
      %v3915 = vmul.f32 %v3893, %v3897
      %v3916 = vadd.f32 %v3872, %v3901
      %v3917 = vadd.f32 %v3873, %v3902
      %v3918 = vadd.f32 %v3874, %v3903
      %v3919 = vadd.f32 %v3875, %v3904
      %v3920 = vadd.f32 %v3876, %v3905
      %v3921 = vadd.f32 %v3877, %v3906
      %v3922 = vadd.f32 %v3878, %v3907
      %v3923 = vadd.f32 %v3879, %v3908
      %v3924 = vadd.f32 %v3880, %v3909
      %v3925 = vadd.f32 %v3881, %v3910
      %v3926 = vadd.f32 %v3882, %v3911
      %v3927 = vadd.f32 %v3883, %v3912
      %v3928 = vadd.f32 %v3884, %v3913
      %v3929 = vadd.f32 %v3885, %v3914
      %v3930 = vadd.f32 %v3886, %v3915
      %s3931 = scalar_lea.vmem %s0, 127
      %v3932 = vld [vmem:[%s3931] ss:$8 sm:$0x7]
      %v3933 = vld [vmem:[%s3834 + $0x20] sm:$0x1f]
      %v3934 = vld [vmem:[%s3834 + $0x48] sm:$0x1f]
      %v3935 = vld [vmem:[%s3834 + $0x70] sm:$0x1f]
      %v3936 = vld [vmem:[%s3834 + $0x98] sm:$0x1f]
      %v3937 = vld [vmem:[%s3834 + $0xc0] sm:$0x1f]
      %v3939 = vperm.slane %v3932, 0
      %v3940 = vperm.slane %v3932, 1
      %v3941 = vperm.slane %v3932, 2
      %v3945 = vmul.f32 %v3837, %v3939
      %v3946 = vmul.f32 %v3889, %v3940
      %v3947 = vmul.f32 %v3933, %v3941
      %v3948 = vmul.f32 %v3840, %v3939
      %v3949 = vmul.f32 %v3890, %v3940
      %v3950 = vmul.f32 %v3934, %v3941
      %v3951 = vmul.f32 %v3843, %v3939
      %v3952 = vmul.f32 %v3891, %v3940
      %v3953 = vmul.f32 %v3935, %v3941
      %v3954 = vmul.f32 %v3846, %v3939
      %v3955 = vmul.f32 %v3892, %v3940
      %v3956 = vmul.f32 %v3936, %v3941
      %v3957 = vmul.f32 %v3849, %v3939
      %v3958 = vmul.f32 %v3893, %v3940
      %v3959 = vmul.f32 %v3937, %v3941
      %v3960 = vadd.f32 %v3916, %v3945
      %v3961 = vadd.f32 %v3917, %v3946
      %v3962 = vadd.f32 %v3918, %v3947
      %v3963 = vadd.f32 %v3919, %v3948
      %v3964 = vadd.f32 %v3920, %v3949
      %v3965 = vadd.f32 %v3921, %v3950
      %v3966 = vadd.f32 %v3922, %v3951
      %v3967 = vadd.f32 %v3923, %v3952
      %v3968 = vadd.f32 %v3924, %v3953
      %v3969 = vadd.f32 %v3925, %v3954
      %v3970 = vadd.f32 %v3926, %v3955
      %v3971 = vadd.f32 %v3927, %v3956
      %v3972 = vadd.f32 %v3928, %v3957
      %v3973 = vadd.f32 %v3929, %v3958
      %v3974 = vadd.f32 %v3930, %v3959
      %s3975 = scalar_lea.vmem %s0, 144
      %v3976 = vld [vmem:[%s3975] ss:$8 sm:$0x7]
      %v3977 = vld [vmem:[%s3834] sm:$0x3e]
      %v3978 = vld [vmem:[%s3834 + $0x8] sm:$0x3e]
      %v3979 = vld [vmem:[%s3834 + $0x10] sm:$0x3e]
      %v3980 = vld [vmem:[%s3834 + $0x28] sm:$0x3e]
      %v3981 = vld [vmem:[%s3834 + $0x30] sm:$0x3e]
      %v3982 = vld [vmem:[%s3834 + $0x38] sm:$0x3e]
      %v3983 = vld [vmem:[%s3834 + $0x50] sm:$0x3e]
      %v3984 = vld [vmem:[%s3834 + $0x58] sm:$0x3e]
      %v3985 = vld [vmem:[%s3834 + $0x60] sm:$0x3e]
      %v3986 = vld [vmem:[%s3834 + $0x78] sm:$0x3e]
      %v3987 = vld [vmem:[%s3834 + $0x80] sm:$0x3e]
      %v3988 = vld [vmem:[%s3834 + $0x88] sm:$0x3e]
      %v3989 = vld [vmem:[%s3834 + $0xa0] sm:$0x3e]
      %v3990 = vld [vmem:[%s3834 + $0xa8] sm:$0x3e]
      %v3991 = vld [vmem:[%s3834 + $0xb0] sm:$0x3e]
      %v3993 = vperm.slane %v3976, 0
      %v3994 = vperm.slane %v3976, 1
      %v3995 = vperm.slane %v3976, 2
      %v3999 = vmul.f32 %v3977, %v3993
      %v4000 = vmul.f32 %v3978, %v3994
      %v4001 = vmul.f32 %v3979, %v3995
      %v4002 = vmul.f32 %v3980, %v3993
      %v4003 = vmul.f32 %v3981, %v3994
      %v4004 = vmul.f32 %v3982, %v3995
      %v4005 = vmul.f32 %v3983, %v3993
      %v4006 = vmul.f32 %v3984, %v3994
      %v4007 = vmul.f32 %v3985, %v3995
      %v4008 = vmul.f32 %v3986, %v3993
      %v4009 = vmul.f32 %v3987, %v3994
      %v4010 = vmul.f32 %v3988, %v3995
      %v4011 = vmul.f32 %v3989, %v3993
      %v4012 = vmul.f32 %v3990, %v3994
      %v4013 = vmul.f32 %v3991, %v3995
      %v4029 = vrot.slane %v3999, 1
      %v4030 = vrot.slane %v4000, 1
      %v4031 = vrot.slane %v4001, 1
      %v4032 = vrot.slane %v4002, 1
      %v4033 = vrot.slane %v4003, 1
      %v4034 = vrot.slane %v4004, 1
      %v4035 = vrot.slane %v4005, 1
      %v4036 = vrot.slane %v4006, 1
      %v4037 = vrot.slane %v4007, 1
      %v4038 = vrot.slane %v4008, 1
      %v4039 = vrot.slane %v4009, 1
      %v4040 = vrot.slane %v4010, 1
      %v4041 = vrot.slane %v4011, 1
      %v4042 = vrot.slane %v4012, 1
      %v4043 = vrot.slane %v4013, 1
      %v4059 = vadd.f32 %v3960, %v4029
      %v4060 = vadd.f32 %v3961, %v4030
      %v4061 = vadd.f32 %v3962, %v4031
      %v4062 = vadd.f32 %v3963, %v4032
      %v4063 = vadd.f32 %v3964, %v4033
      %v4064 = vadd.f32 %v3965, %v4034
      %v4065 = vadd.f32 %v3966, %v4035
      %v4066 = vadd.f32 %v3967, %v4036
      %v4067 = vadd.f32 %v3968, %v4037
      %v4068 = vadd.f32 %v3969, %v4038
      %v4069 = vadd.f32 %v3970, %v4039
      %v4070 = vadd.f32 %v3971, %v4040
      %v4071 = vadd.f32 %v3972, %v4041
      %v4072 = vadd.f32 %v3973, %v4042
      %v4073 = vadd.f32 %v3974, %v4043
      %s4074 = scalar_lea.vmem %s0, 145
      %v4075 = vld [vmem:[%s4074] ss:$8 sm:$0x7]
      %v4076 = vld [vmem:[%s3834 + $0x18] sm:$0x3e]
      %v4077 = vld [vmem:[%s3834 + $0x40] sm:$0x3e]
      %v4078 = vld [vmem:[%s3834 + $0x68] sm:$0x3e]
      %v4079 = vld [vmem:[%s3834 + $0x90] sm:$0x3e]
      %v4080 = vld [vmem:[%s3834 + $0xb8] sm:$0x3e]
      %v4082 = vperm.slane %v4075, 0
      %v4083 = vperm.slane %v4075, 1
      %v4084 = vperm.slane %v4075, 2
      %v4088 = vmul.f32 %v3978, %v4082
      %v4089 = vmul.f32 %v3979, %v4083
      %v4090 = vmul.f32 %v4076, %v4084
      %v4091 = vmul.f32 %v3981, %v4082
      %v4092 = vmul.f32 %v3982, %v4083
      %v4093 = vmul.f32 %v4077, %v4084
      %v4094 = vmul.f32 %v3984, %v4082
      %v4095 = vmul.f32 %v3985, %v4083
      %v4096 = vmul.f32 %v4078, %v4084
      %v4097 = vmul.f32 %v3987, %v4082
      %v4098 = vmul.f32 %v3988, %v4083
      %v4099 = vmul.f32 %v4079, %v4084
      %v4100 = vmul.f32 %v3990, %v4082
      %v4101 = vmul.f32 %v3991, %v4083
      %v4102 = vmul.f32 %v4080, %v4084
      %v4118 = vrot.slane %v4088, 1
      %v4119 = vrot.slane %v4089, 1
      %v4120 = vrot.slane %v4090, 1
      %v4121 = vrot.slane %v4091, 1
      %v4122 = vrot.slane %v4092, 1
      %v4123 = vrot.slane %v4093, 1
      %v4124 = vrot.slane %v4094, 1
      %v4125 = vrot.slane %v4095, 1
      %v4126 = vrot.slane %v4096, 1
      %v4127 = vrot.slane %v4097, 1
      %v4128 = vrot.slane %v4098, 1
      %v4129 = vrot.slane %v4099, 1
      %v4130 = vrot.slane %v4100, 1
      %v4131 = vrot.slane %v4101, 1
      %v4132 = vrot.slane %v4102, 1
      %v4148 = vadd.f32 %v4059, %v4118
      %v4149 = vadd.f32 %v4060, %v4119
      %v4150 = vadd.f32 %v4061, %v4120
      %v4151 = vadd.f32 %v4062, %v4121
      %v4152 = vadd.f32 %v4063, %v4122
      %v4153 = vadd.f32 %v4064, %v4123
      %v4154 = vadd.f32 %v4065, %v4124
      %v4155 = vadd.f32 %v4066, %v4125
      %v4156 = vadd.f32 %v4067, %v4126
      %v4157 = vadd.f32 %v4068, %v4127
      %v4158 = vadd.f32 %v4069, %v4128
      %v4159 = vadd.f32 %v4070, %v4129
      %v4160 = vadd.f32 %v4071, %v4130
      %v4161 = vadd.f32 %v4072, %v4131
      %v4162 = vadd.f32 %v4073, %v4132
      %s4163 = scalar_lea.vmem %s0, 146
      %v4164 = vld [vmem:[%s4163] ss:$8 sm:$0x7]
      %v4165 = vld [vmem:[%s3834 + $0x20] sm:$0x3e]
      %v4166 = vld [vmem:[%s3834 + $0x48] sm:$0x3e]
      %v4167 = vld [vmem:[%s3834 + $0x70] sm:$0x3e]
      %v4168 = vld [vmem:[%s3834 + $0x98] sm:$0x3e]
      %v4169 = vld [vmem:[%s3834 + $0xc0] sm:$0x3e]
      %v4171 = vperm.slane %v4164, 0
      %v4172 = vperm.slane %v4164, 1
      %v4173 = vperm.slane %v4164, 2
      %v4177 = vmul.f32 %v3979, %v4171
      %v4178 = vmul.f32 %v4076, %v4172
      %v4179 = vmul.f32 %v4165, %v4173
      %v4180 = vmul.f32 %v3982, %v4171
      %v4181 = vmul.f32 %v4077, %v4172
      %v4182 = vmul.f32 %v4166, %v4173
      %v4183 = vmul.f32 %v3985, %v4171
      %v4184 = vmul.f32 %v4078, %v4172
      %v4185 = vmul.f32 %v4167, %v4173
      %v4186 = vmul.f32 %v3988, %v4171
      %v4187 = vmul.f32 %v4079, %v4172
      %v4188 = vmul.f32 %v4168, %v4173
      %v4189 = vmul.f32 %v3991, %v4171
      %v4190 = vmul.f32 %v4080, %v4172
      %v4191 = vmul.f32 %v4169, %v4173
      %v4207 = vrot.slane %v4177, 1
      %v4208 = vrot.slane %v4178, 1
      %v4209 = vrot.slane %v4179, 1
      %v4210 = vrot.slane %v4180, 1
      %v4211 = vrot.slane %v4181, 1
      %v4212 = vrot.slane %v4182, 1
      %v4213 = vrot.slane %v4183, 1
      %v4214 = vrot.slane %v4184, 1
      %v4215 = vrot.slane %v4185, 1
      %v4216 = vrot.slane %v4186, 1
      %v4217 = vrot.slane %v4187, 1
      %v4218 = vrot.slane %v4188, 1
      %v4219 = vrot.slane %v4189, 1
      %v4220 = vrot.slane %v4190, 1
      %v4221 = vrot.slane %v4191, 1
      %v4237 = vadd.f32 %v4148, %v4207
      %v4238 = vadd.f32 %v4149, %v4208
      %v4239 = vadd.f32 %v4150, %v4209
      %v4240 = vadd.f32 %v4151, %v4210
      %v4241 = vadd.f32 %v4152, %v4211
      %v4242 = vadd.f32 %v4153, %v4212
      %v4243 = vadd.f32 %v4154, %v4213
      %v4244 = vadd.f32 %v4155, %v4214
      %v4245 = vadd.f32 %v4156, %v4215
      %v4246 = vadd.f32 %v4157, %v4216
      %v4247 = vadd.f32 %v4158, %v4217
      %v4248 = vadd.f32 %v4159, %v4218
      %v4249 = vadd.f32 %v4160, %v4219
      %v4250 = vadd.f32 %v4161, %v4220
      %v4251 = vadd.f32 %v4162, %v4221
      %s4252 = scalar_lea.vmem %s0, 147
      %v4253 = vld [vmem:[%s4252] ss:$8 sm:$0x7]
      %v4254 = vld [vmem:[%s3834] sm:$0x7c]
      %v4255 = vld [vmem:[%s3834 + $0x8] sm:$0x7c]
      %v4256 = vld [vmem:[%s3834 + $0x10] sm:$0x7c]
      %v4257 = vld [vmem:[%s3834 + $0x28] sm:$0x7c]
      %v4258 = vld [vmem:[%s3834 + $0x30] sm:$0x7c]
      %v4259 = vld [vmem:[%s3834 + $0x38] sm:$0x7c]
      %v4260 = vld [vmem:[%s3834 + $0x50] sm:$0x7c]
      %v4261 = vld [vmem:[%s3834 + $0x58] sm:$0x7c]
      %v4262 = vld [vmem:[%s3834 + $0x60] sm:$0x7c]
      %v4263 = vld [vmem:[%s3834 + $0x78] sm:$0x7c]
      %v4264 = vld [vmem:[%s3834 + $0x80] sm:$0x7c]
      %v4265 = vld [vmem:[%s3834 + $0x88] sm:$0x7c]
      %v4266 = vld [vmem:[%s3834 + $0xa0] sm:$0x7c]
      %v4267 = vld [vmem:[%s3834 + $0xa8] sm:$0x7c]
      %v4268 = vld [vmem:[%s3834 + $0xb0] sm:$0x7c]
      %v4270 = vperm.slane %v4253, 0
      %v4271 = vperm.slane %v4253, 1
      %v4272 = vperm.slane %v4253, 2
      %v4276 = vmul.f32 %v4254, %v4270
      %v4277 = vmul.f32 %v4255, %v4271
      %v4278 = vmul.f32 %v4256, %v4272
      %v4279 = vmul.f32 %v4257, %v4270
      %v4280 = vmul.f32 %v4258, %v4271
      %v4281 = vmul.f32 %v4259, %v4272
      %v4282 = vmul.f32 %v4260, %v4270
      %v4283 = vmul.f32 %v4261, %v4271
      %v4284 = vmul.f32 %v4262, %v4272
      %v4285 = vmul.f32 %v4263, %v4270
      %v4286 = vmul.f32 %v4264, %v4271
      %v4287 = vmul.f32 %v4265, %v4272
      %v4288 = vmul.f32 %v4266, %v4270
      %v4289 = vmul.f32 %v4267, %v4271
      %v4290 = vmul.f32 %v4268, %v4272
      %v4306 = vrot.slane %v4276, 2
      %v4307 = vrot.slane %v4277, 2
      %v4308 = vrot.slane %v4278, 2
      %v4309 = vrot.slane %v4279, 2
      %v4310 = vrot.slane %v4280, 2
      %v4311 = vrot.slane %v4281, 2
      %v4312 = vrot.slane %v4282, 2
      %v4313 = vrot.slane %v4283, 2
      %v4314 = vrot.slane %v4284, 2
      %v4315 = vrot.slane %v4285, 2
      %v4316 = vrot.slane %v4286, 2
      %v4317 = vrot.slane %v4287, 2
      %v4318 = vrot.slane %v4288, 2
      %v4319 = vrot.slane %v4289, 2
      %v4320 = vrot.slane %v4290, 2
      %v4336 = vadd.f32 %v4237, %v4306
      %v4337 = vadd.f32 %v4238, %v4307
      %v4338 = vadd.f32 %v4239, %v4308
      %v4339 = vadd.f32 %v4240, %v4309
      %v4340 = vadd.f32 %v4241, %v4310
      %v4341 = vadd.f32 %v4242, %v4311
      %v4342 = vadd.f32 %v4243, %v4312
      %v4343 = vadd.f32 %v4244, %v4313
      %v4344 = vadd.f32 %v4245, %v4314
      %v4345 = vadd.f32 %v4246, %v4315
      %v4346 = vadd.f32 %v4247, %v4316
      %v4347 = vadd.f32 %v4248, %v4317
      %v4348 = vadd.f32 %v4249, %v4318
      %v4349 = vadd.f32 %v4250, %v4319
      %v4350 = vadd.f32 %v4251, %v4320
      %s4351 = scalar_lea.vmem %s0, 148
      %v4352 = vld [vmem:[%s4351] ss:$8 sm:$0x7]
      %v4353 = vld [vmem:[%s3834 + $0x18] sm:$0x7c]
      %v4354 = vld [vmem:[%s3834 + $0x40] sm:$0x7c]
      %v4355 = vld [vmem:[%s3834 + $0x68] sm:$0x7c]
      %v4356 = vld [vmem:[%s3834 + $0x90] sm:$0x7c]
      %v4357 = vld [vmem:[%s3834 + $0xb8] sm:$0x7c]
      %v4359 = vperm.slane %v4352, 0
      %v4360 = vperm.slane %v4352, 1
      %v4361 = vperm.slane %v4352, 2
      %v4365 = vmul.f32 %v4255, %v4359
      %v4366 = vmul.f32 %v4256, %v4360
      %v4367 = vmul.f32 %v4353, %v4361
      %v4368 = vmul.f32 %v4258, %v4359
      %v4369 = vmul.f32 %v4259, %v4360
      %v4370 = vmul.f32 %v4354, %v4361
      %v4371 = vmul.f32 %v4261, %v4359
      %v4372 = vmul.f32 %v4262, %v4360
      %v4373 = vmul.f32 %v4355, %v4361
      %v4374 = vmul.f32 %v4264, %v4359
      %v4375 = vmul.f32 %v4265, %v4360
      %v4376 = vmul.f32 %v4356, %v4361
      %v4377 = vmul.f32 %v4267, %v4359
      %v4378 = vmul.f32 %v4268, %v4360
      %v4379 = vmul.f32 %v4357, %v4361
      %v4395 = vrot.slane %v4365, 2
      %v4396 = vrot.slane %v4366, 2
      %v4397 = vrot.slane %v4367, 2
      %v4398 = vrot.slane %v4368, 2
      %v4399 = vrot.slane %v4369, 2
      %v4400 = vrot.slane %v4370, 2
      %v4401 = vrot.slane %v4371, 2
      %v4402 = vrot.slane %v4372, 2
      %v4403 = vrot.slane %v4373, 2
      %v4404 = vrot.slane %v4374, 2
      %v4405 = vrot.slane %v4375, 2
      %v4406 = vrot.slane %v4376, 2
      %v4407 = vrot.slane %v4377, 2
      %v4408 = vrot.slane %v4378, 2
      %v4409 = vrot.slane %v4379, 2
      %v4425 = vadd.f32 %v4336, %v4395
      %v4426 = vadd.f32 %v4337, %v4396
      %v4427 = vadd.f32 %v4338, %v4397
      %v4428 = vadd.f32 %v4339, %v4398
      %v4429 = vadd.f32 %v4340, %v4399
      %v4430 = vadd.f32 %v4341, %v4400
      %v4431 = vadd.f32 %v4342, %v4401
      %v4432 = vadd.f32 %v4343, %v4402
      %v4433 = vadd.f32 %v4344, %v4403
      %v4434 = vadd.f32 %v4345, %v4404
      %v4435 = vadd.f32 %v4346, %v4405
      %v4436 = vadd.f32 %v4347, %v4406
      %v4437 = vadd.f32 %v4348, %v4407
      %v4438 = vadd.f32 %v4349, %v4408
      %v4439 = vadd.f32 %v4350, %v4409
      %s4440 = scalar_lea.vmem %s0, 149
      %v4441 = vld [vmem:[%s4440] ss:$8 sm:$0x7]
      %v4442 = vld [vmem:[%s3834 + $0x20] sm:$0x7c]
      %v4443 = vld [vmem:[%s3834 + $0x48] sm:$0x7c]
      %v4444 = vld [vmem:[%s3834 + $0x70] sm:$0x7c]
      %v4445 = vld [vmem:[%s3834 + $0x98] sm:$0x7c]
      %v4446 = vld [vmem:[%s3834 + $0xc0] sm:$0x7c]
      %v4448 = vperm.slane %v4441, 0
      %v4449 = vperm.slane %v4441, 1
      %v4450 = vperm.slane %v4441, 2
      %v4454 = vmul.f32 %v4256, %v4448
      %v4455 = vmul.f32 %v4353, %v4449
      %v4456 = vmul.f32 %v4442, %v4450
      %v4457 = vmul.f32 %v4259, %v4448
      %v4458 = vmul.f32 %v4354, %v4449
      %v4459 = vmul.f32 %v4443, %v4450
      %v4460 = vmul.f32 %v4262, %v4448
      %v4461 = vmul.f32 %v4355, %v4449
      %v4462 = vmul.f32 %v4444, %v4450
      %v4463 = vmul.f32 %v4265, %v4448
      %v4464 = vmul.f32 %v4356, %v4449
      %v4465 = vmul.f32 %v4445, %v4450
      %v4466 = vmul.f32 %v4268, %v4448
      %v4467 = vmul.f32 %v4357, %v4449
      %v4468 = vmul.f32 %v4446, %v4450
      %v4484 = vrot.slane %v4454, 2
      %v4485 = vrot.slane %v4455, 2
      %v4486 = vrot.slane %v4456, 2
      %v4487 = vrot.slane %v4457, 2
      %v4488 = vrot.slane %v4458, 2
      %v4489 = vrot.slane %v4459, 2
      %v4490 = vrot.slane %v4460, 2
      %v4491 = vrot.slane %v4461, 2
      %v4492 = vrot.slane %v4462, 2
      %v4493 = vrot.slane %v4463, 2
      %v4494 = vrot.slane %v4464, 2
      %v4495 = vrot.slane %v4465, 2
      %v4496 = vrot.slane %v4466, 2
      %v4497 = vrot.slane %v4467, 2
      %v4498 = vrot.slane %v4468, 2
      %v4514 = vadd.f32 %v4425, %v4484
      %v4515 = vadd.f32 %v4426, %v4485
      %v4516 = vadd.f32 %v4427, %v4486
      %v4517 = vadd.f32 %v4428, %v4487
      %v4518 = vadd.f32 %v4429, %v4488
      %v4519 = vadd.f32 %v4430, %v4489
      %v4520 = vadd.f32 %v4431, %v4490
      %v4521 = vadd.f32 %v4432, %v4491
      %v4522 = vadd.f32 %v4433, %v4492
      %v4523 = vadd.f32 %v4434, %v4493
      %v4524 = vadd.f32 %v4435, %v4494
      %v4525 = vadd.f32 %v4436, %v4495
      %v4526 = vadd.f32 %v4437, %v4496
      %v4527 = vadd.f32 %v4438, %v4497
      %v4528 = vadd.f32 %v4439, %v4498
      %s4529 = scalar_lea.vmem %s0, 150
      %v4530 = vld [vmem:[%s4529] ss:$8 sm:$0x7]
      %s4531 = smul.addr %s338, 8
      %s4532 = scalar_lea.vmem %s319, %s4531
      %v4533 = vld [vmem:[%s4532] sm:$0x1f]
      %v4534 = vld [vmem:[%s4532 + $0x8] sm:$0x1f]
      %v4535 = vld [vmem:[%s4532 + $0x10] sm:$0x1f]
      %v4536 = vld [vmem:[%s4532 + $0x28] sm:$0x1f]
      %v4537 = vld [vmem:[%s4532 + $0x30] sm:$0x1f]
      %v4538 = vld [vmem:[%s4532 + $0x38] sm:$0x1f]
      %v4539 = vld [vmem:[%s4532 + $0x50] sm:$0x1f]
      %v4540 = vld [vmem:[%s4532 + $0x58] sm:$0x1f]
      %v4541 = vld [vmem:[%s4532 + $0x60] sm:$0x1f]
      %v4542 = vld [vmem:[%s4532 + $0x78] sm:$0x1f]
      %v4543 = vld [vmem:[%s4532 + $0x80] sm:$0x1f]
      %v4544 = vld [vmem:[%s4532 + $0x88] sm:$0x1f]
      %v4545 = vld [vmem:[%s4532 + $0xa0] sm:$0x1f]
      %v4546 = vld [vmem:[%s4532 + $0xa8] sm:$0x1f]
      %v4547 = vld [vmem:[%s4532 + $0xb0] sm:$0x1f]
      %v4549 = vperm.slane %v4530, 0
      %v4550 = vperm.slane %v4530, 1
      %v4551 = vperm.slane %v4530, 2
      %v4555 = vmul.f32 %v4533, %v4549
      %v4556 = vmul.f32 %v4534, %v4550
      %v4557 = vmul.f32 %v4535, %v4551
      %v4558 = vmul.f32 %v4536, %v4549
      %v4559 = vmul.f32 %v4537, %v4550
      %v4560 = vmul.f32 %v4538, %v4551
      %v4561 = vmul.f32 %v4539, %v4549
      %v4562 = vmul.f32 %v4540, %v4550
      %v4563 = vmul.f32 %v4541, %v4551
      %v4564 = vmul.f32 %v4542, %v4549
      %v4565 = vmul.f32 %v4543, %v4550
      %v4566 = vmul.f32 %v4544, %v4551
      %v4567 = vmul.f32 %v4545, %v4549
      %v4568 = vmul.f32 %v4546, %v4550
      %v4569 = vmul.f32 %v4547, %v4551
      %v4570 = vadd.f32 %v4514, %v4555
      %v4571 = vadd.f32 %v4515, %v4556
      %v4572 = vadd.f32 %v4516, %v4557
      %v4573 = vadd.f32 %v4517, %v4558
      %v4574 = vadd.f32 %v4518, %v4559
      %v4575 = vadd.f32 %v4519, %v4560
      %v4576 = vadd.f32 %v4520, %v4561
      %v4577 = vadd.f32 %v4521, %v4562
      %v4578 = vadd.f32 %v4522, %v4563
      %v4579 = vadd.f32 %v4523, %v4564
      %v4580 = vadd.f32 %v4524, %v4565
      %v4581 = vadd.f32 %v4525, %v4566
      %v4582 = vadd.f32 %v4526, %v4567
      %v4583 = vadd.f32 %v4527, %v4568
      %v4584 = vadd.f32 %v4528, %v4569
      %s4585 = scalar_lea.vmem %s0, 151
      %v4586 = vld [vmem:[%s4585] ss:$8 sm:$0x7]
      %v4587 = vld [vmem:[%s4532 + $0x18] sm:$0x1f]
      %v4588 = vld [vmem:[%s4532 + $0x40] sm:$0x1f]
      %v4589 = vld [vmem:[%s4532 + $0x68] sm:$0x1f]
      %v4590 = vld [vmem:[%s4532 + $0x90] sm:$0x1f]
      %v4591 = vld [vmem:[%s4532 + $0xb8] sm:$0x1f]
      %v4593 = vperm.slane %v4586, 0
      %v4594 = vperm.slane %v4586, 1
      %v4595 = vperm.slane %v4586, 2
      %v4599 = vmul.f32 %v4534, %v4593
      %v4600 = vmul.f32 %v4535, %v4594
      %v4601 = vmul.f32 %v4587, %v4595
      %v4602 = vmul.f32 %v4537, %v4593
      %v4603 = vmul.f32 %v4538, %v4594
      %v4604 = vmul.f32 %v4588, %v4595
      %v4605 = vmul.f32 %v4540, %v4593
      %v4606 = vmul.f32 %v4541, %v4594
      %v4607 = vmul.f32 %v4589, %v4595
      %v4608 = vmul.f32 %v4543, %v4593
      %v4609 = vmul.f32 %v4544, %v4594
      %v4610 = vmul.f32 %v4590, %v4595
      %v4611 = vmul.f32 %v4546, %v4593
      %v4612 = vmul.f32 %v4547, %v4594
      %v4613 = vmul.f32 %v4591, %v4595
      %v4614 = vadd.f32 %v4570, %v4599
      %v4615 = vadd.f32 %v4571, %v4600
      %v4616 = vadd.f32 %v4572, %v4601
      %v4617 = vadd.f32 %v4573, %v4602
      %v4618 = vadd.f32 %v4574, %v4603
      %v4619 = vadd.f32 %v4575, %v4604
      %v4620 = vadd.f32 %v4576, %v4605
      %v4621 = vadd.f32 %v4577, %v4606
      %v4622 = vadd.f32 %v4578, %v4607
      %v4623 = vadd.f32 %v4579, %v4608
      %v4624 = vadd.f32 %v4580, %v4609
      %v4625 = vadd.f32 %v4581, %v4610
      %v4626 = vadd.f32 %v4582, %v4611
      %v4627 = vadd.f32 %v4583, %v4612
      %v4628 = vadd.f32 %v4584, %v4613
      %s4629 = scalar_lea.vmem %s0, 168
      %v4630 = vld [vmem:[%s4629] ss:$8 sm:$0x7]
      %v4631 = vld [vmem:[%s4532 + $0x20] sm:$0x1f]
      %v4632 = vld [vmem:[%s4532 + $0x48] sm:$0x1f]
      %v4633 = vld [vmem:[%s4532 + $0x70] sm:$0x1f]
      %v4634 = vld [vmem:[%s4532 + $0x98] sm:$0x1f]
      %v4635 = vld [vmem:[%s4532 + $0xc0] sm:$0x1f]
      %v4637 = vperm.slane %v4630, 0
      %v4638 = vperm.slane %v4630, 1
      %v4639 = vperm.slane %v4630, 2
      %v4643 = vmul.f32 %v4535, %v4637
      %v4644 = vmul.f32 %v4587, %v4638
      %v4645 = vmul.f32 %v4631, %v4639
      %v4646 = vmul.f32 %v4538, %v4637
      %v4647 = vmul.f32 %v4588, %v4638
      %v4648 = vmul.f32 %v4632, %v4639
      %v4649 = vmul.f32 %v4541, %v4637
      %v4650 = vmul.f32 %v4589, %v4638
      %v4651 = vmul.f32 %v4633, %v4639
      %v4652 = vmul.f32 %v4544, %v4637
      %v4653 = vmul.f32 %v4590, %v4638
      %v4654 = vmul.f32 %v4634, %v4639
      %v4655 = vmul.f32 %v4547, %v4637
      %v4656 = vmul.f32 %v4591, %v4638
      %v4657 = vmul.f32 %v4635, %v4639
      %v4658 = vadd.f32 %v4614, %v4643
      %v4659 = vadd.f32 %v4615, %v4644
      %v4660 = vadd.f32 %v4616, %v4645
      %v4661 = vadd.f32 %v4617, %v4646
      %v4662 = vadd.f32 %v4618, %v4647
      %v4663 = vadd.f32 %v4619, %v4648
      %v4664 = vadd.f32 %v4620, %v4649
      %v4665 = vadd.f32 %v4621, %v4650
      %v4666 = vadd.f32 %v4622, %v4651
      %v4667 = vadd.f32 %v4623, %v4652
      %v4668 = vadd.f32 %v4624, %v4653
      %v4669 = vadd.f32 %v4625, %v4654
      %v4670 = vadd.f32 %v4626, %v4655
      %v4671 = vadd.f32 %v4627, %v4656
      %v4672 = vadd.f32 %v4628, %v4657
      %s4673 = scalar_lea.vmem %s0, 169
      %v4674 = vld [vmem:[%s4673] ss:$8 sm:$0x7]
      %v4675 = vld [vmem:[%s4532] sm:$0x3e]
      %v4676 = vld [vmem:[%s4532 + $0x8] sm:$0x3e]
      %v4677 = vld [vmem:[%s4532 + $0x10] sm:$0x3e]
      %v4678 = vld [vmem:[%s4532 + $0x28] sm:$0x3e]
      %v4679 = vld [vmem:[%s4532 + $0x30] sm:$0x3e]
      %v4680 = vld [vmem:[%s4532 + $0x38] sm:$0x3e]
      %v4681 = vld [vmem:[%s4532 + $0x50] sm:$0x3e]
      %v4682 = vld [vmem:[%s4532 + $0x58] sm:$0x3e]
      %v4683 = vld [vmem:[%s4532 + $0x60] sm:$0x3e]
      %v4684 = vld [vmem:[%s4532 + $0x78] sm:$0x3e]
      %v4685 = vld [vmem:[%s4532 + $0x80] sm:$0x3e]
      %v4686 = vld [vmem:[%s4532 + $0x88] sm:$0x3e]
      %v4687 = vld [vmem:[%s4532 + $0xa0] sm:$0x3e]
      %v4688 = vld [vmem:[%s4532 + $0xa8] sm:$0x3e]
      %v4689 = vld [vmem:[%s4532 + $0xb0] sm:$0x3e]
      %v4691 = vperm.slane %v4674, 0
      %v4692 = vperm.slane %v4674, 1
      %v4693 = vperm.slane %v4674, 2
      %v4697 = vmul.f32 %v4675, %v4691
      %v4698 = vmul.f32 %v4676, %v4692
      %v4699 = vmul.f32 %v4677, %v4693
      %v4700 = vmul.f32 %v4678, %v4691
      %v4701 = vmul.f32 %v4679, %v4692
      %v4702 = vmul.f32 %v4680, %v4693
      %v4703 = vmul.f32 %v4681, %v4691
      %v4704 = vmul.f32 %v4682, %v4692
      %v4705 = vmul.f32 %v4683, %v4693
      %v4706 = vmul.f32 %v4684, %v4691
      %v4707 = vmul.f32 %v4685, %v4692
      %v4708 = vmul.f32 %v4686, %v4693
      %v4709 = vmul.f32 %v4687, %v4691
      %v4710 = vmul.f32 %v4688, %v4692
      %v4711 = vmul.f32 %v4689, %v4693
      %v4727 = vrot.slane %v4697, 1
      %v4728 = vrot.slane %v4698, 1
      %v4729 = vrot.slane %v4699, 1
      %v4730 = vrot.slane %v4700, 1
      %v4731 = vrot.slane %v4701, 1
      %v4732 = vrot.slane %v4702, 1
      %v4733 = vrot.slane %v4703, 1
      %v4734 = vrot.slane %v4704, 1
      %v4735 = vrot.slane %v4705, 1
      %v4736 = vrot.slane %v4706, 1
      %v4737 = vrot.slane %v4707, 1
      %v4738 = vrot.slane %v4708, 1
      %v4739 = vrot.slane %v4709, 1
      %v4740 = vrot.slane %v4710, 1
      %v4741 = vrot.slane %v4711, 1
      %v4757 = vadd.f32 %v4658, %v4727
      %v4758 = vadd.f32 %v4659, %v4728
      %v4759 = vadd.f32 %v4660, %v4729
      %v4760 = vadd.f32 %v4661, %v4730
      %v4761 = vadd.f32 %v4662, %v4731
      %v4762 = vadd.f32 %v4663, %v4732
      %v4763 = vadd.f32 %v4664, %v4733
      %v4764 = vadd.f32 %v4665, %v4734
      %v4765 = vadd.f32 %v4666, %v4735
      %v4766 = vadd.f32 %v4667, %v4736
      %v4767 = vadd.f32 %v4668, %v4737
      %v4768 = vadd.f32 %v4669, %v4738
      %v4769 = vadd.f32 %v4670, %v4739
      %v4770 = vadd.f32 %v4671, %v4740
      %v4771 = vadd.f32 %v4672, %v4741
      %s4772 = scalar_lea.vmem %s0, 170
      %v4773 = vld [vmem:[%s4772] ss:$8 sm:$0x7]
      %v4774 = vld [vmem:[%s4532 + $0x18] sm:$0x3e]
      %v4775 = vld [vmem:[%s4532 + $0x40] sm:$0x3e]
      %v4776 = vld [vmem:[%s4532 + $0x68] sm:$0x3e]
      %v4777 = vld [vmem:[%s4532 + $0x90] sm:$0x3e]
      %v4778 = vld [vmem:[%s4532 + $0xb8] sm:$0x3e]
      %v4780 = vperm.slane %v4773, 0
      %v4781 = vperm.slane %v4773, 1
      %v4782 = vperm.slane %v4773, 2
      %v4786 = vmul.f32 %v4676, %v4780
      %v4787 = vmul.f32 %v4677, %v4781
      %v4788 = vmul.f32 %v4774, %v4782
      %v4789 = vmul.f32 %v4679, %v4780
      %v4790 = vmul.f32 %v4680, %v4781
      %v4791 = vmul.f32 %v4775, %v4782
      %v4792 = vmul.f32 %v4682, %v4780
      %v4793 = vmul.f32 %v4683, %v4781
      %v4794 = vmul.f32 %v4776, %v4782
      %v4795 = vmul.f32 %v4685, %v4780
      %v4796 = vmul.f32 %v4686, %v4781
      %v4797 = vmul.f32 %v4777, %v4782
      %v4798 = vmul.f32 %v4688, %v4780
      %v4799 = vmul.f32 %v4689, %v4781
      %v4800 = vmul.f32 %v4778, %v4782
      %v4816 = vrot.slane %v4786, 1
      %v4817 = vrot.slane %v4787, 1
      %v4818 = vrot.slane %v4788, 1
      %v4819 = vrot.slane %v4789, 1
      %v4820 = vrot.slane %v4790, 1
      %v4821 = vrot.slane %v4791, 1
      %v4822 = vrot.slane %v4792, 1
      %v4823 = vrot.slane %v4793, 1
      %v4824 = vrot.slane %v4794, 1
      %v4825 = vrot.slane %v4795, 1
      %v4826 = vrot.slane %v4796, 1
      %v4827 = vrot.slane %v4797, 1
      %v4828 = vrot.slane %v4798, 1
      %v4829 = vrot.slane %v4799, 1
      %v4830 = vrot.slane %v4800, 1
      %v4846 = vadd.f32 %v4757, %v4816
      %v4847 = vadd.f32 %v4758, %v4817
      %v4848 = vadd.f32 %v4759, %v4818
      %v4849 = vadd.f32 %v4760, %v4819
      %v4850 = vadd.f32 %v4761, %v4820
      %v4851 = vadd.f32 %v4762, %v4821
      %v4852 = vadd.f32 %v4763, %v4822
      %v4853 = vadd.f32 %v4764, %v4823
      %v4854 = vadd.f32 %v4765, %v4824
      %v4855 = vadd.f32 %v4766, %v4825
      %v4856 = vadd.f32 %v4767, %v4826
      %v4857 = vadd.f32 %v4768, %v4827
      %v4858 = vadd.f32 %v4769, %v4828
      %v4859 = vadd.f32 %v4770, %v4829
      %v4860 = vadd.f32 %v4771, %v4830
      %s4861 = scalar_lea.vmem %s0, 171
      %v4862 = vld [vmem:[%s4861] ss:$8 sm:$0x7]
      %v4863 = vld [vmem:[%s4532 + $0x20] sm:$0x3e]
      %v4864 = vld [vmem:[%s4532 + $0x48] sm:$0x3e]
      %v4865 = vld [vmem:[%s4532 + $0x70] sm:$0x3e]
      %v4866 = vld [vmem:[%s4532 + $0x98] sm:$0x3e]
      %v4867 = vld [vmem:[%s4532 + $0xc0] sm:$0x3e]
      %v4869 = vperm.slane %v4862, 0
      %v4870 = vperm.slane %v4862, 1
      %v4871 = vperm.slane %v4862, 2
      %v4875 = vmul.f32 %v4677, %v4869
      %v4876 = vmul.f32 %v4774, %v4870
      %v4877 = vmul.f32 %v4863, %v4871
      %v4878 = vmul.f32 %v4680, %v4869
      %v4879 = vmul.f32 %v4775, %v4870
      %v4880 = vmul.f32 %v4864, %v4871
      %v4881 = vmul.f32 %v4683, %v4869
      %v4882 = vmul.f32 %v4776, %v4870
      %v4883 = vmul.f32 %v4865, %v4871
      %v4884 = vmul.f32 %v4686, %v4869
      %v4885 = vmul.f32 %v4777, %v4870
      %v4886 = vmul.f32 %v4866, %v4871
      %v4887 = vmul.f32 %v4689, %v4869
      %v4888 = vmul.f32 %v4778, %v4870
      %v4889 = vmul.f32 %v4867, %v4871
      %v4905 = vrot.slane %v4875, 1
      %v4906 = vrot.slane %v4876, 1
      %v4907 = vrot.slane %v4877, 1
      %v4908 = vrot.slane %v4878, 1
      %v4909 = vrot.slane %v4879, 1
      %v4910 = vrot.slane %v4880, 1
      %v4911 = vrot.slane %v4881, 1
      %v4912 = vrot.slane %v4882, 1
      %v4913 = vrot.slane %v4883, 1
      %v4914 = vrot.slane %v4884, 1
      %v4915 = vrot.slane %v4885, 1
      %v4916 = vrot.slane %v4886, 1
      %v4917 = vrot.slane %v4887, 1
      %v4918 = vrot.slane %v4888, 1
      %v4919 = vrot.slane %v4889, 1
      %v4935 = vadd.f32 %v4846, %v4905
      %v4936 = vadd.f32 %v4847, %v4906
      %v4937 = vadd.f32 %v4848, %v4907
      %v4938 = vadd.f32 %v4849, %v4908
      %v4939 = vadd.f32 %v4850, %v4909
      %v4940 = vadd.f32 %v4851, %v4910
      %v4941 = vadd.f32 %v4852, %v4911
      %v4942 = vadd.f32 %v4853, %v4912
      %v4943 = vadd.f32 %v4854, %v4913
      %v4944 = vadd.f32 %v4855, %v4914
      %v4945 = vadd.f32 %v4856, %v4915
      %v4946 = vadd.f32 %v4857, %v4916
      %v4947 = vadd.f32 %v4858, %v4917
      %v4948 = vadd.f32 %v4859, %v4918
      %v4949 = vadd.f32 %v4860, %v4919
      %s4950 = scalar_lea.vmem %s0, 172
      %v4951 = vld [vmem:[%s4950] ss:$8 sm:$0x7]
      %v4952 = vld [vmem:[%s4532] sm:$0x7c]
      %v4953 = vld [vmem:[%s4532 + $0x8] sm:$0x7c]
      %v4954 = vld [vmem:[%s4532 + $0x10] sm:$0x7c]
      %v4955 = vld [vmem:[%s4532 + $0x28] sm:$0x7c]
      %v4956 = vld [vmem:[%s4532 + $0x30] sm:$0x7c]
      %v4957 = vld [vmem:[%s4532 + $0x38] sm:$0x7c]
      %v4958 = vld [vmem:[%s4532 + $0x50] sm:$0x7c]
      %v4959 = vld [vmem:[%s4532 + $0x58] sm:$0x7c]
      %v4960 = vld [vmem:[%s4532 + $0x60] sm:$0x7c]
      %v4961 = vld [vmem:[%s4532 + $0x78] sm:$0x7c]
      %v4962 = vld [vmem:[%s4532 + $0x80] sm:$0x7c]
      %v4963 = vld [vmem:[%s4532 + $0x88] sm:$0x7c]
      %v4964 = vld [vmem:[%s4532 + $0xa0] sm:$0x7c]
      %v4965 = vld [vmem:[%s4532 + $0xa8] sm:$0x7c]
      %v4966 = vld [vmem:[%s4532 + $0xb0] sm:$0x7c]
      %v4968 = vperm.slane %v4951, 0
      %v4969 = vperm.slane %v4951, 1
      %v4970 = vperm.slane %v4951, 2
      %v4974 = vmul.f32 %v4952, %v4968
      %v4975 = vmul.f32 %v4953, %v4969
      %v4976 = vmul.f32 %v4954, %v4970
      %v4977 = vmul.f32 %v4955, %v4968
      %v4978 = vmul.f32 %v4956, %v4969
      %v4979 = vmul.f32 %v4957, %v4970
      %v4980 = vmul.f32 %v4958, %v4968
      %v4981 = vmul.f32 %v4959, %v4969
      %v4982 = vmul.f32 %v4960, %v4970
      %v4983 = vmul.f32 %v4961, %v4968
      %v4984 = vmul.f32 %v4962, %v4969
      %v4985 = vmul.f32 %v4963, %v4970
      %v4986 = vmul.f32 %v4964, %v4968
      %v4987 = vmul.f32 %v4965, %v4969
      %v4988 = vmul.f32 %v4966, %v4970
      %v5004 = vrot.slane %v4974, 2
      %v5005 = vrot.slane %v4975, 2
      %v5006 = vrot.slane %v4976, 2
      %v5007 = vrot.slane %v4977, 2
      %v5008 = vrot.slane %v4978, 2
      %v5009 = vrot.slane %v4979, 2
      %v5010 = vrot.slane %v4980, 2
      %v5011 = vrot.slane %v4981, 2
      %v5012 = vrot.slane %v4982, 2
      %v5013 = vrot.slane %v4983, 2
      %v5014 = vrot.slane %v4984, 2
      %v5015 = vrot.slane %v4985, 2
      %v5016 = vrot.slane %v4986, 2
      %v5017 = vrot.slane %v4987, 2
      %v5018 = vrot.slane %v4988, 2
      %v5034 = vadd.f32 %v4935, %v5004
      %v5035 = vadd.f32 %v4936, %v5005
      %v5036 = vadd.f32 %v4937, %v5006
      %v5037 = vadd.f32 %v4938, %v5007
      %v5038 = vadd.f32 %v4939, %v5008
      %v5039 = vadd.f32 %v4940, %v5009
      %v5040 = vadd.f32 %v4941, %v5010
      %v5041 = vadd.f32 %v4942, %v5011
      %v5042 = vadd.f32 %v4943, %v5012
      %v5043 = vadd.f32 %v4944, %v5013
      %v5044 = vadd.f32 %v4945, %v5014
      %v5045 = vadd.f32 %v4946, %v5015
      %v5046 = vadd.f32 %v4947, %v5016
      %v5047 = vadd.f32 %v4948, %v5017
      %v5048 = vadd.f32 %v4949, %v5018
      %s5049 = scalar_lea.vmem %s0, 173
      %v5050 = vld [vmem:[%s5049] ss:$8 sm:$0x7]
      %v5051 = vld [vmem:[%s4532 + $0x18] sm:$0x7c]
      %v5052 = vld [vmem:[%s4532 + $0x40] sm:$0x7c]
      %v5053 = vld [vmem:[%s4532 + $0x68] sm:$0x7c]
      %v5054 = vld [vmem:[%s4532 + $0x90] sm:$0x7c]
      %v5055 = vld [vmem:[%s4532 + $0xb8] sm:$0x7c]
      %v5057 = vperm.slane %v5050, 0
      %v5058 = vperm.slane %v5050, 1
      %v5059 = vperm.slane %v5050, 2
      %v5063 = vmul.f32 %v4953, %v5057
      %v5064 = vmul.f32 %v4954, %v5058
      %v5065 = vmul.f32 %v5051, %v5059
      %v5066 = vmul.f32 %v4956, %v5057
      %v5067 = vmul.f32 %v4957, %v5058
      %v5068 = vmul.f32 %v5052, %v5059
      %v5069 = vmul.f32 %v4959, %v5057
      %v5070 = vmul.f32 %v4960, %v5058
      %v5071 = vmul.f32 %v5053, %v5059
      %v5072 = vmul.f32 %v4962, %v5057
      %v5073 = vmul.f32 %v4963, %v5058
      %v5074 = vmul.f32 %v5054, %v5059
      %v5075 = vmul.f32 %v4965, %v5057
      %v5076 = vmul.f32 %v4966, %v5058
      %v5077 = vmul.f32 %v5055, %v5059
      %v5093 = vrot.slane %v5063, 2
      %v5094 = vrot.slane %v5064, 2
      %v5095 = vrot.slane %v5065, 2
      %v5096 = vrot.slane %v5066, 2
      %v5097 = vrot.slane %v5067, 2
      %v5098 = vrot.slane %v5068, 2
      %v5099 = vrot.slane %v5069, 2
      %v5100 = vrot.slane %v5070, 2
      %v5101 = vrot.slane %v5071, 2
      %v5102 = vrot.slane %v5072, 2
      %v5103 = vrot.slane %v5073, 2
      %v5104 = vrot.slane %v5074, 2
      %v5105 = vrot.slane %v5075, 2
      %v5106 = vrot.slane %v5076, 2
      %v5107 = vrot.slane %v5077, 2
      %v5123 = vadd.f32 %v5034, %v5093
      %v5124 = vadd.f32 %v5035, %v5094
      %v5125 = vadd.f32 %v5036, %v5095
      %v5126 = vadd.f32 %v5037, %v5096
      %v5127 = vadd.f32 %v5038, %v5097
      %v5128 = vadd.f32 %v5039, %v5098
      %v5129 = vadd.f32 %v5040, %v5099
      %v5130 = vadd.f32 %v5041, %v5100
      %v5131 = vadd.f32 %v5042, %v5101
      %v5132 = vadd.f32 %v5043, %v5102
      %v5133 = vadd.f32 %v5044, %v5103
      %v5134 = vadd.f32 %v5045, %v5104
      %v5135 = vadd.f32 %v5046, %v5105
      %v5136 = vadd.f32 %v5047, %v5106
      %v5137 = vadd.f32 %v5048, %v5107
      %s5138 = scalar_lea.vmem %s0, 174
      %v5139 = vld [vmem:[%s5138] ss:$8 sm:$0x7]
      %v5140 = vld [vmem:[%s4532 + $0x20] sm:$0x7c]
      %v5141 = vld [vmem:[%s4532 + $0x48] sm:$0x7c]
      %v5142 = vld [vmem:[%s4532 + $0x70] sm:$0x7c]
      %v5143 = vld [vmem:[%s4532 + $0x98] sm:$0x7c]
      %v5144 = vld [vmem:[%s4532 + $0xc0] sm:$0x7c]
      %v5146 = vperm.slane %v5139, 0
      %v5147 = vperm.slane %v5139, 1
      %v5148 = vperm.slane %v5139, 2
      %v5152 = vmul.f32 %v4954, %v5146
      %v5153 = vmul.f32 %v5051, %v5147
      %v5154 = vmul.f32 %v5140, %v5148
      %v5155 = vmul.f32 %v4957, %v5146
      %v5156 = vmul.f32 %v5052, %v5147
      %v5157 = vmul.f32 %v5141, %v5148
      %v5158 = vmul.f32 %v4960, %v5146
      %v5159 = vmul.f32 %v5053, %v5147
      %v5160 = vmul.f32 %v5142, %v5148
      %v5161 = vmul.f32 %v4963, %v5146
      %v5162 = vmul.f32 %v5054, %v5147
      %v5163 = vmul.f32 %v5143, %v5148
      %v5164 = vmul.f32 %v4966, %v5146
      %v5165 = vmul.f32 %v5055, %v5147
      %v5166 = vmul.f32 %v5144, %v5148
      %v5182 = vrot.slane %v5152, 2
      %v5183 = vrot.slane %v5153, 2
      %v5184 = vrot.slane %v5154, 2
      %v5185 = vrot.slane %v5155, 2
      %v5186 = vrot.slane %v5156, 2
      %v5187 = vrot.slane %v5157, 2
      %v5188 = vrot.slane %v5158, 2
      %v5189 = vrot.slane %v5159, 2
      %v5190 = vrot.slane %v5160, 2
      %v5191 = vrot.slane %v5161, 2
      %v5192 = vrot.slane %v5162, 2
      %v5193 = vrot.slane %v5163, 2
      %v5194 = vrot.slane %v5164, 2
      %v5195 = vrot.slane %v5165, 2
      %v5196 = vrot.slane %v5166, 2
      %v5212 = vadd.f32 %v5123, %v5182
      %v5213 = vadd.f32 %v5124, %v5183
      %v5214 = vadd.f32 %v5125, %v5184
      %v5215 = vadd.f32 %v5126, %v5185
      %v5216 = vadd.f32 %v5127, %v5186
      %v5217 = vadd.f32 %v5128, %v5187
      %v5218 = vadd.f32 %v5129, %v5188
      %v5219 = vadd.f32 %v5130, %v5189
      %v5220 = vadd.f32 %v5131, %v5190
      %v5221 = vadd.f32 %v5132, %v5191
      %v5222 = vadd.f32 %v5133, %v5192
      %v5223 = vadd.f32 %v5134, %v5193
      %v5224 = vadd.f32 %v5135, %v5194
      %v5225 = vadd.f32 %v5136, %v5195
      %v5226 = vadd.f32 %v5137, %v5196
      %s5227 = scalar_lea.vmem %s0, 175
      %v5228 = vld [vmem:[%s5227] ss:$8 sm:$0x7]
      %s5229 = smul.addr %s1038, 8
      %s5230 = scalar_lea.vmem %s319, %s5229
      %v5231 = vld [vmem:[%s5230] sm:$0x1f]
      %v5232 = vld [vmem:[%s5230 + $0x8] sm:$0x1f]
      %v5233 = vld [vmem:[%s5230 + $0x10] sm:$0x1f]
      %v5234 = vld [vmem:[%s5230 + $0x28] sm:$0x1f]
      %v5235 = vld [vmem:[%s5230 + $0x30] sm:$0x1f]
      %v5236 = vld [vmem:[%s5230 + $0x38] sm:$0x1f]
      %v5237 = vld [vmem:[%s5230 + $0x50] sm:$0x1f]
      %v5238 = vld [vmem:[%s5230 + $0x58] sm:$0x1f]
      %v5239 = vld [vmem:[%s5230 + $0x60] sm:$0x1f]
      %v5240 = vld [vmem:[%s5230 + $0x78] sm:$0x1f]
      %v5241 = vld [vmem:[%s5230 + $0x80] sm:$0x1f]
      %v5242 = vld [vmem:[%s5230 + $0x88] sm:$0x1f]
      %v5243 = vld [vmem:[%s5230 + $0xa0] sm:$0x1f]
      %v5244 = vld [vmem:[%s5230 + $0xa8] sm:$0x1f]
      %v5245 = vld [vmem:[%s5230 + $0xb0] sm:$0x1f]
      %v5247 = vperm.slane %v5228, 0
      %v5248 = vperm.slane %v5228, 1
      %v5249 = vperm.slane %v5228, 2
      %v5253 = vmul.f32 %v5231, %v5247
      %v5254 = vmul.f32 %v5232, %v5248
      %v5255 = vmul.f32 %v5233, %v5249
      %v5256 = vmul.f32 %v5234, %v5247
      %v5257 = vmul.f32 %v5235, %v5248
      %v5258 = vmul.f32 %v5236, %v5249
      %v5259 = vmul.f32 %v5237, %v5247
      %v5260 = vmul.f32 %v5238, %v5248
      %v5261 = vmul.f32 %v5239, %v5249
      %v5262 = vmul.f32 %v5240, %v5247
      %v5263 = vmul.f32 %v5241, %v5248
      %v5264 = vmul.f32 %v5242, %v5249
      %v5265 = vmul.f32 %v5243, %v5247
      %v5266 = vmul.f32 %v5244, %v5248
      %v5267 = vmul.f32 %v5245, %v5249
      %v5268 = vadd.f32 %v5212, %v5253
      %v5269 = vadd.f32 %v5213, %v5254
      %v5270 = vadd.f32 %v5214, %v5255
      %v5271 = vadd.f32 %v5215, %v5256
      %v5272 = vadd.f32 %v5216, %v5257
      %v5273 = vadd.f32 %v5217, %v5258
      %v5274 = vadd.f32 %v5218, %v5259
      %v5275 = vadd.f32 %v5219, %v5260
      %v5276 = vadd.f32 %v5220, %v5261
      %v5277 = vadd.f32 %v5221, %v5262
      %v5278 = vadd.f32 %v5222, %v5263
      %v5279 = vadd.f32 %v5223, %v5264
      %v5280 = vadd.f32 %v5224, %v5265
      %v5281 = vadd.f32 %v5225, %v5266
      %v5282 = vadd.f32 %v5226, %v5267
      %s5283 = scalar_lea.vmem %s0, 192
      %v5284 = vld [vmem:[%s5283] ss:$8 sm:$0x7]
      %v5285 = vld [vmem:[%s5230 + $0x18] sm:$0x1f]
      %v5286 = vld [vmem:[%s5230 + $0x40] sm:$0x1f]
      %v5287 = vld [vmem:[%s5230 + $0x68] sm:$0x1f]
      %v5288 = vld [vmem:[%s5230 + $0x90] sm:$0x1f]
      %v5289 = vld [vmem:[%s5230 + $0xb8] sm:$0x1f]
      %v5291 = vperm.slane %v5284, 0
      %v5292 = vperm.slane %v5284, 1
      %v5293 = vperm.slane %v5284, 2
      %v5297 = vmul.f32 %v5232, %v5291
      %v5298 = vmul.f32 %v5233, %v5292
      %v5299 = vmul.f32 %v5285, %v5293
      %v5300 = vmul.f32 %v5235, %v5291
      %v5301 = vmul.f32 %v5236, %v5292
      %v5302 = vmul.f32 %v5286, %v5293
      %v5303 = vmul.f32 %v5238, %v5291
      %v5304 = vmul.f32 %v5239, %v5292
      %v5305 = vmul.f32 %v5287, %v5293
      %v5306 = vmul.f32 %v5241, %v5291
      %v5307 = vmul.f32 %v5242, %v5292
      %v5308 = vmul.f32 %v5288, %v5293
      %v5309 = vmul.f32 %v5244, %v5291
      %v5310 = vmul.f32 %v5245, %v5292
      %v5311 = vmul.f32 %v5289, %v5293
      %v5312 = vadd.f32 %v5268, %v5297
      %v5313 = vadd.f32 %v5269, %v5298
      %v5314 = vadd.f32 %v5270, %v5299
      %v5315 = vadd.f32 %v5271, %v5300
      %v5316 = vadd.f32 %v5272, %v5301
      %v5317 = vadd.f32 %v5273, %v5302
      %v5318 = vadd.f32 %v5274, %v5303
      %v5319 = vadd.f32 %v5275, %v5304
      %v5320 = vadd.f32 %v5276, %v5305
      %v5321 = vadd.f32 %v5277, %v5306
      %v5322 = vadd.f32 %v5278, %v5307
      %v5323 = vadd.f32 %v5279, %v5308
      %v5324 = vadd.f32 %v5280, %v5309
      %v5325 = vadd.f32 %v5281, %v5310
      %v5326 = vadd.f32 %v5282, %v5311
      %s5327 = scalar_lea.vmem %s0, 193
      %v5328 = vld [vmem:[%s5327] ss:$8 sm:$0x7]
      %v5329 = vld [vmem:[%s5230 + $0x20] sm:$0x1f]
      %v5330 = vld [vmem:[%s5230 + $0x48] sm:$0x1f]
      %v5331 = vld [vmem:[%s5230 + $0x70] sm:$0x1f]
      %v5332 = vld [vmem:[%s5230 + $0x98] sm:$0x1f]
      %v5333 = vld [vmem:[%s5230 + $0xc0] sm:$0x1f]
      %v5335 = vperm.slane %v5328, 0
      %v5336 = vperm.slane %v5328, 1
      %v5337 = vperm.slane %v5328, 2
      %v5341 = vmul.f32 %v5233, %v5335
      %v5342 = vmul.f32 %v5285, %v5336
      %v5343 = vmul.f32 %v5329, %v5337
      %v5344 = vmul.f32 %v5236, %v5335
      %v5345 = vmul.f32 %v5286, %v5336
      %v5346 = vmul.f32 %v5330, %v5337
      %v5347 = vmul.f32 %v5239, %v5335
      %v5348 = vmul.f32 %v5287, %v5336
      %v5349 = vmul.f32 %v5331, %v5337
      %v5350 = vmul.f32 %v5242, %v5335
      %v5351 = vmul.f32 %v5288, %v5336
      %v5352 = vmul.f32 %v5332, %v5337
      %v5353 = vmul.f32 %v5245, %v5335
      %v5354 = vmul.f32 %v5289, %v5336
      %v5355 = vmul.f32 %v5333, %v5337
      %v5356 = vadd.f32 %v5312, %v5341
      %v5357 = vadd.f32 %v5313, %v5342
      %v5358 = vadd.f32 %v5314, %v5343
      %v5359 = vadd.f32 %v5315, %v5344
      %v5360 = vadd.f32 %v5316, %v5345
      %v5361 = vadd.f32 %v5317, %v5346
      %v5362 = vadd.f32 %v5318, %v5347
      %v5363 = vadd.f32 %v5319, %v5348
      %v5364 = vadd.f32 %v5320, %v5349
      %v5365 = vadd.f32 %v5321, %v5350
      %v5366 = vadd.f32 %v5322, %v5351
      %v5367 = vadd.f32 %v5323, %v5352
      %v5368 = vadd.f32 %v5324, %v5353
      %v5369 = vadd.f32 %v5325, %v5354
      %v5370 = vadd.f32 %v5326, %v5355
      %s5371 = scalar_lea.vmem %s0, 194
      %v5372 = vld [vmem:[%s5371] ss:$8 sm:$0x7]
      %v5373 = vld [vmem:[%s5230] sm:$0x3e]
      %v5374 = vld [vmem:[%s5230 + $0x8] sm:$0x3e]
      %v5375 = vld [vmem:[%s5230 + $0x10] sm:$0x3e]
      %v5376 = vld [vmem:[%s5230 + $0x28] sm:$0x3e]
      %v5377 = vld [vmem:[%s5230 + $0x30] sm:$0x3e]
      %v5378 = vld [vmem:[%s5230 + $0x38] sm:$0x3e]
      %v5379 = vld [vmem:[%s5230 + $0x50] sm:$0x3e]
      %v5380 = vld [vmem:[%s5230 + $0x58] sm:$0x3e]
      %v5381 = vld [vmem:[%s5230 + $0x60] sm:$0x3e]
      %v5382 = vld [vmem:[%s5230 + $0x78] sm:$0x3e]
      %v5383 = vld [vmem:[%s5230 + $0x80] sm:$0x3e]
      %v5384 = vld [vmem:[%s5230 + $0x88] sm:$0x3e]
      %v5385 = vld [vmem:[%s5230 + $0xa0] sm:$0x3e]
      %v5386 = vld [vmem:[%s5230 + $0xa8] sm:$0x3e]
      %v5387 = vld [vmem:[%s5230 + $0xb0] sm:$0x3e]
      %v5389 = vperm.slane %v5372, 0
      %v5390 = vperm.slane %v5372, 1
      %v5391 = vperm.slane %v5372, 2
      %v5395 = vmul.f32 %v5373, %v5389
      %v5396 = vmul.f32 %v5374, %v5390
      %v5397 = vmul.f32 %v5375, %v5391
      %v5398 = vmul.f32 %v5376, %v5389
      %v5399 = vmul.f32 %v5377, %v5390
      %v5400 = vmul.f32 %v5378, %v5391
      %v5401 = vmul.f32 %v5379, %v5389
      %v5402 = vmul.f32 %v5380, %v5390
      %v5403 = vmul.f32 %v5381, %v5391
      %v5404 = vmul.f32 %v5382, %v5389
      %v5405 = vmul.f32 %v5383, %v5390
      %v5406 = vmul.f32 %v5384, %v5391
      %v5407 = vmul.f32 %v5385, %v5389
      %v5408 = vmul.f32 %v5386, %v5390
      %v5409 = vmul.f32 %v5387, %v5391
      %v5425 = vrot.slane %v5395, 1
      %v5426 = vrot.slane %v5396, 1
      %v5427 = vrot.slane %v5397, 1
      %v5428 = vrot.slane %v5398, 1
      %v5429 = vrot.slane %v5399, 1
      %v5430 = vrot.slane %v5400, 1
      %v5431 = vrot.slane %v5401, 1
      %v5432 = vrot.slane %v5402, 1
      %v5433 = vrot.slane %v5403, 1
      %v5434 = vrot.slane %v5404, 1
      %v5435 = vrot.slane %v5405, 1
      %v5436 = vrot.slane %v5406, 1
      %v5437 = vrot.slane %v5407, 1
      %v5438 = vrot.slane %v5408, 1
      %v5439 = vrot.slane %v5409, 1
      %v5455 = vadd.f32 %v5356, %v5425
      %v5456 = vadd.f32 %v5357, %v5426
      %v5457 = vadd.f32 %v5358, %v5427
      %v5458 = vadd.f32 %v5359, %v5428
      %v5459 = vadd.f32 %v5360, %v5429
      %v5460 = vadd.f32 %v5361, %v5430
      %v5461 = vadd.f32 %v5362, %v5431
      %v5462 = vadd.f32 %v5363, %v5432
      %v5463 = vadd.f32 %v5364, %v5433
      %v5464 = vadd.f32 %v5365, %v5434
      %v5465 = vadd.f32 %v5366, %v5435
      %v5466 = vadd.f32 %v5367, %v5436
      %v5467 = vadd.f32 %v5368, %v5437
      %v5468 = vadd.f32 %v5369, %v5438
      %v5469 = vadd.f32 %v5370, %v5439
      %s5470 = scalar_lea.vmem %s0, 195
      %v5471 = vld [vmem:[%s5470] ss:$8 sm:$0x7]
      %v5472 = vld [vmem:[%s5230 + $0x18] sm:$0x3e]
      %v5473 = vld [vmem:[%s5230 + $0x40] sm:$0x3e]
      %v5474 = vld [vmem:[%s5230 + $0x68] sm:$0x3e]
      %v5475 = vld [vmem:[%s5230 + $0x90] sm:$0x3e]
      %v5476 = vld [vmem:[%s5230 + $0xb8] sm:$0x3e]
      %v5478 = vperm.slane %v5471, 0
      %v5479 = vperm.slane %v5471, 1
      %v5480 = vperm.slane %v5471, 2
      %v5484 = vmul.f32 %v5374, %v5478
      %v5485 = vmul.f32 %v5375, %v5479
      %v5486 = vmul.f32 %v5472, %v5480
      %v5487 = vmul.f32 %v5377, %v5478
      %v5488 = vmul.f32 %v5378, %v5479
      %v5489 = vmul.f32 %v5473, %v5480
      %v5490 = vmul.f32 %v5380, %v5478
      %v5491 = vmul.f32 %v5381, %v5479
      %v5492 = vmul.f32 %v5474, %v5480
      %v5493 = vmul.f32 %v5383, %v5478
      %v5494 = vmul.f32 %v5384, %v5479
      %v5495 = vmul.f32 %v5475, %v5480
      %v5496 = vmul.f32 %v5386, %v5478
      %v5497 = vmul.f32 %v5387, %v5479
      %v5498 = vmul.f32 %v5476, %v5480
      %v5514 = vrot.slane %v5484, 1
      %v5515 = vrot.slane %v5485, 1
      %v5516 = vrot.slane %v5486, 1
      %v5517 = vrot.slane %v5487, 1
      %v5518 = vrot.slane %v5488, 1
      %v5519 = vrot.slane %v5489, 1
      %v5520 = vrot.slane %v5490, 1
      %v5521 = vrot.slane %v5491, 1
      %v5522 = vrot.slane %v5492, 1
      %v5523 = vrot.slane %v5493, 1
      %v5524 = vrot.slane %v5494, 1
      %v5525 = vrot.slane %v5495, 1
      %v5526 = vrot.slane %v5496, 1
      %v5527 = vrot.slane %v5497, 1
      %v5528 = vrot.slane %v5498, 1
      %v5544 = vadd.f32 %v5455, %v5514
      %v5545 = vadd.f32 %v5456, %v5515
      %v5546 = vadd.f32 %v5457, %v5516
      %v5547 = vadd.f32 %v5458, %v5517
      %v5548 = vadd.f32 %v5459, %v5518
      %v5549 = vadd.f32 %v5460, %v5519
      %v5550 = vadd.f32 %v5461, %v5520
      %v5551 = vadd.f32 %v5462, %v5521
      %v5552 = vadd.f32 %v5463, %v5522
      %v5553 = vadd.f32 %v5464, %v5523
      %v5554 = vadd.f32 %v5465, %v5524
      %v5555 = vadd.f32 %v5466, %v5525
      %v5556 = vadd.f32 %v5467, %v5526
      %v5557 = vadd.f32 %v5468, %v5527
      %v5558 = vadd.f32 %v5469, %v5528
      %s5559 = scalar_lea.vmem %s0, 196
      %v5560 = vld [vmem:[%s5559] ss:$8 sm:$0x7]
      %v5561 = vld [vmem:[%s5230 + $0x20] sm:$0x3e]
      %v5562 = vld [vmem:[%s5230 + $0x48] sm:$0x3e]
      %v5563 = vld [vmem:[%s5230 + $0x70] sm:$0x3e]
      %v5564 = vld [vmem:[%s5230 + $0x98] sm:$0x3e]
      %v5565 = vld [vmem:[%s5230 + $0xc0] sm:$0x3e]
      %v5567 = vperm.slane %v5560, 0
      %v5568 = vperm.slane %v5560, 1
      %v5569 = vperm.slane %v5560, 2
      %v5573 = vmul.f32 %v5375, %v5567
      %v5574 = vmul.f32 %v5472, %v5568
      %v5575 = vmul.f32 %v5561, %v5569
      %v5576 = vmul.f32 %v5378, %v5567
      %v5577 = vmul.f32 %v5473, %v5568
      %v5578 = vmul.f32 %v5562, %v5569
      %v5579 = vmul.f32 %v5381, %v5567
      %v5580 = vmul.f32 %v5474, %v5568
      %v5581 = vmul.f32 %v5563, %v5569
      %v5582 = vmul.f32 %v5384, %v5567
      %v5583 = vmul.f32 %v5475, %v5568
      %v5584 = vmul.f32 %v5564, %v5569
      %v5585 = vmul.f32 %v5387, %v5567
      %v5586 = vmul.f32 %v5476, %v5568
      %v5587 = vmul.f32 %v5565, %v5569
      %v5603 = vrot.slane %v5573, 1
      %v5604 = vrot.slane %v5574, 1
      %v5605 = vrot.slane %v5575, 1
      %v5606 = vrot.slane %v5576, 1
      %v5607 = vrot.slane %v5577, 1
      %v5608 = vrot.slane %v5578, 1
      %v5609 = vrot.slane %v5579, 1
      %v5610 = vrot.slane %v5580, 1
      %v5611 = vrot.slane %v5581, 1
      %v5612 = vrot.slane %v5582, 1
      %v5613 = vrot.slane %v5583, 1
      %v5614 = vrot.slane %v5584, 1
      %v5615 = vrot.slane %v5585, 1
      %v5616 = vrot.slane %v5586, 1
      %v5617 = vrot.slane %v5587, 1
      %v5633 = vadd.f32 %v5544, %v5603
      %v5634 = vadd.f32 %v5545, %v5604
      %v5635 = vadd.f32 %v5546, %v5605
      %v5636 = vadd.f32 %v5547, %v5606
      %v5637 = vadd.f32 %v5548, %v5607
      %v5638 = vadd.f32 %v5549, %v5608
      %v5639 = vadd.f32 %v5550, %v5609
      %v5640 = vadd.f32 %v5551, %v5610
      %v5641 = vadd.f32 %v5552, %v5611
      %v5642 = vadd.f32 %v5553, %v5612
      %v5643 = vadd.f32 %v5554, %v5613
      %v5644 = vadd.f32 %v5555, %v5614
      %v5645 = vadd.f32 %v5556, %v5615
      %v5646 = vadd.f32 %v5557, %v5616
      %v5647 = vadd.f32 %v5558, %v5617
      %s5648 = scalar_lea.vmem %s0, 197
      %v5649 = vld [vmem:[%s5648] ss:$8 sm:$0x7]
      %v5650 = vld [vmem:[%s5230] sm:$0x7c]
      %v5651 = vld [vmem:[%s5230 + $0x8] sm:$0x7c]
      %v5652 = vld [vmem:[%s5230 + $0x10] sm:$0x7c]
      %v5653 = vld [vmem:[%s5230 + $0x28] sm:$0x7c]
      %v5654 = vld [vmem:[%s5230 + $0x30] sm:$0x7c]
      %v5655 = vld [vmem:[%s5230 + $0x38] sm:$0x7c]
      %v5656 = vld [vmem:[%s5230 + $0x50] sm:$0x7c]
      %v5657 = vld [vmem:[%s5230 + $0x58] sm:$0x7c]
      %v5658 = vld [vmem:[%s5230 + $0x60] sm:$0x7c]
      %v5659 = vld [vmem:[%s5230 + $0x78] sm:$0x7c]
      %v5660 = vld [vmem:[%s5230 + $0x80] sm:$0x7c]
      %v5661 = vld [vmem:[%s5230 + $0x88] sm:$0x7c]
      %v5662 = vld [vmem:[%s5230 + $0xa0] sm:$0x7c]
      %v5663 = vld [vmem:[%s5230 + $0xa8] sm:$0x7c]
      %v5664 = vld [vmem:[%s5230 + $0xb0] sm:$0x7c]
      %v5666 = vperm.slane %v5649, 0
      %v5667 = vperm.slane %v5649, 1
      %v5668 = vperm.slane %v5649, 2
      %v5672 = vmul.f32 %v5650, %v5666
      %v5673 = vmul.f32 %v5651, %v5667
      %v5674 = vmul.f32 %v5652, %v5668
      %v5675 = vmul.f32 %v5653, %v5666
      %v5676 = vmul.f32 %v5654, %v5667
      %v5677 = vmul.f32 %v5655, %v5668
      %v5678 = vmul.f32 %v5656, %v5666
      %v5679 = vmul.f32 %v5657, %v5667
      %v5680 = vmul.f32 %v5658, %v5668
      %v5681 = vmul.f32 %v5659, %v5666
      %v5682 = vmul.f32 %v5660, %v5667
      %v5683 = vmul.f32 %v5661, %v5668
      %v5684 = vmul.f32 %v5662, %v5666
      %v5685 = vmul.f32 %v5663, %v5667
      %v5686 = vmul.f32 %v5664, %v5668
      %v5702 = vrot.slane %v5672, 2
      %v5703 = vrot.slane %v5673, 2
      %v5704 = vrot.slane %v5674, 2
      %v5705 = vrot.slane %v5675, 2
      %v5706 = vrot.slane %v5676, 2
      %v5707 = vrot.slane %v5677, 2
      %v5708 = vrot.slane %v5678, 2
      %v5709 = vrot.slane %v5679, 2
      %v5710 = vrot.slane %v5680, 2
      %v5711 = vrot.slane %v5681, 2
      %v5712 = vrot.slane %v5682, 2
      %v5713 = vrot.slane %v5683, 2
      %v5714 = vrot.slane %v5684, 2
      %v5715 = vrot.slane %v5685, 2
      %v5716 = vrot.slane %v5686, 2
      %v5732 = vadd.f32 %v5633, %v5702
      %v5733 = vadd.f32 %v5634, %v5703
      %v5734 = vadd.f32 %v5635, %v5704
      %v5735 = vadd.f32 %v5636, %v5705
      %v5736 = vadd.f32 %v5637, %v5706
      %v5737 = vadd.f32 %v5638, %v5707
      %v5738 = vadd.f32 %v5639, %v5708
      %v5739 = vadd.f32 %v5640, %v5709
      %v5740 = vadd.f32 %v5641, %v5710
      %v5741 = vadd.f32 %v5642, %v5711
      %v5742 = vadd.f32 %v5643, %v5712
      %v5743 = vadd.f32 %v5644, %v5713
      %v5744 = vadd.f32 %v5645, %v5714
      %v5745 = vadd.f32 %v5646, %v5715
      %v5746 = vadd.f32 %v5647, %v5716
      %s5747 = scalar_lea.vmem %s0, 198
      %v5748 = vld [vmem:[%s5747] ss:$8 sm:$0x7]
      %v5749 = vld [vmem:[%s5230 + $0x18] sm:$0x7c]
      %v5750 = vld [vmem:[%s5230 + $0x40] sm:$0x7c]
      %v5751 = vld [vmem:[%s5230 + $0x68] sm:$0x7c]
      %v5752 = vld [vmem:[%s5230 + $0x90] sm:$0x7c]
      %v5753 = vld [vmem:[%s5230 + $0xb8] sm:$0x7c]
      %v5755 = vperm.slane %v5748, 0
      %v5756 = vperm.slane %v5748, 1
      %v5757 = vperm.slane %v5748, 2
      %v5761 = vmul.f32 %v5651, %v5755
      %v5762 = vmul.f32 %v5652, %v5756
      %v5763 = vmul.f32 %v5749, %v5757
      %v5764 = vmul.f32 %v5654, %v5755
      %v5765 = vmul.f32 %v5655, %v5756
      %v5766 = vmul.f32 %v5750, %v5757
      %v5767 = vmul.f32 %v5657, %v5755
      %v5768 = vmul.f32 %v5658, %v5756
      %v5769 = vmul.f32 %v5751, %v5757
      %v5770 = vmul.f32 %v5660, %v5755
      %v5771 = vmul.f32 %v5661, %v5756
      %v5772 = vmul.f32 %v5752, %v5757
      %v5773 = vmul.f32 %v5663, %v5755
      %v5774 = vmul.f32 %v5664, %v5756
      %v5775 = vmul.f32 %v5753, %v5757
      %v5791 = vrot.slane %v5761, 2
      %v5792 = vrot.slane %v5762, 2
      %v5793 = vrot.slane %v5763, 2
      %v5794 = vrot.slane %v5764, 2
      %v5795 = vrot.slane %v5765, 2
      %v5796 = vrot.slane %v5766, 2
      %v5797 = vrot.slane %v5767, 2
      %v5798 = vrot.slane %v5768, 2
      %v5799 = vrot.slane %v5769, 2
      %v5800 = vrot.slane %v5770, 2
      %v5801 = vrot.slane %v5771, 2
      %v5802 = vrot.slane %v5772, 2
      %v5803 = vrot.slane %v5773, 2
      %v5804 = vrot.slane %v5774, 2
      %v5805 = vrot.slane %v5775, 2
      %v5821 = vadd.f32 %v5732, %v5791
      %v5822 = vadd.f32 %v5733, %v5792
      %v5823 = vadd.f32 %v5734, %v5793
      %v5824 = vadd.f32 %v5735, %v5794
      %v5825 = vadd.f32 %v5736, %v5795
      %v5826 = vadd.f32 %v5737, %v5796
      %v5827 = vadd.f32 %v5738, %v5797
      %v5828 = vadd.f32 %v5739, %v5798
      %v5829 = vadd.f32 %v5740, %v5799
      %v5830 = vadd.f32 %v5741, %v5800
      %v5831 = vadd.f32 %v5742, %v5801
      %v5832 = vadd.f32 %v5743, %v5802
      %v5833 = vadd.f32 %v5744, %v5803
      %v5834 = vadd.f32 %v5745, %v5804
      %v5835 = vadd.f32 %v5746, %v5805
      %s5836 = scalar_lea.vmem %s0, 199
      %v5837 = vld [vmem:[%s5836] ss:$8 sm:$0x7]
      %v5838 = vld [vmem:[%s5230 + $0x20] sm:$0x7c]
      %v5839 = vld [vmem:[%s5230 + $0x48] sm:$0x7c]
      %v5840 = vld [vmem:[%s5230 + $0x70] sm:$0x7c]
      %v5841 = vld [vmem:[%s5230 + $0x98] sm:$0x7c]
      %v5842 = vld [vmem:[%s5230 + $0xc0] sm:$0x7c]
      %v5844 = vperm.slane %v5837, 0
      %v5845 = vperm.slane %v5837, 1
      %v5846 = vperm.slane %v5837, 2
      %v5850 = vmul.f32 %v5652, %v5844
      %v5851 = vmul.f32 %v5749, %v5845
      %v5852 = vmul.f32 %v5838, %v5846
      %v5853 = vmul.f32 %v5655, %v5844
      %v5854 = vmul.f32 %v5750, %v5845
      %v5855 = vmul.f32 %v5839, %v5846
      %v5856 = vmul.f32 %v5658, %v5844
      %v5857 = vmul.f32 %v5751, %v5845
      %v5858 = vmul.f32 %v5840, %v5846
      %v5859 = vmul.f32 %v5661, %v5844
      %v5860 = vmul.f32 %v5752, %v5845
      %v5861 = vmul.f32 %v5841, %v5846
      %v5862 = vmul.f32 %v5664, %v5844
      %v5863 = vmul.f32 %v5753, %v5845
      %v5864 = vmul.f32 %v5842, %v5846
      %v5880 = vrot.slane %v5850, 2
      %v5881 = vrot.slane %v5851, 2
      %v5882 = vrot.slane %v5852, 2
      %v5883 = vrot.slane %v5853, 2
      %v5884 = vrot.slane %v5854, 2
      %v5885 = vrot.slane %v5855, 2
      %v5886 = vrot.slane %v5856, 2
      %v5887 = vrot.slane %v5857, 2
      %v5888 = vrot.slane %v5858, 2
      %v5889 = vrot.slane %v5859, 2
      %v5890 = vrot.slane %v5860, 2
      %v5891 = vrot.slane %v5861, 2
      %v5892 = vrot.slane %v5862, 2
      %v5893 = vrot.slane %v5863, 2
      %v5894 = vrot.slane %v5864, 2
      %v5910 = vadd.f32 %v5821, %v5880
      %v5911 = vadd.f32 %v5822, %v5881
      %v5912 = vadd.f32 %v5823, %v5882
      %v5913 = vadd.f32 %v5824, %v5883
      %v5914 = vadd.f32 %v5825, %v5884
      %v5915 = vadd.f32 %v5826, %v5885
      %v5916 = vadd.f32 %v5827, %v5886
      %v5917 = vadd.f32 %v5828, %v5887
      %v5918 = vadd.f32 %v5829, %v5888
      %v5919 = vadd.f32 %v5830, %v5889
      %v5920 = vadd.f32 %v5831, %v5890
      %v5921 = vadd.f32 %v5832, %v5891
      %v5922 = vadd.f32 %v5833, %v5892
      %v5923 = vadd.f32 %v5834, %v5893
      %v5924 = vadd.f32 %v5835, %v5894
      %s5925 = scalar_lea.vmem %s0, 216
      %v5926 = vld [vmem:[%s5925] ss:$8 sm:$0x7]
      %s5927 = smul.addr %s1738, 8
      %s5928 = scalar_lea.vmem %s319, %s5927
      %v5929 = vld [vmem:[%s5928] sm:$0x1f]
      %v5930 = vld [vmem:[%s5928 + $0x8] sm:$0x1f]
      %v5931 = vld [vmem:[%s5928 + $0x10] sm:$0x1f]
      %v5932 = vld [vmem:[%s5928 + $0x28] sm:$0x1f]
      %v5933 = vld [vmem:[%s5928 + $0x30] sm:$0x1f]
      %v5934 = vld [vmem:[%s5928 + $0x38] sm:$0x1f]
      %v5935 = vld [vmem:[%s5928 + $0x50] sm:$0x1f]
      %v5936 = vld [vmem:[%s5928 + $0x58] sm:$0x1f]
      %v5937 = vld [vmem:[%s5928 + $0x60] sm:$0x1f]
      %v5938 = vld [vmem:[%s5928 + $0x78] sm:$0x1f]
      %v5939 = vld [vmem:[%s5928 + $0x80] sm:$0x1f]
      %v5940 = vld [vmem:[%s5928 + $0x88] sm:$0x1f]
      %v5941 = vld [vmem:[%s5928 + $0xa0] sm:$0x1f]
      %v5942 = vld [vmem:[%s5928 + $0xa8] sm:$0x1f]
      %v5943 = vld [vmem:[%s5928 + $0xb0] sm:$0x1f]
      %v5945 = vperm.slane %v5926, 0
      %v5946 = vperm.slane %v5926, 1
      %v5947 = vperm.slane %v5926, 2
      %v5951 = vmul.f32 %v5929, %v5945
      %v5952 = vmul.f32 %v5930, %v5946
      %v5953 = vmul.f32 %v5931, %v5947
      %v5954 = vmul.f32 %v5932, %v5945
      %v5955 = vmul.f32 %v5933, %v5946
      %v5956 = vmul.f32 %v5934, %v5947
      %v5957 = vmul.f32 %v5935, %v5945
      %v5958 = vmul.f32 %v5936, %v5946
      %v5959 = vmul.f32 %v5937, %v5947
      %v5960 = vmul.f32 %v5938, %v5945
      %v5961 = vmul.f32 %v5939, %v5946
      %v5962 = vmul.f32 %v5940, %v5947
      %v5963 = vmul.f32 %v5941, %v5945
      %v5964 = vmul.f32 %v5942, %v5946
      %v5965 = vmul.f32 %v5943, %v5947
      %v5966 = vadd.f32 %v5910, %v5951
      %v5967 = vadd.f32 %v5911, %v5952
      %v5968 = vadd.f32 %v5912, %v5953
      %v5969 = vadd.f32 %v5913, %v5954
      %v5970 = vadd.f32 %v5914, %v5955
      %v5971 = vadd.f32 %v5915, %v5956
      %v5972 = vadd.f32 %v5916, %v5957
      %v5973 = vadd.f32 %v5917, %v5958
      %v5974 = vadd.f32 %v5918, %v5959
      %v5975 = vadd.f32 %v5919, %v5960
      %v5976 = vadd.f32 %v5920, %v5961
      %v5977 = vadd.f32 %v5921, %v5962
      %v5978 = vadd.f32 %v5922, %v5963
      %v5979 = vadd.f32 %v5923, %v5964
      %v5980 = vadd.f32 %v5924, %v5965
      %s5981 = scalar_lea.vmem %s0, 217
      %v5982 = vld [vmem:[%s5981] ss:$8 sm:$0x7]
      %v5983 = vld [vmem:[%s5928 + $0x18] sm:$0x1f]
      %v5984 = vld [vmem:[%s5928 + $0x40] sm:$0x1f]
      %v5985 = vld [vmem:[%s5928 + $0x68] sm:$0x1f]
      %v5986 = vld [vmem:[%s5928 + $0x90] sm:$0x1f]
      %v5987 = vld [vmem:[%s5928 + $0xb8] sm:$0x1f]
      %v5989 = vperm.slane %v5982, 0
      %v5990 = vperm.slane %v5982, 1
      %v5991 = vperm.slane %v5982, 2
      %v5995 = vmul.f32 %v5930, %v5989
      %v5996 = vmul.f32 %v5931, %v5990
      %v5997 = vmul.f32 %v5983, %v5991
      %v5998 = vmul.f32 %v5933, %v5989
      %v5999 = vmul.f32 %v5934, %v5990
      %v6000 = vmul.f32 %v5984, %v5991
      %v6001 = vmul.f32 %v5936, %v5989
      %v6002 = vmul.f32 %v5937, %v5990
      %v6003 = vmul.f32 %v5985, %v5991
      %v6004 = vmul.f32 %v5939, %v5989
      %v6005 = vmul.f32 %v5940, %v5990
      %v6006 = vmul.f32 %v5986, %v5991
      %v6007 = vmul.f32 %v5942, %v5989
      %v6008 = vmul.f32 %v5943, %v5990
      %v6009 = vmul.f32 %v5987, %v5991
      %v6010 = vadd.f32 %v5966, %v5995
      %v6011 = vadd.f32 %v5967, %v5996
      %v6012 = vadd.f32 %v5968, %v5997
      %v6013 = vadd.f32 %v5969, %v5998
      %v6014 = vadd.f32 %v5970, %v5999
      %v6015 = vadd.f32 %v5971, %v6000
      %v6016 = vadd.f32 %v5972, %v6001
      %v6017 = vadd.f32 %v5973, %v6002
      %v6018 = vadd.f32 %v5974, %v6003
      %v6019 = vadd.f32 %v5975, %v6004
      %v6020 = vadd.f32 %v5976, %v6005
      %v6021 = vadd.f32 %v5977, %v6006
      %v6022 = vadd.f32 %v5978, %v6007
      %v6023 = vadd.f32 %v5979, %v6008
      %v6024 = vadd.f32 %v5980, %v6009
      %s6025 = scalar_lea.vmem %s0, 218
      %v6026 = vld [vmem:[%s6025] ss:$8 sm:$0x7]
      %v6027 = vld [vmem:[%s5928 + $0x20] sm:$0x1f]
      %v6028 = vld [vmem:[%s5928 + $0x48] sm:$0x1f]
      %v6029 = vld [vmem:[%s5928 + $0x70] sm:$0x1f]
      %v6030 = vld [vmem:[%s5928 + $0x98] sm:$0x1f]
      %v6031 = vld [vmem:[%s5928 + $0xc0] sm:$0x1f]
      %v6033 = vperm.slane %v6026, 0
      %v6034 = vperm.slane %v6026, 1
      %v6035 = vperm.slane %v6026, 2
      %v6039 = vmul.f32 %v5931, %v6033
      %v6040 = vmul.f32 %v5983, %v6034
      %v6041 = vmul.f32 %v6027, %v6035
      %v6042 = vmul.f32 %v5934, %v6033
      %v6043 = vmul.f32 %v5984, %v6034
      %v6044 = vmul.f32 %v6028, %v6035
      %v6045 = vmul.f32 %v5937, %v6033
      %v6046 = vmul.f32 %v5985, %v6034
      %v6047 = vmul.f32 %v6029, %v6035
      %v6048 = vmul.f32 %v5940, %v6033
      %v6049 = vmul.f32 %v5986, %v6034
      %v6050 = vmul.f32 %v6030, %v6035
      %v6051 = vmul.f32 %v5943, %v6033
      %v6052 = vmul.f32 %v5987, %v6034
      %v6053 = vmul.f32 %v6031, %v6035
      %v6054 = vadd.f32 %v6010, %v6039
      %v6055 = vadd.f32 %v6011, %v6040
      %v6056 = vadd.f32 %v6012, %v6041
      %v6057 = vadd.f32 %v6013, %v6042
      %v6058 = vadd.f32 %v6014, %v6043
      %v6059 = vadd.f32 %v6015, %v6044
      %v6060 = vadd.f32 %v6016, %v6045
      %v6061 = vadd.f32 %v6017, %v6046
      %v6062 = vadd.f32 %v6018, %v6047
      %v6063 = vadd.f32 %v6019, %v6048
      %v6064 = vadd.f32 %v6020, %v6049
      %v6065 = vadd.f32 %v6021, %v6050
      %v6066 = vadd.f32 %v6022, %v6051
      %v6067 = vadd.f32 %v6023, %v6052
      %v6068 = vadd.f32 %v6024, %v6053
      %s6069 = scalar_lea.vmem %s0, 219
      %v6070 = vld [vmem:[%s6069] ss:$8 sm:$0x7]
      %v6071 = vld [vmem:[%s5928] sm:$0x3e]
      %v6072 = vld [vmem:[%s5928 + $0x8] sm:$0x3e]
      %v6073 = vld [vmem:[%s5928 + $0x10] sm:$0x3e]
      %v6074 = vld [vmem:[%s5928 + $0x28] sm:$0x3e]
      %v6075 = vld [vmem:[%s5928 + $0x30] sm:$0x3e]
      %v6076 = vld [vmem:[%s5928 + $0x38] sm:$0x3e]
      %v6077 = vld [vmem:[%s5928 + $0x50] sm:$0x3e]
      %v6078 = vld [vmem:[%s5928 + $0x58] sm:$0x3e]
      %v6079 = vld [vmem:[%s5928 + $0x60] sm:$0x3e]
      %v6080 = vld [vmem:[%s5928 + $0x78] sm:$0x3e]
      %v6081 = vld [vmem:[%s5928 + $0x80] sm:$0x3e]
      %v6082 = vld [vmem:[%s5928 + $0x88] sm:$0x3e]
      %v6083 = vld [vmem:[%s5928 + $0xa0] sm:$0x3e]
      %v6084 = vld [vmem:[%s5928 + $0xa8] sm:$0x3e]
      %v6085 = vld [vmem:[%s5928 + $0xb0] sm:$0x3e]
      %v6087 = vperm.slane %v6070, 0
      %v6088 = vperm.slane %v6070, 1
      %v6089 = vperm.slane %v6070, 2
      %v6093 = vmul.f32 %v6071, %v6087
      %v6094 = vmul.f32 %v6072, %v6088
      %v6095 = vmul.f32 %v6073, %v6089
      %v6096 = vmul.f32 %v6074, %v6087
      %v6097 = vmul.f32 %v6075, %v6088
      %v6098 = vmul.f32 %v6076, %v6089
      %v6099 = vmul.f32 %v6077, %v6087
      %v6100 = vmul.f32 %v6078, %v6088
      %v6101 = vmul.f32 %v6079, %v6089
      %v6102 = vmul.f32 %v6080, %v6087
      %v6103 = vmul.f32 %v6081, %v6088
      %v6104 = vmul.f32 %v6082, %v6089
      %v6105 = vmul.f32 %v6083, %v6087
      %v6106 = vmul.f32 %v6084, %v6088
      %v6107 = vmul.f32 %v6085, %v6089
      %v6123 = vrot.slane %v6093, 1
      %v6124 = vrot.slane %v6094, 1
      %v6125 = vrot.slane %v6095, 1
      %v6126 = vrot.slane %v6096, 1
      %v6127 = vrot.slane %v6097, 1
      %v6128 = vrot.slane %v6098, 1
      %v6129 = vrot.slane %v6099, 1
      %v6130 = vrot.slane %v6100, 1
      %v6131 = vrot.slane %v6101, 1
      %v6132 = vrot.slane %v6102, 1
      %v6133 = vrot.slane %v6103, 1
      %v6134 = vrot.slane %v6104, 1
      %v6135 = vrot.slane %v6105, 1
      %v6136 = vrot.slane %v6106, 1
      %v6137 = vrot.slane %v6107, 1
      %v6153 = vadd.f32 %v6054, %v6123
      %v6154 = vadd.f32 %v6055, %v6124
      %v6155 = vadd.f32 %v6056, %v6125
      %v6156 = vadd.f32 %v6057, %v6126
      %v6157 = vadd.f32 %v6058, %v6127
      %v6158 = vadd.f32 %v6059, %v6128
      %v6159 = vadd.f32 %v6060, %v6129
      %v6160 = vadd.f32 %v6061, %v6130
      %v6161 = vadd.f32 %v6062, %v6131
      %v6162 = vadd.f32 %v6063, %v6132
      %v6163 = vadd.f32 %v6064, %v6133
      %v6164 = vadd.f32 %v6065, %v6134
      %v6165 = vadd.f32 %v6066, %v6135
      %v6166 = vadd.f32 %v6067, %v6136
      %v6167 = vadd.f32 %v6068, %v6137
      %s6168 = scalar_lea.vmem %s0, 220
      %v6169 = vld [vmem:[%s6168] ss:$8 sm:$0x7]
      %v6170 = vld [vmem:[%s5928 + $0x18] sm:$0x3e]
      %v6171 = vld [vmem:[%s5928 + $0x40] sm:$0x3e]
      %v6172 = vld [vmem:[%s5928 + $0x68] sm:$0x3e]
      %v6173 = vld [vmem:[%s5928 + $0x90] sm:$0x3e]
      %v6174 = vld [vmem:[%s5928 + $0xb8] sm:$0x3e]
      %v6176 = vperm.slane %v6169, 0
      %v6177 = vperm.slane %v6169, 1
      %v6178 = vperm.slane %v6169, 2
      %v6182 = vmul.f32 %v6072, %v6176
      %v6183 = vmul.f32 %v6073, %v6177
      %v6184 = vmul.f32 %v6170, %v6178
      %v6185 = vmul.f32 %v6075, %v6176
      %v6186 = vmul.f32 %v6076, %v6177
      %v6187 = vmul.f32 %v6171, %v6178
      %v6188 = vmul.f32 %v6078, %v6176
      %v6189 = vmul.f32 %v6079, %v6177
      %v6190 = vmul.f32 %v6172, %v6178
      %v6191 = vmul.f32 %v6081, %v6176
      %v6192 = vmul.f32 %v6082, %v6177
      %v6193 = vmul.f32 %v6173, %v6178
      %v6194 = vmul.f32 %v6084, %v6176
      %v6195 = vmul.f32 %v6085, %v6177
      %v6196 = vmul.f32 %v6174, %v6178
      %v6212 = vrot.slane %v6182, 1
      %v6213 = vrot.slane %v6183, 1
      %v6214 = vrot.slane %v6184, 1
      %v6215 = vrot.slane %v6185, 1
      %v6216 = vrot.slane %v6186, 1
      %v6217 = vrot.slane %v6187, 1
      %v6218 = vrot.slane %v6188, 1
      %v6219 = vrot.slane %v6189, 1
      %v6220 = vrot.slane %v6190, 1
      %v6221 = vrot.slane %v6191, 1
      %v6222 = vrot.slane %v6192, 1
      %v6223 = vrot.slane %v6193, 1
      %v6224 = vrot.slane %v6194, 1
      %v6225 = vrot.slane %v6195, 1
      %v6226 = vrot.slane %v6196, 1
      %v6242 = vadd.f32 %v6153, %v6212
      %v6243 = vadd.f32 %v6154, %v6213
      %v6244 = vadd.f32 %v6155, %v6214
      %v6245 = vadd.f32 %v6156, %v6215
      %v6246 = vadd.f32 %v6157, %v6216
      %v6247 = vadd.f32 %v6158, %v6217
      %v6248 = vadd.f32 %v6159, %v6218
      %v6249 = vadd.f32 %v6160, %v6219
      %v6250 = vadd.f32 %v6161, %v6220
      %v6251 = vadd.f32 %v6162, %v6221
      %v6252 = vadd.f32 %v6163, %v6222
      %v6253 = vadd.f32 %v6164, %v6223
      %v6254 = vadd.f32 %v6165, %v6224
      %v6255 = vadd.f32 %v6166, %v6225
      %v6256 = vadd.f32 %v6167, %v6226
      %s6257 = scalar_lea.vmem %s0, 221
      %v6258 = vld [vmem:[%s6257] ss:$8 sm:$0x7]
      %v6259 = vld [vmem:[%s5928 + $0x20] sm:$0x3e]
      %v6260 = vld [vmem:[%s5928 + $0x48] sm:$0x3e]
      %v6261 = vld [vmem:[%s5928 + $0x70] sm:$0x3e]
      %v6262 = vld [vmem:[%s5928 + $0x98] sm:$0x3e]
      %v6263 = vld [vmem:[%s5928 + $0xc0] sm:$0x3e]
      %v6265 = vperm.slane %v6258, 0
      %v6266 = vperm.slane %v6258, 1
      %v6267 = vperm.slane %v6258, 2
      %v6271 = vmul.f32 %v6073, %v6265
      %v6272 = vmul.f32 %v6170, %v6266
      %v6273 = vmul.f32 %v6259, %v6267
      %v6274 = vmul.f32 %v6076, %v6265
      %v6275 = vmul.f32 %v6171, %v6266
      %v6276 = vmul.f32 %v6260, %v6267
      %v6277 = vmul.f32 %v6079, %v6265
      %v6278 = vmul.f32 %v6172, %v6266
      %v6279 = vmul.f32 %v6261, %v6267
      %v6280 = vmul.f32 %v6082, %v6265
      %v6281 = vmul.f32 %v6173, %v6266
      %v6282 = vmul.f32 %v6262, %v6267
      %v6283 = vmul.f32 %v6085, %v6265
      %v6284 = vmul.f32 %v6174, %v6266
      %v6285 = vmul.f32 %v6263, %v6267
      %v6301 = vrot.slane %v6271, 1
      %v6302 = vrot.slane %v6272, 1
      %v6303 = vrot.slane %v6273, 1
      %v6304 = vrot.slane %v6274, 1
      %v6305 = vrot.slane %v6275, 1
      %v6306 = vrot.slane %v6276, 1
      %v6307 = vrot.slane %v6277, 1
      %v6308 = vrot.slane %v6278, 1
      %v6309 = vrot.slane %v6279, 1
      %v6310 = vrot.slane %v6280, 1
      %v6311 = vrot.slane %v6281, 1
      %v6312 = vrot.slane %v6282, 1
      %v6313 = vrot.slane %v6283, 1
      %v6314 = vrot.slane %v6284, 1
      %v6315 = vrot.slane %v6285, 1
      %v6331 = vadd.f32 %v6242, %v6301
      %v6332 = vadd.f32 %v6243, %v6302
      %v6333 = vadd.f32 %v6244, %v6303
      %v6334 = vadd.f32 %v6245, %v6304
      %v6335 = vadd.f32 %v6246, %v6305
      %v6336 = vadd.f32 %v6247, %v6306
      %v6337 = vadd.f32 %v6248, %v6307
      %v6338 = vadd.f32 %v6249, %v6308
      %v6339 = vadd.f32 %v6250, %v6309
      %v6340 = vadd.f32 %v6251, %v6310
      %v6341 = vadd.f32 %v6252, %v6311
      %v6342 = vadd.f32 %v6253, %v6312
      %v6343 = vadd.f32 %v6254, %v6313
      %v6344 = vadd.f32 %v6255, %v6314
      %v6345 = vadd.f32 %v6256, %v6315
      %s6346 = scalar_lea.vmem %s0, 222
      %v6347 = vld [vmem:[%s6346] ss:$8 sm:$0x7]
      %v6348 = vld [vmem:[%s5928] sm:$0x7c]
      %v6349 = vld [vmem:[%s5928 + $0x8] sm:$0x7c]
      %v6350 = vld [vmem:[%s5928 + $0x10] sm:$0x7c]
      %v6351 = vld [vmem:[%s5928 + $0x28] sm:$0x7c]
      %v6352 = vld [vmem:[%s5928 + $0x30] sm:$0x7c]
      %v6353 = vld [vmem:[%s5928 + $0x38] sm:$0x7c]
      %v6354 = vld [vmem:[%s5928 + $0x50] sm:$0x7c]
      %v6355 = vld [vmem:[%s5928 + $0x58] sm:$0x7c]
      %v6356 = vld [vmem:[%s5928 + $0x60] sm:$0x7c]
      %v6357 = vld [vmem:[%s5928 + $0x78] sm:$0x7c]
      %v6358 = vld [vmem:[%s5928 + $0x80] sm:$0x7c]
      %v6359 = vld [vmem:[%s5928 + $0x88] sm:$0x7c]
      %v6360 = vld [vmem:[%s5928 + $0xa0] sm:$0x7c]
      %v6361 = vld [vmem:[%s5928 + $0xa8] sm:$0x7c]
      %v6362 = vld [vmem:[%s5928 + $0xb0] sm:$0x7c]
      %v6364 = vperm.slane %v6347, 0
      %v6365 = vperm.slane %v6347, 1
      %v6366 = vperm.slane %v6347, 2
      %v6370 = vmul.f32 %v6348, %v6364
      %v6371 = vmul.f32 %v6349, %v6365
      %v6372 = vmul.f32 %v6350, %v6366
      %v6373 = vmul.f32 %v6351, %v6364
      %v6374 = vmul.f32 %v6352, %v6365
      %v6375 = vmul.f32 %v6353, %v6366
      %v6376 = vmul.f32 %v6354, %v6364
      %v6377 = vmul.f32 %v6355, %v6365
      %v6378 = vmul.f32 %v6356, %v6366
      %v6379 = vmul.f32 %v6357, %v6364
      %v6380 = vmul.f32 %v6358, %v6365
      %v6381 = vmul.f32 %v6359, %v6366
      %v6382 = vmul.f32 %v6360, %v6364
      %v6383 = vmul.f32 %v6361, %v6365
      %v6384 = vmul.f32 %v6362, %v6366
      %v6400 = vrot.slane %v6370, 2
      %v6401 = vrot.slane %v6371, 2
      %v6402 = vrot.slane %v6372, 2
      %v6403 = vrot.slane %v6373, 2
      %v6404 = vrot.slane %v6374, 2
      %v6405 = vrot.slane %v6375, 2
      %v6406 = vrot.slane %v6376, 2
      %v6407 = vrot.slane %v6377, 2
      %v6408 = vrot.slane %v6378, 2
      %v6409 = vrot.slane %v6379, 2
      %v6410 = vrot.slane %v6380, 2
      %v6411 = vrot.slane %v6381, 2
      %v6412 = vrot.slane %v6382, 2
      %v6413 = vrot.slane %v6383, 2
      %v6414 = vrot.slane %v6384, 2
      %v6430 = vadd.f32 %v6331, %v6400
      %v6431 = vadd.f32 %v6332, %v6401
      %v6432 = vadd.f32 %v6333, %v6402
      %v6433 = vadd.f32 %v6334, %v6403
      %v6434 = vadd.f32 %v6335, %v6404
      %v6435 = vadd.f32 %v6336, %v6405
      %v6436 = vadd.f32 %v6337, %v6406
      %v6437 = vadd.f32 %v6338, %v6407
      %v6438 = vadd.f32 %v6339, %v6408
      %v6439 = vadd.f32 %v6340, %v6409
      %v6440 = vadd.f32 %v6341, %v6410
      %v6441 = vadd.f32 %v6342, %v6411
      %v6442 = vadd.f32 %v6343, %v6412
      %v6443 = vadd.f32 %v6344, %v6413
      %v6444 = vadd.f32 %v6345, %v6414
      %s6445 = scalar_lea.vmem %s0, 223
      %v6446 = vld [vmem:[%s6445] ss:$8 sm:$0x7]
      %v6447 = vld [vmem:[%s5928 + $0x18] sm:$0x7c]
      %v6448 = vld [vmem:[%s5928 + $0x40] sm:$0x7c]
      %v6449 = vld [vmem:[%s5928 + $0x68] sm:$0x7c]
      %v6450 = vld [vmem:[%s5928 + $0x90] sm:$0x7c]
      %v6451 = vld [vmem:[%s5928 + $0xb8] sm:$0x7c]
      %v6453 = vperm.slane %v6446, 0
      %v6454 = vperm.slane %v6446, 1
      %v6455 = vperm.slane %v6446, 2
      %v6459 = vmul.f32 %v6349, %v6453
      %v6460 = vmul.f32 %v6350, %v6454
      %v6461 = vmul.f32 %v6447, %v6455
      %v6462 = vmul.f32 %v6352, %v6453
      %v6463 = vmul.f32 %v6353, %v6454
      %v6464 = vmul.f32 %v6448, %v6455
      %v6465 = vmul.f32 %v6355, %v6453
      %v6466 = vmul.f32 %v6356, %v6454
      %v6467 = vmul.f32 %v6449, %v6455
      %v6468 = vmul.f32 %v6358, %v6453
      %v6469 = vmul.f32 %v6359, %v6454
      %v6470 = vmul.f32 %v6450, %v6455
      %v6471 = vmul.f32 %v6361, %v6453
      %v6472 = vmul.f32 %v6362, %v6454
      %v6473 = vmul.f32 %v6451, %v6455
      %v6489 = vrot.slane %v6459, 2
      %v6490 = vrot.slane %v6460, 2
      %v6491 = vrot.slane %v6461, 2
      %v6492 = vrot.slane %v6462, 2
      %v6493 = vrot.slane %v6463, 2
      %v6494 = vrot.slane %v6464, 2
      %v6495 = vrot.slane %v6465, 2
      %v6496 = vrot.slane %v6466, 2
      %v6497 = vrot.slane %v6467, 2
      %v6498 = vrot.slane %v6468, 2
      %v6499 = vrot.slane %v6469, 2
      %v6500 = vrot.slane %v6470, 2
      %v6501 = vrot.slane %v6471, 2
      %v6502 = vrot.slane %v6472, 2
      %v6503 = vrot.slane %v6473, 2
      %v6519 = vadd.f32 %v6430, %v6489
      %v6520 = vadd.f32 %v6431, %v6490
      %v6521 = vadd.f32 %v6432, %v6491
      %v6522 = vadd.f32 %v6433, %v6492
      %v6523 = vadd.f32 %v6434, %v6493
      %v6524 = vadd.f32 %v6435, %v6494
      %v6525 = vadd.f32 %v6436, %v6495
      %v6526 = vadd.f32 %v6437, %v6496
      %v6527 = vadd.f32 %v6438, %v6497
      %v6528 = vadd.f32 %v6439, %v6498
      %v6529 = vadd.f32 %v6440, %v6499
      %v6530 = vadd.f32 %v6441, %v6500
      %v6531 = vadd.f32 %v6442, %v6501
      %v6532 = vadd.f32 %v6443, %v6502
      %v6533 = vadd.f32 %v6444, %v6503
      %s6534 = scalar_lea.vmem %s0, 240
      %v6535 = vld [vmem:[%s6534] ss:$8 sm:$0x7]
      %v6536 = vld [vmem:[%s5928 + $0x20] sm:$0x7c]
      %v6537 = vld [vmem:[%s5928 + $0x48] sm:$0x7c]
      %v6538 = vld [vmem:[%s5928 + $0x70] sm:$0x7c]
      %v6539 = vld [vmem:[%s5928 + $0x98] sm:$0x7c]
      %v6540 = vld [vmem:[%s5928 + $0xc0] sm:$0x7c]
      %v6542 = vperm.slane %v6535, 0
      %v6543 = vperm.slane %v6535, 1
      %v6544 = vperm.slane %v6535, 2
      %v6548 = vmul.f32 %v6350, %v6542
      %v6549 = vmul.f32 %v6447, %v6543
      %v6550 = vmul.f32 %v6536, %v6544
      %v6551 = vmul.f32 %v6353, %v6542
      %v6552 = vmul.f32 %v6448, %v6543
      %v6553 = vmul.f32 %v6537, %v6544
      %v6554 = vmul.f32 %v6356, %v6542
      %v6555 = vmul.f32 %v6449, %v6543
      %v6556 = vmul.f32 %v6538, %v6544
      %v6557 = vmul.f32 %v6359, %v6542
      %v6558 = vmul.f32 %v6450, %v6543
      %v6559 = vmul.f32 %v6539, %v6544
      %v6560 = vmul.f32 %v6362, %v6542
      %v6561 = vmul.f32 %v6451, %v6543
      %v6562 = vmul.f32 %v6540, %v6544
      %v6578 = vrot.slane %v6548, 2
      %v6579 = vrot.slane %v6549, 2
      %v6580 = vrot.slane %v6550, 2
      %v6581 = vrot.slane %v6551, 2
      %v6582 = vrot.slane %v6552, 2
      %v6583 = vrot.slane %v6553, 2
      %v6584 = vrot.slane %v6554, 2
      %v6585 = vrot.slane %v6555, 2
      %v6586 = vrot.slane %v6556, 2
      %v6587 = vrot.slane %v6557, 2
      %v6588 = vrot.slane %v6558, 2
      %v6589 = vrot.slane %v6559, 2
      %v6590 = vrot.slane %v6560, 2
      %v6591 = vrot.slane %v6561, 2
      %v6592 = vrot.slane %v6562, 2
      %v6608 = vadd.f32 %v6519, %v6578
      %v6609 = vadd.f32 %v6520, %v6579
      %v6610 = vadd.f32 %v6521, %v6580
      %v6611 = vadd.f32 %v6522, %v6581
      %v6612 = vadd.f32 %v6523, %v6582
      %v6613 = vadd.f32 %v6524, %v6583
      %v6614 = vadd.f32 %v6525, %v6584
      %v6615 = vadd.f32 %v6526, %v6585
      %v6616 = vadd.f32 %v6527, %v6586
      %v6617 = vadd.f32 %v6528, %v6587
      %v6618 = vadd.f32 %v6529, %v6588
      %v6619 = vadd.f32 %v6530, %v6589
      %v6620 = vadd.f32 %v6531, %v6590
      %v6621 = vadd.f32 %v6532, %v6591
      %v6622 = vadd.f32 %v6533, %v6592
      %6623 = vst [vmem:[%s334] sm:$0x1f] %v6608
      %6624 = vst [vmem:[%s334 + $0x8] sm:$0x1f] %v6609
      %6625 = vst [vmem:[%s334 + $0x10] sm:$0x1f] %v6610
      %6626 = vst [vmem:[%s334 + $0x18] sm:$0x1f] %v6611
      %6627 = vst [vmem:[%s334 + $0x20] sm:$0x1f] %v6612
      %6628 = vst [vmem:[%s334 + $0x28] sm:$0x1f] %v6613
      %6629 = vst [vmem:[%s334 + $0x30] sm:$0x1f] %v6614
      %6630 = vst [vmem:[%s334 + $0x38] sm:$0x1f] %v6615
      %6631 = vst [vmem:[%s334 + $0x40] sm:$0x1f] %v6616
      %6632 = vst [vmem:[%s334 + $0x48] sm:$0x1f] %v6617
      %6633 = vst [vmem:[%s334 + $0x50] sm:$0x1f] %v6618
      %6634 = vst [vmem:[%s334 + $0x58] sm:$0x1f] %v6619
      %6635 = vst [vmem:[%s334 + $0x60] sm:$0x1f] %v6620
      %6636 = vst [vmem:[%s334 + $0x68] sm:$0x1f] %v6621
      %6637 = vst [vmem:[%s334 + $0x70] sm:$0x1f] %v6622
      %s6638 = smul.u32 5, %s22
      %p6639 = scmp.lt.s32.totalorder %s20, 1
      %s6640 = scalar_select %p6639, %s20, 1
      %p6641 = scmp.lt.s32.totalorder %s21, 4
      %s6642 = scalar_select %p6641, %s21, 4
      %p6643 = scmp.lt.s32.totalorder %s6638, 4
      %s6644 = scalar_select %p6643, %s6638, 4
      %s6645 = smul.addr %s6644, 3
      %s6646 = smul.addr %s6642, 15
      %s6647 = sadd.s32 %s6645, %s6646
      %s6648 = smul.addr %s6640, 75
      %s6649 = sadd.s32 %s6647, %s6648
      %s6650 = smul.addr %s6649, 8
      %s6651 = scalar_lea.vmem %s4, %s6650
      // Predicated region
      $region37: #{tpu_custom_call.1} parent=35 // pred_check
        %p6652 = pneg %p165
      $region38: #{tpu_custom_call.1} parent=35 // pred_check_branch
        %6654 = sbr.rel (%p6652) target = $region40
      $region39: #{tpu_custom_call.1} parent=35 // pred_region
        %s6655 = smul.u32 5, %s22
      $region40: #{tpu_custom_call.1} parent=35 // pred_fallthru
        _
    $region36: #{tpu_custom_call.1} parent=5 // pred_fallthru
      _
    %p6656 = scmp.le.s32.totalorder 2, %s10
    // Predicated region
    $region41: #{tpu_custom_call.1} parent=5 // pred_check
      %p6657 = pneg %p6656
    $region42: #{tpu_custom_call.1} parent=5 // pred_check_branch
      %6659 = sbr.rel (%p6657) target = $region44
    $region43: #{tpu_custom_call.1} parent=5 // pred_region
      %s6660 = ssub.s32 %s10, 2
      // Predicated region
      $region45: #{tpu_custom_call.1} parent=43 // pred_check
        %p6661 = pneg %p171
      $region46: #{tpu_custom_call.1} parent=43 // pred_check_branch
        %6663 = sbr.rel (%p6661) target = $region48
      $region47: #{tpu_custom_call.1} parent=43 // pred_region
        %s6664 = smul.u32 5, %s25
        %p6665 = scmp.lt.s32.totalorder %s23, 1
        %s6666 = scalar_select %p6665, %s23, 1
        %p6667 = scmp.lt.s32.totalorder %s24, 4
        %s6668 = scalar_select %p6667, %s24, 4
        %p6669 = scmp.lt.s32.totalorder %s6664, 4
        %s6670 = scalar_select %p6669, %s6664, 4
        %s6671 = smul.addr %s6670, 3
        %s6672 = smul.addr %s6668, 15
        %s6673 = sadd.s32 %s6671, %s6672
        %s6674 = smul.addr %s6666, 75
        %s6675 = sadd.s32 %s6673, %s6674
        %s6676 = smul.addr %s6675, 8
        %s6677 = scalar_lea.vmem %s4, %s6676
      $region48: #{tpu_custom_call.1} parent=43 // pred_fallthru
        _
    $region44: #{tpu_custom_call.1} parent=5 // pred_fallthru
      _
  $region6: #{tpu_custom_call.1} parent=0 // loop_footer
    %s14 = sadd.s32 1, %s10
  $region7: #{tpu_custom_call.1} parent=0 // loop_footer_branch
    %9 = sbr.rel target = $region3
  $region8: #{tpu_custom_call.1} parent=0 // loop_exit
    _

</llo_original>
